<compile_context>
chip_gen: v6e
topology: v6e:2x2x1
jax: 0.10.0
libtpu: 0.0.40
codegen_flags: <defaults>
</compile_context>

<pallas_src>
import functools

import jax
import jax.numpy as jnp
from jax.experimental import pallas as pl
from jax.experimental.pallas import tpu as pltpu


def _round_up(x, m):
    return (x + m - 1) // m * m


def basic_block_kernel(x_ref, mask_ref, w1_ref, b1_ref, w2_ref, b2_ref,
                       out_ref, mid_ref, *, H, W, S, batch_block):
    """Fused BasicBlock forward for `batch_block` images per grid step.

    Layout contract ("flattened padded", chainable block-to-block): an
    activation is (R, C) with the zero-padded (H+2)x(W+2) image flattened
    row-major starting at row S; everything outside the HxW interior is zero.

    x_ref   : (batch_block, R, Cin)   input, compute dtype
    mask_ref: (M, 1) f32              1.0 for real columns (w < W) else 0.0
    w1_ref  : (9*Cin, C1)             conv1 weight (bn1 scale folded), im2col order
    b1_ref  : (1, C1) f32             folded bn1 bias
    w2_ref  : (9*C1, C2)              conv2 weight (bn2 scale folded)
    b2_ref  : (1, C2) f32             folded bn2 bias
    out_ref : (batch_block, R, C2)    output, same layout & dtype as the input
    mid_ref : (R, C1) VMEM scratch    padded conv1 output
    """
    Wp = W + 2
    M = H * Wp                      # extended rows (valid + 2 masked cols per row)
    i0 = S + Wp + 1                 # interior start row (16-aligned by construction)
    R = mid_ref.shape[0]
    C1 = w1_ref.shape[1]
    C2 = w2_ref.shape[1]
    cdtype = mid_ref.dtype

    mask = mask_ref[...]            # (M, 1) f32, resident constant
    offs = [kh * Wp + kw for kh in range(3) for kw in range(3)]

    # Residual quirk of the source model (`out[0] += residue[0]`):
    # only the global batch element 0 gets the skip connection.
    gate0 = (pl.program_id(0) == 0).astype(jnp.float32)

    for bi in range(batch_block):
        # ---- conv1 (3x3, pad 1): one fat-K matmul over 9 lane-concatenated taps
        cols1 = jnp.concatenate(
            [x_ref[bi, S + o:S + o + M, :] for o in offs], axis=1)   # (M, 9*Cin)
        y1 = jnp.dot(cols1, w1_ref[...], preferred_element_type=jnp.float32)
        # bn1 bias (scale folded into w1) + relu; zero the 2 masked columns per
        # row so that, shifted by Wp+1, they double as conv2's zero-pad columns.
        y1 = mask * jnp.maximum(y1 + b1_ref[...], 0.0)

        # ---- padded intermediate for conv2 (only the halo rows are re-zeroed)
        mid_ref[0:i0, :] = jnp.zeros((i0, C1), cdtype)
        mid_ref[i0 + M:R, :] = jnp.zeros((R - i0 - M, C1), cdtype)
        mid_ref[i0:i0 + M, :] = y1.astype(cdtype)

        # ---- conv2 (3x3, pad 1): one fat-K matmul + bn2 bias
        cols2 = jnp.concatenate(
            [mid_ref[S + o:S + o + M, :] for o in offs], axis=1)     # (M, 9*C1)
        y2 = jnp.dot(cols2, w2_ref[...], preferred_element_type=jnp.float32)
        y2 = y2 + b2_ref[...]

        if bi == 0:
            res = x_ref[bi, i0:i0 + M, :].astype(jnp.float32)
            y2 = y2 + res * gate0
        y = mask * jnp.maximum(y2, 0.0)

        # Emit in the same flattened-padded layout (directly chainable to the
        # next block): zero halo rows, masked interior at offset i0.
        out_ref[bi, 0:i0, :] = jnp.zeros((i0, C2), out_ref.dtype)
        out_ref[bi, i0 + M:R, :] = jnp.zeros((R - i0 - M, C2), out_ref.dtype)
        out_ref[bi, i0:i0 + M, :] = y.astype(out_ref.dtype)


def basic_block_forward(x_nchw, w1_oihw, bn1, w2_oihw, bn2, eps=1e-5,
                        compute_dtype=jnp.bfloat16, batch_block=1):
    """bn* = (gamma, beta, running_mean, running_var); eval-mode BN."""
    N, Cin, H, W = x_nchw.shape
    C1 = w1_oihw.shape[0]
    C2 = w2_oihw.shape[0]
    assert Cin == C2, "identity residual requires in_planes == planes"
    assert N % batch_block == 0

    Hp, Wp = H + 2, W + 2
    M = H * Wp
    S = (-(Wp + 1)) % 16                      # leading slack -> interior 16-aligned
    R = _round_up(S + Hp * Wp + 2, 16)        # rows incl. tap slack, sublane-packed

    # ---- once-per-network glue (chained blocks reuse the padded layout) ----
    x = jnp.transpose(x_nchw, (0, 2, 3, 1))                      # NHWC
    xpad = jnp.pad(x, ((0, 0), (1, 1), (1, 1), (0, 0)))          # (N, Hp, Wp, Cin)
    xflat = jnp.pad(xpad.reshape(N, Hp * Wp, Cin),
                    ((0, 0), (S, R - S - Hp * Wp), (0, 0))).astype(compute_dtype)

    g1, be1, m1, v1 = bn1
    g2, be2, m2, v2 = bn2
    s1 = g1 / jnp.sqrt(v1 + eps)
    s2 = g2 / jnp.sqrt(v2 + eps)
    b1 = (be1 - m1 * s1).reshape(1, C1).astype(jnp.float32)
    b2 = (be2 - m2 * s2).reshape(1, C2).astype(jnp.float32)
    # Fold BN scale into the conv weights (f32), reshape to im2col (kh,kw,cin)
    # order, then cast for the MXU.
    w1 = (jnp.transpose(w1_oihw, (2, 3, 1, 0)) * s1).reshape(9 * Cin, C1)
    w2 = (jnp.transpose(w2_oihw, (2, 3, 1, 0)) * s2).reshape(9 * C1, C2)
    w1 = w1.astype(compute_dtype)
    w2 = w2.astype(compute_dtype)

    # Column mask (1.0 for w < W) computed once, loaded once (constant index_map).
    colmask = ((jnp.arange(M) % Wp) < W).astype(jnp.float32).reshape(M, 1)

    kernel = functools.partial(basic_block_kernel, H=H, W=W, S=S,
                               batch_block=batch_block)

    out_pad = pl.pallas_call(
        kernel,
        out_shape=jax.ShapeDtypeStruct((N, R, C2), compute_dtype),
        grid_spec=pltpu.PrefetchScalarGridSpec(
            num_scalar_prefetch=0,
            grid=(N // batch_block,),
            in_specs=[
                pl.BlockSpec((batch_block, R, Cin), lambda b: (b, 0, 0)),
                pl.BlockSpec((M, 1),                lambda b: (0, 0)),
                pl.BlockSpec((9 * Cin, C1),         lambda b: (0, 0)),
                pl.BlockSpec((1, C1),               lambda b: (0, 0)),
                pl.BlockSpec((9 * C1, C2),          lambda b: (0, 0)),
                pl.BlockSpec((1, C2),               lambda b: (0, 0)),
            ],
            out_specs=pl.BlockSpec((batch_block, R, C2), lambda b: (b, 0, 0)),
            scratch_shapes=[pltpu.VMEM((R, C1), compute_dtype)],
        ),
        compiler_params=pltpu.CompilerParams(
            dimension_semantics=("parallel",)),
    )(xflat, colmask, w1, b1, w2, b2)

    # Unpack the padded layout back to NCHW (demo only; chained blocks would
    # feed out_pad straight into the next block).
    out = out_pad[:, S:S + Hp * Wp, :].reshape(N, Hp, Wp, C2)
    out = out[:, 1:H + 1, 1:W + 1, :]
    return jnp.transpose(out, (0, 3, 1, 2)).astype(jnp.float32)


def reference_forward(x, w1, bn1, w2, bn2, eps=1e-5):
    """Pure-JAX reference of the BasicBlock forward (eval-mode BN)."""
    def conv(a, w):
        return jax.lax.conv_general_dilated(
            a, w, (1, 1), "SAME",
            dimension_numbers=("NCHW", "OIHW", "NCHW"))

    def bn(a, p):
        g, be, m, v = p
        s = g / jnp.sqrt(v + eps)
        b = be - m * s
        return a * s.reshape(1, -1, 1, 1) + b.reshape(1, -1, 1, 1)

    out = jnp.maximum(bn(conv(x, w1), bn1), 0.0)
    out = bn(conv(out, w2), bn2)
    out = out.at[0].add(x[0])          # out[0] += residue[0]
    return jnp.maximum(out, 0.0)


if __name__ == "__main__":
    N, C, H, W = 2, 8, 16, 16          # in_planes == planes (downsample=None)
    planes = C

    key = jax.random.PRNGKey(0)
    ks = jax.random.split(key, 11)
    x = jax.random.normal(ks[0], (N, C, H, W), jnp.float32)

    w1 = jax.random.normal(ks[1], (planes, C, 3, 3), jnp.float32) * 0.2
    g1 = jax.random.uniform(ks[2], (planes,), jnp.float32, minval=0.5, maxval=1.5)
    be1 = jax.random.normal(ks[3], (planes,), jnp.float32) * 0.1
    m1 = jax.random.normal(ks[4], (planes,), jnp.float32) * 0.1
    v1 = jax.random.uniform(ks[5], (planes,), jnp.float32, minval=0.5, maxval=1.5)

    w2 = jax.random.normal(ks[6], (planes, planes, 3, 3), jnp.float32) * 0.2
    g2 = jax.random.uniform(ks[7], (planes,), jnp.float32, minval=0.5, maxval=1.5)
    be2 = jax.random.normal(ks[8], (planes,), jnp.float32) * 0.1
    m2 = jax.random.normal(ks[9], (planes,), jnp.float32) * 0.1
    v2 = jax.random.uniform(ks[10], (planes,), jnp.float32, minval=0.5, maxval=1.5)

    bn1 = (g1, be1, m1, v1)
    bn2 = (g2, be2, m2, v2)

    ref = reference_forward(x, w1, bn1, w2, bn2)

    # f32 compute path, 1 image per step: exact-logic check vs. the reference.
    out_f32 = basic_block_forward(x, w1, bn1, w2, bn2,
                                  compute_dtype=jnp.float32, batch_block=1)
    out_f32 = jax.block_until_ready(out_f32)
    assert out_f32.shape == (N, planes, H, W), out_f32.shape
    assert jnp.allclose(out_f32, ref, atol=1e-3, rtol=1e-3), float(
        jnp.max(jnp.abs(out_f32 - ref)))

    # bf16 compute path (default / fast), 2 images per step: loose tolerance.
    out_bf16 = basic_block_forward(x, w1, bn1, w2, bn2,
                                   compute_dtype=jnp.bfloat16, batch_block=2)
    out_bf16 = jax.block_until_ready(out_bf16)
    assert out_bf16.shape == (N, planes, H, W), out_bf16.shape
    assert jnp.allclose(out_bf16, ref, atol=2e-1, rtol=2e-1), float(
        jnp.max(jnp.abs(out_bf16 - ref)))

    print("KERNEL_OK")
</pallas_src>

<mosaic_0001>
module attributes {stable_mosaic.version = 11 : i64} {
  func.func @basic_block_kernel(%arg0: i32, %arg1: memref<1x352x8xf32, #tpu.memory_space<vmem>>, %arg2: memref<288x1xf32, #tpu.memory_space<vmem>>, %arg3: memref<72x8xf32, #tpu.memory_space<vmem>>, %arg4: memref<1x8xf32, #tpu.memory_space<vmem>>, %arg5: memref<72x8xf32, #tpu.memory_space<vmem>>, %arg6: memref<1x8xf32, #tpu.memory_space<vmem>>, %arg7: memref<1x352x8xf32, #tpu.memory_space<vmem>>, %arg8: memref<352x8xf32, #tpu.memory_space<vmem>>) attributes {dimension_semantics = [#tpu.dimension_semantics<parallel>], iteration_bounds = array<i64: 2>, scalar_prefetch = 0 : i64, scratch_operands = 1 : i64, tpu.core_type = #tpu.core_type<tc>, window_params = [{transform_indices = @transform_0, window_bounds = array<i64: 1, 352, 8>}, {pipeline_mode = #tpu.pipeline_mode<synchronous>, transform_indices = @transform_1, window_bounds = array<i64: 288, 1>}, {pipeline_mode = #tpu.pipeline_mode<synchronous>, transform_indices = @transform_2, window_bounds = array<i64: 72, 8>}, {pipeline_mode = #tpu.pipeline_mode<synchronous>, transform_indices = @transform_3, window_bounds = array<i64: 1, 8>}, {pipeline_mode = #tpu.pipeline_mode<synchronous>, transform_indices = @transform_4, window_bounds = array<i64: 72, 8>}, {pipeline_mode = #tpu.pipeline_mode<synchronous>, transform_indices = @transform_5, window_bounds = array<i64: 1, 8>}, {transform_indices = @transform_6, window_bounds = array<i64: 1, 352, 8>}]} {
    %c0 = arith.constant 0 : index
    %c0_0 = arith.constant 0 : index
    %0 = vector.load %arg2[%c0, %c0_0] : memref<288x1xf32, #tpu.memory_space<vmem>>, vector<288x1xf32>
    %c0_i32 = arith.constant 0 : i32
    %1 = arith.cmpi eq, %arg0, %c0_i32 : i32
    %2 = arith.extui %1 : i1 to i32
    %3 = arith.sitofp %2 : i32 to f32
    %c0_1 = arith.constant 0 : index
    %c13 = arith.constant 13 : index
    %c0_2 = arith.constant 0 : index
    %4 = vector.load %arg1[%c0_1, %c13, %c0_2] : memref<1x352x8xf32, #tpu.memory_space<vmem>>, vector<1x288x8xf32>
    %5 = vector.shape_cast %4 : vector<1x288x8xf32> to vector<288x8xf32>
    %c0_3 = arith.constant 0 : index
    %c14 = arith.constant 14 : index
    %c0_4 = arith.constant 0 : index
    %6 = vector.load %arg1[%c0_3, %c14, %c0_4] : memref<1x352x8xf32, #tpu.memory_space<vmem>>, vector<1x288x8xf32>
    %7 = vector.shape_cast %6 : vector<1x288x8xf32> to vector<288x8xf32>
    %c0_5 = arith.constant 0 : index
    %c15 = arith.constant 15 : index
    %c0_6 = arith.constant 0 : index
    %8 = vector.load %arg1[%c0_5, %c15, %c0_6] : memref<1x352x8xf32, #tpu.memory_space<vmem>>, vector<1x288x8xf32>
    %9 = vector.shape_cast %8 : vector<1x288x8xf32> to vector<288x8xf32>
    %c0_7 = arith.constant 0 : index
    %c31 = arith.constant 31 : index
    %c0_8 = arith.constant 0 : index
    %10 = vector.load %arg1[%c0_7, %c31, %c0_8] : memref<1x352x8xf32, #tpu.memory_space<vmem>>, vector<1x288x8xf32>
    %11 = vector.shape_cast %10 : vector<1x288x8xf32> to vector<288x8xf32>
    %c0_9 = arith.constant 0 : index
    %c32 = arith.constant 32 : index
    %c0_10 = arith.constant 0 : index
    %12 = vector.load %arg1[%c0_9, %c32, %c0_10] : memref<1x352x8xf32, #tpu.memory_space<vmem>>, vector<1x288x8xf32>
    %13 = vector.shape_cast %12 : vector<1x288x8xf32> to vector<288x8xf32>
    %c0_11 = arith.constant 0 : index
    %c33 = arith.constant 33 : index
    %c0_12 = arith.constant 0 : index
    %14 = vector.load %arg1[%c0_11, %c33, %c0_12] : memref<1x352x8xf32, #tpu.memory_space<vmem>>, vector<1x288x8xf32>
    %15 = vector.shape_cast %14 : vector<1x288x8xf32> to vector<288x8xf32>
    %c0_13 = arith.constant 0 : index
    %c49 = arith.constant 49 : index
    %c0_14 = arith.constant 0 : index
    %16 = vector.load %arg1[%c0_13, %c49, %c0_14] : memref<1x352x8xf32, #tpu.memory_space<vmem>>, vector<1x288x8xf32>
    %17 = vector.shape_cast %16 : vector<1x288x8xf32> to vector<288x8xf32>
    %c0_15 = arith.constant 0 : index
    %c50 = arith.constant 50 : index
    %c0_16 = arith.constant 0 : index
    %18 = vector.load %arg1[%c0_15, %c50, %c0_16] : memref<1x352x8xf32, #tpu.memory_space<vmem>>, vector<1x288x8xf32>
    %19 = vector.shape_cast %18 : vector<1x288x8xf32> to vector<288x8xf32>
    %c0_17 = arith.constant 0 : index
    %c51 = arith.constant 51 : index
    %c0_18 = arith.constant 0 : index
    %20 = vector.load %arg1[%c0_17, %c51, %c0_18] : memref<1x352x8xf32, #tpu.memory_space<vmem>>, vector<1x288x8xf32>
    %21 = vector.shape_cast %20 : vector<1x288x8xf32> to vector<288x8xf32>
    %22 = tpu.concatenate %5, %7, %9, %11, %13, %15, %17, %19, %21 in 1 : vector<288x8xf32>, vector<288x8xf32>, vector<288x8xf32>, vector<288x8xf32>, vector<288x8xf32>, vector<288x8xf32>, vector<288x8xf32>, vector<288x8xf32>, vector<288x8xf32> -> vector<288x72xf32>
    %c0_19 = arith.constant 0 : index
    %c0_20 = arith.constant 0 : index
    %23 = vector.load %arg3[%c0_19, %c0_20] : memref<72x8xf32, #tpu.memory_space<vmem>>, vector<72x8xf32>
    %cst = arith.constant dense<0.000000e+00> : vector<288x8xf32>
    %24 = tpu.matmul %22, %23, %cst {dimension_numbers = #tpu.dot_dimension_numbers<[1], [0], [0], [1], [0, 0, 1, 1], [], []>} : vector<288x72xf32>, vector<72x8xf32>, vector<288x8xf32> -> vector<288x8xf32>
    %c0_21 = arith.constant 0 : index
    %c0_22 = arith.constant 0 : index
    %25 = vector.load %arg4[%c0_21, %c0_22] : memref<1x8xf32, #tpu.memory_space<vmem>>, vector<1x8xf32>
    %26 = vector.broadcast %25 : vector<1x8xf32> to vector<288x8xf32>
    %27 = arith.addf %24, %26 : vector<288x8xf32>
    %cst_23 = arith.constant 0.000000e+00 : f32
    %28 = vector.broadcast %cst_23 : f32 to vector<288x8xf32>
    %29 = arith.maximumf %27, %28 : vector<288x8xf32>
    %30 = vector.broadcast %0 : vector<288x1xf32> to vector<288x8xf32>
    %31 = arith.mulf %30, %29 : vector<288x8xf32>
    %cst_24 = arith.constant 0.000000e+00 : f32
    %32 = vector.broadcast %cst_24 : f32 to vector<32x8xf32>
    %c0_25 = arith.constant 0 : index
    %c0_26 = arith.constant 0 : index
    %33 = vector.load %arg8[%c0_25, %c0_26] : memref<352x8xf32, #tpu.memory_space<vmem>>, vector<32x8xf32>
    tpu.vector_store %arg8[%c0_25, %c0_26], %32 {strides = array<i32>} : memref<352x8xf32, #tpu.memory_space<vmem>>, vector<32x8xf32>,
    %cst_27 = arith.constant 0.000000e+00 : f32
    %34 = vector.broadcast %cst_27 : f32 to vector<32x8xf32>
    %c320 = arith.constant 320 : index
    %c0_28 = arith.constant 0 : index
    %35 = vector.load %arg8[%c320, %c0_28] : memref<352x8xf32, #tpu.memory_space<vmem>>, vector<32x8xf32>
    tpu.vector_store %arg8[%c320, %c0_28], %34 {strides = array<i32>} : memref<352x8xf32, #tpu.memory_space<vmem>>, vector<32x8xf32>,
    %c32_29 = arith.constant 32 : index
    %c0_30 = arith.constant 0 : index
    %36 = vector.load %arg8[%c32_29, %c0_30] : memref<352x8xf32, #tpu.memory_space<vmem>>, vector<288x8xf32>
    tpu.vector_store %arg8[%c32_29, %c0_30], %31 {strides = array<i32>} : memref<352x8xf32, #tpu.memory_space<vmem>>, vector<288x8xf32>,
    %c13_31 = arith.constant 13 : index
    %c0_32 = arith.constant 0 : index
    %37 = vector.load %arg8[%c13_31, %c0_32] : memref<352x8xf32, #tpu.memory_space<vmem>>, vector<288x8xf32>
    %c14_33 = arith.constant 14 : index
    %c0_34 = arith.constant 0 : index
    %38 = vector.load %arg8[%c14_33, %c0_34] : memref<352x8xf32, #tpu.memory_space<vmem>>, vector<288x8xf32>
    %c15_35 = arith.constant 15 : index
    %c0_36 = arith.constant 0 : index
    %39 = vector.load %arg8[%c15_35, %c0_36] : memref<352x8xf32, #tpu.memory_space<vmem>>, vector<288x8xf32>
    %c31_37 = arith.constant 31 : index
    %c0_38 = arith.constant 0 : index
    %40 = vector.load %arg8[%c31_37, %c0_38] : memref<352x8xf32, #tpu.memory_space<vmem>>, vector<288x8xf32>
    %c32_39 = arith.constant 32 : index
    %c0_40 = arith.constant 0 : index
    %41 = vector.load %arg8[%c32_39, %c0_40] : memref<352x8xf32, #tpu.memory_space<vmem>>, vector<288x8xf32>
    %c33_41 = arith.constant 33 : index
    %c0_42 = arith.constant 0 : index
    %42 = vector.load %arg8[%c33_41, %c0_42] : memref<352x8xf32, #tpu.memory_space<vmem>>, vector<288x8xf32>
    %c49_43 = arith.constant 49 : index
    %c0_44 = arith.constant 0 : index
    %43 = vector.load %arg8[%c49_43, %c0_44] : memref<352x8xf32, #tpu.memory_space<vmem>>, vector<288x8xf32>
    %c50_45 = arith.constant 50 : index
    %c0_46 = arith.constant 0 : index
    %44 = vector.load %arg8[%c50_45, %c0_46] : memref<352x8xf32, #tpu.memory_space<vmem>>, vector<288x8xf32>
    %c51_47 = arith.constant 51 : index
    %c0_48 = arith.constant 0 : index
    %45 = vector.load %arg8[%c51_47, %c0_48] : memref<352x8xf32, #tpu.memory_space<vmem>>, vector<288x8xf32>
    %46 = tpu.concatenate %37, %38, %39, %40, %41, %42, %43, %44, %45 in 1 : vector<288x8xf32>, vector<288x8xf32>, vector<288x8xf32>, vector<288x8xf32>, vector<288x8xf32>, vector<288x8xf32>, vector<288x8xf32>, vector<288x8xf32>, vector<288x8xf32> -> vector<288x72xf32>
    %c0_49 = arith.constant 0 : index
    %c0_50 = arith.constant 0 : index
    %47 = vector.load %arg5[%c0_49, %c0_50] : memref<72x8xf32, #tpu.memory_space<vmem>>, vector<72x8xf32>
    %cst_51 = arith.constant dense<0.000000e+00> : vector<288x8xf32>
    %48 = tpu.matmul %46, %47, %cst_51 {dimension_numbers = #tpu.dot_dimension_numbers<[1], [0], [0], [1], [0, 0, 1, 1], [], []>} : vector<288x72xf32>, vector<72x8xf32>, vector<288x8xf32> -> vector<288x8xf32>
    %c0_52 = arith.constant 0 : index
    %c0_53 = arith.constant 0 : index
    %49 = vector.load %arg6[%c0_52, %c0_53] : memref<1x8xf32, #tpu.memory_space<vmem>>, vector<1x8xf32>
    %50 = vector.broadcast %49 : vector<1x8xf32> to vector<288x8xf32>
    %51 = arith.addf %48, %50 : vector<288x8xf32>
    %c0_54 = arith.constant 0 : index
    %c32_55 = arith.constant 32 : index
    %c0_56 = arith.constant 0 : index
    %52 = vector.load %arg1[%c0_54, %c32_55, %c0_56] : memref<1x352x8xf32, #tpu.memory_space<vmem>>, vector<1x288x8xf32>
    %53 = vector.shape_cast %52 : vector<1x288x8xf32> to vector<288x8xf32>
    %54 = vector.broadcast %3 : f32 to vector<288x8xf32>
    %55 = arith.mulf %53, %54 : vector<288x8xf32>
    %56 = arith.addf %51, %55 : vector<288x8xf32>
    %cst_57 = arith.constant 0.000000e+00 : f32
    %57 = vector.broadcast %cst_57 : f32 to vector<288x8xf32>
    %58 = arith.maximumf %56, %57 : vector<288x8xf32>
    %59 = vector.broadcast %0 : vector<288x1xf32> to vector<288x8xf32>
    %60 = arith.mulf %59, %58 : vector<288x8xf32>
    %cst_58 = arith.constant 0.000000e+00 : f32
    %61 = vector.broadcast %cst_58 : f32 to vector<32x8xf32>
    %c0_59 = arith.constant 0 : index
    %c0_60 = arith.constant 0 : index
    %c0_61 = arith.constant 0 : index
    %62 = vector.load %arg7[%c0_59, %c0_60, %c0_61] : memref<1x352x8xf32, #tpu.memory_space<vmem>>, vector<1x32x8xf32>
    %63 = vector.shape_cast %62 : vector<1x32x8xf32> to vector<32x8xf32>
    %64 = vector.shape_cast %61 : vector<32x8xf32> to vector<1x32x8xf32>
    tpu.vector_store %arg7[%c0_59, %c0_60, %c0_61], %64 {strides = array<i32>} : memref<1x352x8xf32, #tpu.memory_space<vmem>>, vector<1x32x8xf32>,
    %cst_62 = arith.constant 0.000000e+00 : f32
    %65 = vector.broadcast %cst_62 : f32 to vector<32x8xf32>
    %c0_63 = arith.constant 0 : index
    %c320_64 = arith.constant 320 : index
    %c0_65 = arith.constant 0 : index
    %66 = vector.load %arg7[%c0_63, %c320_64, %c0_65] : memref<1x352x8xf32, #tpu.memory_space<vmem>>, vector<1x32x8xf32>
    %67 = vector.shape_cast %66 : vector<1x32x8xf32> to vector<32x8xf32>
    %68 = vector.shape_cast %65 : vector<32x8xf32> to vector<1x32x8xf32>
    tpu.vector_store %arg7[%c0_63, %c320_64, %c0_65], %68 {strides = array<i32>} : memref<1x352x8xf32, #tpu.memory_space<vmem>>, vector<1x32x8xf32>,
    %c0_66 = arith.constant 0 : index
    %c32_67 = arith.constant 32 : index
    %c0_68 = arith.constant 0 : index
    %69 = vector.load %arg7[%c0_66, %c32_67, %c0_68] : memref<1x352x8xf32, #tpu.memory_space<vmem>>, vector<1x288x8xf32>
    %70 = vector.shape_cast %69 : vector<1x288x8xf32> to vector<288x8xf32>
    %71 = vector.shape_cast %60 : vector<288x8xf32> to vector<1x288x8xf32>
    tpu.vector_store %arg7[%c0_66, %c32_67, %c0_68], %71 {strides = array<i32>} : memref<1x352x8xf32, #tpu.memory_space<vmem>>, vector<1x288x8xf32>,
    return
  }
  func.func @transform_0(%arg0: i32) -> (i32, i32, i32) {
    %c0_i32 = arith.constant 0 : i32
    %c0_i32_0 = arith.constant 0 : i32
    %c0_i32_1 = arith.constant 0 : i32
    return %arg0, %c0_i32, %c0_i32_0 : i32, i32, i32
  }
  func.func @transform_1(%arg0: i32) -> (i32, i32) {
    %c0_i32 = arith.constant 0 : i32
    %c0_i32_0 = arith.constant 0 : i32
    %c0_i32_1 = arith.constant 0 : i32
    return %c0_i32, %c0_i32_0 : i32, i32
  }
  func.func @transform_2(%arg0: i32) -> (i32, i32) {
    %c0_i32 = arith.constant 0 : i32
    %c0_i32_0 = arith.constant 0 : i32
    %c0_i32_1 = arith.constant 0 : i32
    return %c0_i32, %c0_i32_0 : i32, i32
  }
  func.func @transform_3(%arg0: i32) -> (i32, i32) {
    %c0_i32 = arith.constant 0 : i32
    %c0_i32_0 = arith.constant 0 : i32
    %c0_i32_1 = arith.constant 0 : i32
    return %c0_i32, %c0_i32_0 : i32, i32
  }
  func.func @transform_4(%arg0: i32) -> (i32, i32) {
    %c0_i32 = arith.constant 0 : i32
    %c0_i32_0 = arith.constant 0 : i32
    %c0_i32_1 = arith.constant 0 : i32
    return %c0_i32, %c0_i32_0 : i32, i32
  }
  func.func @transform_5(%arg0: i32) -> (i32, i32) {
    %c0_i32 = arith.constant 0 : i32
    %c0_i32_0 = arith.constant 0 : i32
    %c0_i32_1 = arith.constant 0 : i32
    return %c0_i32, %c0_i32_0 : i32, i32
  }
  func.func @transform_6(%arg0: i32) -> (i32, i32, i32) {
    %c0_i32 = arith.constant 0 : i32
    %c0_i32_0 = arith.constant 0 : i32
    %c0_i32_1 = arith.constant 0 : i32
    return %arg0, %c0_i32, %c0_i32_0 : i32, i32, i32
  }
}

</mosaic_0001>

<llo_original>
// kernel: tpu_custom_call.1
$region0: #{tpu_custom_call.1}
  #allocation0 [shape = 'u32[]', space=smem, size = 0x4, offset = 0x4, fixed_abs, tag = 'smem constant byte address 0x4 - core index']
  #allocation1 [shape = 'u32[144,128]{1,0:T(1,128)}', space=vmem, size = 0x12000, scoped, tag = 'internal scratch']
  #allocation2 [shape = 'f32[352,8]{1,0:T(8,128)}', space=vmem, size = 0x2c000, scoped, tag = 'scratch operand']
  %s0 = inlined_call_operand.vmem [shape: f32[2,352,8], index: 0, kind: input, shape index: {}]
  %s1 = inlined_call_operand.vmem [shape: f32[288,1], index: 1, kind: input, shape index: {}]
  %s2 = inlined_call_operand.vmem [shape: f32[72,8], index: 2, kind: input, shape index: {}]
  %s3 = inlined_call_operand.vmem [shape: f32[1,8], index: 3, kind: input, shape index: {}]
  %s4 = inlined_call_operand.vmem [shape: f32[72,8], index: 4, kind: input, shape index: {}]
  %s5 = inlined_call_operand.vmem [shape: f32[1,8], index: 5, kind: input, shape index: {}]
  %s6 = inlined_call_operand.vmem [shape: f32[2,352,8], index: 6, kind: output, shape index: {}]
  %s7 = sld [smem:[#allocation0]]
  $region57: #{tpu_custom_call.1} parent=0
    _
  %s9 = ssub.s32 1, %s7
  %s10 = scalar_select 0, %s9, %s7
  loop: start=0, step=1, limit=4
  $region2: #{tpu_custom_call.1} parent=0 // loop_pre_header
    _
  $region3: #{tpu_custom_call.1} parent=0 // loop_header
    %s12 = sphi 0, %s16
    %p13 = scmp.ge.s32.totalorder %s12, 4
    %s22 = sphi 0, %s24
    %s25 = sphi 0, %s22
    %s26 = sphi 0, %s25
    %s42 = sphi 0, %s26
    %s46 = sphi 0, %s46
    %s48 = sphi 0, %s46
    %s49 = sphi 0, %s48
    %s63 = sphi 0, %s49
    %s67 = sphi 0, %s67
    %s69 = sphi 0, %s67
    %s70 = sphi 0, %s69
    %s84 = sphi 0, %s70
    %s88 = sphi 0, %s88
    %s90 = sphi 0, %s88
    %s91 = sphi 0, %s90
    %s105 = sphi 0, %s91
    %s109 = sphi 0, %s109
    %s111 = sphi 0, %s109
    %s112 = sphi 0, %s111
    %s126 = sphi 0, %s112
    %s130 = sphi 0, %s130
    %s132 = sphi 0, %s130
    %s133 = sphi 0, %s132
    %s147 = sphi 0, %s133
    %s153 = sphi 0, %s155
    %s156 = sphi 0, %s153
    %s157 = sphi 0, %s156
    %s173 = sphi 0, %s157
  $region4: #{tpu_custom_call.1} parent=0 // loop_header_branch
    %15 = sbr.rel (%p13) target = $region8
  $region5: #{tpu_custom_call.1} parent=0 // loop_body
    %s17 = ssub.s32 %s12, 1
    %s18 = ssub.s32 %s12, 2
    %s19 = sadd.s32 %s12, 1
    %s20 = ssub.s32 %s12, %s19
    %p21 = scmp.eq.s32.totalorder %s20, 0
    %s23 = sadd.s32 %s22, 1
    %s24 = scalar_select %p21, %s22, %s23
    %p27 = pneg %p21
    %p28 = scmp.eq.s32.totalorder %s12, 1
    %p29 = por %p27, %p28
    %p30 = scmp.ne.s32.totalorder %s22, %s25
    %p31 = scmp.eq.s32.totalorder %s12, 0
    %p32 = por %p30, %p31
    %p33 = scmp.ne.s32.totalorder %s22, %s25
    %p34 = scmp.eq.s32.totalorder %s17, 1
    %p35 = por %p33, %p34
    %p36 = scmp.ne.s32.totalorder %s25, %s26
    %p37 = scmp.eq.s32.totalorder %s17, 0
    %p38 = por %p36, %p37
    %p39 = scmp.ne.s32.totalorder %s25, %s26
    %p40 = scmp.eq.s32.totalorder %s18, 1
    %p41 = por %p39, %p40
    %p43 = scmp.ne.s32.totalorder %s26, %s42
    %p44 = scmp.eq.s32.totalorder %s18, 0
    %p45 = por %p43, %p44
    %s47 = sadd.s32 %s46, 1
    %p50 = scmp.eq.s32.totalorder %s12, 1
    %p51 = scmp.ne.s32.totalorder %s46, %s48
    %p52 = scmp.eq.s32.totalorder %s12, 0
    %p53 = por %p51, %p52
    %p54 = scmp.ne.s32.totalorder %s46, %s48
    %p55 = scmp.eq.s32.totalorder %s17, 1
    %p56 = por %p54, %p55
    %p57 = scmp.ne.s32.totalorder %s48, %s49
    %p58 = scmp.eq.s32.totalorder %s17, 0
    %p59 = por %p57, %p58
    %p60 = scmp.ne.s32.totalorder %s48, %s49
    %p61 = scmp.eq.s32.totalorder %s18, 1
    %p62 = por %p60, %p61
    %p64 = scmp.ne.s32.totalorder %s49, %s63
    %p65 = scmp.eq.s32.totalorder %s18, 0
    %p66 = por %p64, %p65
    %s68 = sadd.s32 %s67, 1
    %p71 = scmp.eq.s32.totalorder %s12, 1
    %p72 = scmp.ne.s32.totalorder %s67, %s69
    %p73 = scmp.eq.s32.totalorder %s12, 0
    %p74 = por %p72, %p73
    %p75 = scmp.ne.s32.totalorder %s67, %s69
    %p76 = scmp.eq.s32.totalorder %s17, 1
    %p77 = por %p75, %p76
    %p78 = scmp.ne.s32.totalorder %s69, %s70
    %p79 = scmp.eq.s32.totalorder %s17, 0
    %p80 = por %p78, %p79
    %p81 = scmp.ne.s32.totalorder %s69, %s70
    %p82 = scmp.eq.s32.totalorder %s18, 1
    %p83 = por %p81, %p82
    %p85 = scmp.ne.s32.totalorder %s70, %s84
    %p86 = scmp.eq.s32.totalorder %s18, 0
    %p87 = por %p85, %p86
    %s89 = sadd.s32 %s88, 1
    %p92 = scmp.eq.s32.totalorder %s12, 1
    %p93 = scmp.ne.s32.totalorder %s88, %s90
    %p94 = scmp.eq.s32.totalorder %s12, 0
    %p95 = por %p93, %p94
    %p96 = scmp.ne.s32.totalorder %s88, %s90
    %p97 = scmp.eq.s32.totalorder %s17, 1
    %p98 = por %p96, %p97
    %p99 = scmp.ne.s32.totalorder %s90, %s91
    %p100 = scmp.eq.s32.totalorder %s17, 0
    %p101 = por %p99, %p100
    %p102 = scmp.ne.s32.totalorder %s90, %s91
    %p103 = scmp.eq.s32.totalorder %s18, 1
    %p104 = por %p102, %p103
    %p106 = scmp.ne.s32.totalorder %s91, %s105
    %p107 = scmp.eq.s32.totalorder %s18, 0
    %p108 = por %p106, %p107
    %s110 = sadd.s32 %s109, 1
    %p113 = scmp.eq.s32.totalorder %s12, 1
    %p114 = scmp.ne.s32.totalorder %s109, %s111
    %p115 = scmp.eq.s32.totalorder %s12, 0
    %p116 = por %p114, %p115
    %p117 = scmp.ne.s32.totalorder %s109, %s111
    %p118 = scmp.eq.s32.totalorder %s17, 1
    %p119 = por %p117, %p118
    %p120 = scmp.ne.s32.totalorder %s111, %s112
    %p121 = scmp.eq.s32.totalorder %s17, 0
    %p122 = por %p120, %p121
    %p123 = scmp.ne.s32.totalorder %s111, %s112
    %p124 = scmp.eq.s32.totalorder %s18, 1
    %p125 = por %p123, %p124
    %p127 = scmp.ne.s32.totalorder %s112, %s126
    %p128 = scmp.eq.s32.totalorder %s18, 0
    %p129 = por %p127, %p128
    %s131 = sadd.s32 %s130, 1
    %p134 = scmp.eq.s32.totalorder %s12, 1
    %p135 = scmp.ne.s32.totalorder %s130, %s132
    %p136 = scmp.eq.s32.totalorder %s12, 0
    %p137 = por %p135, %p136
    %p138 = scmp.ne.s32.totalorder %s130, %s132
    %p139 = scmp.eq.s32.totalorder %s17, 1
    %p140 = por %p138, %p139
    %p141 = scmp.ne.s32.totalorder %s132, %s133
    %p142 = scmp.eq.s32.totalorder %s17, 0
    %p143 = por %p141, %p142
    %p144 = scmp.ne.s32.totalorder %s132, %s133
    %p145 = scmp.eq.s32.totalorder %s18, 1
    %p146 = por %p144, %p145
    %p148 = scmp.ne.s32.totalorder %s133, %s147
    %p149 = scmp.eq.s32.totalorder %s18, 0
    %p150 = por %p148, %p149
    %s151 = ssub.s32 %s12, %s19
    %p152 = scmp.eq.s32.totalorder %s151, 0
    %s154 = sadd.s32 %s153, 1
    %s155 = scalar_select %p152, %s153, %s154
    %p158 = pneg %p152
    %p159 = scmp.eq.s32.totalorder %s12, 1
    %p160 = por %p158, %p159
    %p161 = scmp.ne.s32.totalorder %s153, %s156
    %p162 = scmp.eq.s32.totalorder %s12, 0
    %p163 = por %p161, %p162
    %p164 = scmp.ne.s32.totalorder %s153, %s156
    %p165 = scmp.eq.s32.totalorder %s17, 1
    %p166 = por %p164, %p165
    %p167 = scmp.ne.s32.totalorder %s156, %s157
    %p168 = scmp.eq.s32.totalorder %s17, 0
    %p169 = por %p167, %p168
    %p170 = scmp.ne.s32.totalorder %s156, %s157
    %p171 = scmp.eq.s32.totalorder %s18, 1
    %p172 = por %p170, %p171
    %p174 = scmp.ne.s32.totalorder %s157, %s173
    %p175 = scmp.eq.s32.totalorder %s18, 0
    %p176 = por %p174, %p175
    %p177 = scmp.le.s32.totalorder 1, %s12
    %p178 = scmp.lt.s32.totalorder %s12, 3
    %p179 = pnand %p177, %p178
    %p180 = pneg %p179
    // Predicated region
    $region9: #{tpu_custom_call.1} parent=5 // pred_check
      _
    $region10: #{tpu_custom_call.1} parent=5 // pred_check_branch
      %182 = sbr.rel (%p179) target = $region12
    $region11: #{tpu_custom_call.1} parent=5 // pred_region
      %s183 = ssub.s32 %s12, 1
      // Predicated region
      $region13: #{tpu_custom_call.1} parent=11 // pred_check
        %p184 = pneg %p59
      $region14: #{tpu_custom_call.1} parent=11 // pred_check_branch
        %186 = sbr.rel (%p184) target = $region16
      $region15: #{tpu_custom_call.1} parent=11 // pred_region
        _
      $region16: #{tpu_custom_call.1} parent=11 // pred_fallthru
        _
      // Predicated region
      $region17: #{tpu_custom_call.1} parent=11 // pred_check
        %p187 = pneg %p80
      $region18: #{tpu_custom_call.1} parent=11 // pred_check_branch
        %189 = sbr.rel (%p187) target = $region20
      $region19: #{tpu_custom_call.1} parent=11 // pred_region
        _
      $region20: #{tpu_custom_call.1} parent=11 // pred_fallthru
        _
      // Predicated region
      $region21: #{tpu_custom_call.1} parent=11 // pred_check
        %p190 = pneg %p101
      $region22: #{tpu_custom_call.1} parent=11 // pred_check_branch
        %192 = sbr.rel (%p190) target = $region24
      $region23: #{tpu_custom_call.1} parent=11 // pred_region
        _
      $region24: #{tpu_custom_call.1} parent=11 // pred_fallthru
        _
      // Predicated region
      $region25: #{tpu_custom_call.1} parent=11 // pred_check
        %p193 = pneg %p122
      $region26: #{tpu_custom_call.1} parent=11 // pred_check_branch
        %195 = sbr.rel (%p193) target = $region28
      $region27: #{tpu_custom_call.1} parent=11 // pred_region
        _
      $region28: #{tpu_custom_call.1} parent=11 // pred_fallthru
        _
      // Predicated region
      $region29: #{tpu_custom_call.1} parent=11 // pred_check
        %p196 = pneg %p143
      $region30: #{tpu_custom_call.1} parent=11 // pred_check_branch
        %198 = sbr.rel (%p196) target = $region32
      $region31: #{tpu_custom_call.1} parent=11 // pred_region
        _
      $region32: #{tpu_custom_call.1} parent=11 // pred_fallthru
        _
    $region12: #{tpu_custom_call.1} parent=5 // pred_fallthru
      _
    %p199 = scmp.lt.s32.totalorder %s12, 2
    // Predicated region
    $region33: #{tpu_custom_call.1} parent=5 // pred_check
      %p200 = pneg %p199
    $region34: #{tpu_custom_call.1} parent=5 // pred_check_branch
      %202 = sbr.rel (%p200) target = $region36
    $region35: #{tpu_custom_call.1} parent=5 // pred_region
      // Predicated region
      $region37: #{tpu_custom_call.1} parent=35 // pred_check
        %p203 = pneg %p32
      $region38: #{tpu_custom_call.1} parent=35 // pred_check_branch
        %205 = sbr.rel (%p203) target = $region40
      $region39: #{tpu_custom_call.1} parent=35 // pred_region
        %p206 = scmp.lt.s32.totalorder %s12, 1
        %s207 = scalar_select %p206, %s12, 1
        %s208 = smul.addr %s207, 44
        %s209 = smul.addr %s208, 8
        %s210 = scalar_lea.vmem %s0, %s209
      $region40: #{tpu_custom_call.1} parent=35 // pred_fallthru
        _
    $region36: #{tpu_custom_call.1} parent=5 // pred_fallthru
      _
    %p211 = scmp.le.s32.totalorder 1, %s12
    %p212 = scmp.lt.s32.totalorder %s12, 3
    %p213 = pnand %p211, %p212
    %p214 = pneg %p213
    // Predicated region
    $region41: #{tpu_custom_call.1} parent=5 // pred_check
      _
    $region42: #{tpu_custom_call.1} parent=5 // pred_check_branch
      %216 = sbr.rel (%p213) target = $region44
    $region43: #{tpu_custom_call.1} parent=5 // pred_region
      %s217 = ssub.s32 %s12, 1
      %p218 = scmp.lt.s32.totalorder %s17, 1
      %s219 = scalar_select %p218, %s17, 1
      %s220 = smul.addr %s219, 44
      %s221 = smul.addr %s220, 8
      %s222 = scalar_lea.vmem %s0, %s221
      %p223 = pneg %p38
      %p224 = pneg %p35
      %p225 = pneg %p59
      %p226 = pneg %p56
      %p227 = pneg %p80
      %p228 = pneg %p77
      %p229 = pneg %p101
      %p230 = pneg %p98
      %p231 = pneg %p122
      %p232 = pneg %p119
      %p233 = pneg %p143
      %p234 = pneg %p140
      %p235 = pneg %p169
      %p236 = pneg %p166
      %p237 = scmp.lt.s32.totalorder %s17, 1
      %s238 = scalar_select %p237, %s17, 1
      %s239 = smul.addr %s238, 44
      %s240 = smul.addr %s239, 8
      %s241 = scalar_lea.vmem %s6, %s240
      %p242 = scmp.lt.s32.totalorder %s17, 1
      %s243 = scalar_select %p242, %s17, 1
      %s244 = smul.addr %s243, 44
      %s245 = smul.addr %s244, 8
      %s246 = scalar_lea.vmem %s0, %s245
      %p247 = scmp.lt.s32.totalorder %s17, 1
      %s248 = scalar_select %p247, %s17, 1
      %s249 = smul.addr %s248, 44
      %s250 = smul.addr %s249, 8
      %s251 = scalar_lea.vmem %s6, %s250
      %v252 = vld [vmem:[%s1] sm:$0xff]
      %v253 = vld [vmem:[%s1 + $0x8] sm:$0xff]
      %v254 = vld [vmem:[%s1 + $0x10] sm:$0xff]
      %v255 = vld [vmem:[%s1 + $0x18] sm:$0xff]
      %v256 = vld [vmem:[%s1 + $0x20] sm:$0xff]
      %v257 = vld [vmem:[%s1 + $0x28] sm:$0xff]
      %v258 = vld [vmem:[%s1 + $0x30] sm:$0xff]
      %v259 = vld [vmem:[%s1 + $0x38] sm:$0xff]
      %v260 = vld [vmem:[%s1 + $0x40] sm:$0xff]
      %v261 = vld [vmem:[%s1 + $0x48] sm:$0xff]
      %v262 = vld [vmem:[%s1 + $0x50] sm:$0xff]
      %v263 = vld [vmem:[%s1 + $0x58] sm:$0xff]
      %v264 = vld [vmem:[%s1 + $0x60] sm:$0xff]
      %v265 = vld [vmem:[%s1 + $0x68] sm:$0xff]
      %v266 = vld [vmem:[%s1 + $0x70] sm:$0xff]
      %v267 = vld [vmem:[%s1 + $0x78] sm:$0xff]
      %v268 = vld [vmem:[%s1 + $0x80] sm:$0xff]
      %v269 = vld [vmem:[%s1 + $0x88] sm:$0xff]
      %v270 = vld [vmem:[%s1 + $0x90] sm:$0xff]
      %v271 = vld [vmem:[%s1 + $0x98] sm:$0xff]
      %v272 = vld [vmem:[%s1 + $0xa0] sm:$0xff]
      %v273 = vld [vmem:[%s1 + $0xa8] sm:$0xff]
      %v274 = vld [vmem:[%s1 + $0xb0] sm:$0xff]
      %v275 = vld [vmem:[%s1 + $0xb8] sm:$0xff]
      %v276 = vld [vmem:[%s1 + $0xc0] sm:$0xff]
      %v277 = vld [vmem:[%s1 + $0xc8] sm:$0xff]
      %v278 = vld [vmem:[%s1 + $0xd0] sm:$0xff]
      %v279 = vld [vmem:[%s1 + $0xd8] sm:$0xff]
      %v280 = vld [vmem:[%s1 + $0xe0] sm:$0xff]
      %v281 = vld [vmem:[%s1 + $0xe8] sm:$0xff]
      %v282 = vld [vmem:[%s1 + $0xf0] sm:$0xff]
      %v283 = vld [vmem:[%s1 + $0xf8] sm:$0xff]
      %v284 = vld [vmem:[%s1 + $0x100] sm:$0xff]
      %v285 = vld [vmem:[%s1 + $0x108] sm:$0xff]
      %v286 = vld [vmem:[%s1 + $0x110] sm:$0xff]
      %v287 = vld [vmem:[%s1 + $0x118] sm:$0xff]
      %p288 = scmp.eq.s32.totalorder %s17, 0
      %s289 = scalar_select %p288, 1, 0
      %s290 = scvt.s32.f32 %s289
      %v291 = vld [vmem:[%s246 + $0xd] sm:$0xff]
      %v292 = vld [vmem:[%s246 + $0x15] sm:$0xff]
      %v293 = vld [vmem:[%s246 + $0x1d] sm:$0xff]
      %v294 = vld [vmem:[%s246 + $0x25] sm:$0xff]
      %v295 = vld [vmem:[%s246 + $0x2d] sm:$0xff]
      %v296 = vld [vmem:[%s246 + $0x35] sm:$0xff]
      %v297 = vld [vmem:[%s246 + $0x3d] sm:$0xff]
      %v298 = vld [vmem:[%s246 + $0x45] sm:$0xff]
      %v299 = vld [vmem:[%s246 + $0x4d] sm:$0xff]
      %v300 = vld [vmem:[%s246 + $0x55] sm:$0xff]
      %v301 = vld [vmem:[%s246 + $0x5d] sm:$0xff]
      %v302 = vld [vmem:[%s246 + $0x65] sm:$0xff]
      %v303 = vld [vmem:[%s246 + $0x6d] sm:$0xff]
      %v304 = vld [vmem:[%s246 + $0x75] sm:$0xff]
      %v305 = vld [vmem:[%s246 + $0x7d] sm:$0xff]
      %v306 = vld [vmem:[%s246 + $0x85] sm:$0xff]
      %v307 = vld [vmem:[%s246 + $0x8d] sm:$0xff]
      %v308 = vld [vmem:[%s246 + $0x95] sm:$0xff]
      %v309 = vld [vmem:[%s246 + $0x9d] sm:$0xff]
      %v310 = vld [vmem:[%s246 + $0xa5] sm:$0xff]
      %v311 = vld [vmem:[%s246 + $0xad] sm:$0xff]
      %v312 = vld [vmem:[%s246 + $0xb5] sm:$0xff]
      %v313 = vld [vmem:[%s246 + $0xbd] sm:$0xff]
      %v314 = vld [vmem:[%s246 + $0xc5] sm:$0xff]
      %v315 = vld [vmem:[%s246 + $0xcd] sm:$0xff]
      %v316 = vld [vmem:[%s246 + $0xd5] sm:$0xff]
      %v317 = vld [vmem:[%s246 + $0xdd] sm:$0xff]
      %v318 = vld [vmem:[%s246 + $0xe5] sm:$0xff]
      %v319 = vld [vmem:[%s246 + $0xed] sm:$0xff]
      %v320 = vld [vmem:[%s246 + $0xf5] sm:$0xff]
      %v321 = vld [vmem:[%s246 + $0xfd] sm:$0xff]
      %v322 = vld [vmem:[%s246 + $0x105] sm:$0xff]
      %v323 = vld [vmem:[%s246 + $0x10d] sm:$0xff]
      %v324 = vld [vmem:[%s246 + $0x115] sm:$0xff]
      %v325 = vld [vmem:[%s246 + $0x11d] sm:$0xff]
      %v326 = vld [vmem:[%s246 + $0x125] sm:$0xff]
      %v327 = vld [vmem:[%s246 + $0xe] sm:$0xff]
      %v328 = vld [vmem:[%s246 + $0x16] sm:$0xff]
      %v329 = vld [vmem:[%s246 + $0x1e] sm:$0xff]
      %v330 = vld [vmem:[%s246 + $0x26] sm:$0xff]
      %v331 = vld [vmem:[%s246 + $0x2e] sm:$0xff]
      %v332 = vld [vmem:[%s246 + $0x36] sm:$0xff]
      %v333 = vld [vmem:[%s246 + $0x3e] sm:$0xff]
      %v334 = vld [vmem:[%s246 + $0x46] sm:$0xff]
      %v335 = vld [vmem:[%s246 + $0x4e] sm:$0xff]
      %v336 = vld [vmem:[%s246 + $0x56] sm:$0xff]
      %v337 = vld [vmem:[%s246 + $0x5e] sm:$0xff]
      %v338 = vld [vmem:[%s246 + $0x66] sm:$0xff]
      %v339 = vld [vmem:[%s246 + $0x6e] sm:$0xff]
      %v340 = vld [vmem:[%s246 + $0x76] sm:$0xff]
      %v341 = vld [vmem:[%s246 + $0x7e] sm:$0xff]
      %v342 = vld [vmem:[%s246 + $0x86] sm:$0xff]
      %v343 = vld [vmem:[%s246 + $0x8e] sm:$0xff]
      %v344 = vld [vmem:[%s246 + $0x96] sm:$0xff]
      %v345 = vld [vmem:[%s246 + $0x9e] sm:$0xff]
      %v346 = vld [vmem:[%s246 + $0xa6] sm:$0xff]
      %v347 = vld [vmem:[%s246 + $0xae] sm:$0xff]
      %v348 = vld [vmem:[%s246 + $0xb6] sm:$0xff]
      %v349 = vld [vmem:[%s246 + $0xbe] sm:$0xff]
      %v350 = vld [vmem:[%s246 + $0xc6] sm:$0xff]
      %v351 = vld [vmem:[%s246 + $0xce] sm:$0xff]
      %v352 = vld [vmem:[%s246 + $0xd6] sm:$0xff]
      %v353 = vld [vmem:[%s246 + $0xde] sm:$0xff]
      %v354 = vld [vmem:[%s246 + $0xe6] sm:$0xff]
      %v355 = vld [vmem:[%s246 + $0xee] sm:$0xff]
      %v356 = vld [vmem:[%s246 + $0xf6] sm:$0xff]
      %v357 = vld [vmem:[%s246 + $0xfe] sm:$0xff]
      %v358 = vld [vmem:[%s246 + $0x106] sm:$0xff]
      %v359 = vld [vmem:[%s246 + $0x10e] sm:$0xff]
      %v360 = vld [vmem:[%s246 + $0x116] sm:$0xff]
      %v361 = vld [vmem:[%s246 + $0x11e] sm:$0xff]
      %v362 = vld [vmem:[%s246 + $0x126] sm:$0xff]
      %v363 = vld [vmem:[%s246 + $0xf] sm:$0xff]
      %v364 = vld [vmem:[%s246 + $0x17] sm:$0xff]
      %v365 = vld [vmem:[%s246 + $0x1f] sm:$0xff]
      %v366 = vld [vmem:[%s246 + $0x27] sm:$0xff]
      %v367 = vld [vmem:[%s246 + $0x2f] sm:$0xff]
      %v368 = vld [vmem:[%s246 + $0x37] sm:$0xff]
      %v369 = vld [vmem:[%s246 + $0x3f] sm:$0xff]
      %v370 = vld [vmem:[%s246 + $0x47] sm:$0xff]
      %v371 = vld [vmem:[%s246 + $0x4f] sm:$0xff]
      %v372 = vld [vmem:[%s246 + $0x57] sm:$0xff]
      %v373 = vld [vmem:[%s246 + $0x5f] sm:$0xff]
      %v374 = vld [vmem:[%s246 + $0x67] sm:$0xff]
      %v375 = vld [vmem:[%s246 + $0x6f] sm:$0xff]
      %v376 = vld [vmem:[%s246 + $0x77] sm:$0xff]
      %v377 = vld [vmem:[%s246 + $0x7f] sm:$0xff]
      %v378 = vld [vmem:[%s246 + $0x87] sm:$0xff]
      %v379 = vld [vmem:[%s246 + $0x8f] sm:$0xff]
      %v380 = vld [vmem:[%s246 + $0x97] sm:$0xff]
      %v381 = vld [vmem:[%s246 + $0x9f] sm:$0xff]
      %v382 = vld [vmem:[%s246 + $0xa7] sm:$0xff]
      %v383 = vld [vmem:[%s246 + $0xaf] sm:$0xff]
      %v384 = vld [vmem:[%s246 + $0xb7] sm:$0xff]
      %v385 = vld [vmem:[%s246 + $0xbf] sm:$0xff]
      %v386 = vld [vmem:[%s246 + $0xc7] sm:$0xff]
      %v387 = vld [vmem:[%s246 + $0xcf] sm:$0xff]
      %v388 = vld [vmem:[%s246 + $0xd7] sm:$0xff]
      %v389 = vld [vmem:[%s246 + $0xdf] sm:$0xff]
      %v390 = vld [vmem:[%s246 + $0xe7] sm:$0xff]
      %v391 = vld [vmem:[%s246 + $0xef] sm:$0xff]
      %v392 = vld [vmem:[%s246 + $0xf7] sm:$0xff]
      %v393 = vld [vmem:[%s246 + $0xff] sm:$0xff]
      %v394 = vld [vmem:[%s246 + $0x107] sm:$0xff]
      %v395 = vld [vmem:[%s246 + $0x10f] sm:$0xff]
      %v396 = vld [vmem:[%s246 + $0x117] sm:$0xff]
      %v397 = vld [vmem:[%s246 + $0x11f] sm:$0xff]
      %v398 = vld [vmem:[%s246 + $0x127] sm:$0xff]
      %v399 = vld [vmem:[%s246 + $0x12f] sm:$0xff]
      %v400 = vld [vmem:[%s246 + $0x137] sm:$0xff]
      %v401 = vld [vmem:[%s246 + $0x20] sm:$0xff]
      %v402 = vld [vmem:[%s246 + $0x28] sm:$0xff]
      %v403 = vld [vmem:[%s246 + $0x30] sm:$0xff]
      %v404 = vld [vmem:[%s246 + $0x38] sm:$0xff]
      %v405 = vld [vmem:[%s246 + $0x40] sm:$0xff]
      %v406 = vld [vmem:[%s246 + $0x48] sm:$0xff]
      %v407 = vld [vmem:[%s246 + $0x50] sm:$0xff]
      %v408 = vld [vmem:[%s246 + $0x58] sm:$0xff]
      %v409 = vld [vmem:[%s246 + $0x60] sm:$0xff]
      %v410 = vld [vmem:[%s246 + $0x68] sm:$0xff]
      %v411 = vld [vmem:[%s246 + $0x70] sm:$0xff]
      %v412 = vld [vmem:[%s246 + $0x78] sm:$0xff]
      %v413 = vld [vmem:[%s246 + $0x80] sm:$0xff]
      %v414 = vld [vmem:[%s246 + $0x88] sm:$0xff]
      %v415 = vld [vmem:[%s246 + $0x90] sm:$0xff]
      %v416 = vld [vmem:[%s246 + $0x98] sm:$0xff]
      %v417 = vld [vmem:[%s246 + $0xa0] sm:$0xff]
      %v418 = vld [vmem:[%s246 + $0xa8] sm:$0xff]
      %v419 = vld [vmem:[%s246 + $0xb0] sm:$0xff]
      %v420 = vld [vmem:[%s246 + $0xb8] sm:$0xff]
      %v421 = vld [vmem:[%s246 + $0xc0] sm:$0xff]
      %v422 = vld [vmem:[%s246 + $0xc8] sm:$0xff]
      %v423 = vld [vmem:[%s246 + $0xd0] sm:$0xff]
      %v424 = vld [vmem:[%s246 + $0xd8] sm:$0xff]
      %v425 = vld [vmem:[%s246 + $0xe0] sm:$0xff]
      %v426 = vld [vmem:[%s246 + $0xe8] sm:$0xff]
      %v427 = vld [vmem:[%s246 + $0xf0] sm:$0xff]
      %v428 = vld [vmem:[%s246 + $0xf8] sm:$0xff]
      %v429 = vld [vmem:[%s246 + $0x100] sm:$0xff]
      %v430 = vld [vmem:[%s246 + $0x108] sm:$0xff]
      %v431 = vld [vmem:[%s246 + $0x110] sm:$0xff]
      %v432 = vld [vmem:[%s246 + $0x118] sm:$0xff]
      %v433 = vld [vmem:[%s246 + $0x120] sm:$0xff]
      %v434 = vld [vmem:[%s246 + $0x128] sm:$0xff]
      %v435 = vld [vmem:[%s246 + $0x130] sm:$0xff]
      %v436 = vld [vmem:[%s246 + $0x138] sm:$0xff]
      %v437 = vld [vmem:[%s246 + $0x21] sm:$0xff]
      %v438 = vld [vmem:[%s246 + $0x29] sm:$0xff]
      %v439 = vld [vmem:[%s246 + $0x31] sm:$0xff]
      %v440 = vld [vmem:[%s246 + $0x39] sm:$0xff]
      %v441 = vld [vmem:[%s246 + $0x41] sm:$0xff]
      %v442 = vld [vmem:[%s246 + $0x49] sm:$0xff]
      %v443 = vld [vmem:[%s246 + $0x51] sm:$0xff]
      %v444 = vld [vmem:[%s246 + $0x59] sm:$0xff]
      %v445 = vld [vmem:[%s246 + $0x61] sm:$0xff]
      %v446 = vld [vmem:[%s246 + $0x69] sm:$0xff]
      %v447 = vld [vmem:[%s246 + $0x71] sm:$0xff]
      %v448 = vld [vmem:[%s246 + $0x79] sm:$0xff]
      %v449 = vld [vmem:[%s246 + $0x81] sm:$0xff]
      %v450 = vld [vmem:[%s246 + $0x89] sm:$0xff]
      %v451 = vld [vmem:[%s246 + $0x91] sm:$0xff]
      %v452 = vld [vmem:[%s246 + $0x99] sm:$0xff]
      %v453 = vld [vmem:[%s246 + $0xa1] sm:$0xff]
      %v454 = vld [vmem:[%s246 + $0xa9] sm:$0xff]
      %v455 = vld [vmem:[%s246 + $0xb1] sm:$0xff]
      %v456 = vld [vmem:[%s246 + $0xb9] sm:$0xff]
      %v457 = vld [vmem:[%s246 + $0xc1] sm:$0xff]
      %v458 = vld [vmem:[%s246 + $0xc9] sm:$0xff]
      %v459 = vld [vmem:[%s246 + $0xd1] sm:$0xff]
      %v460 = vld [vmem:[%s246 + $0xd9] sm:$0xff]
      %v461 = vld [vmem:[%s246 + $0xe1] sm:$0xff]
      %v462 = vld [vmem:[%s246 + $0xe9] sm:$0xff]
      %v463 = vld [vmem:[%s246 + $0xf1] sm:$0xff]
      %v464 = vld [vmem:[%s246 + $0xf9] sm:$0xff]
      %v465 = vld [vmem:[%s246 + $0x101] sm:$0xff]
      %v466 = vld [vmem:[%s246 + $0x109] sm:$0xff]
      %v467 = vld [vmem:[%s246 + $0x111] sm:$0xff]
      %v468 = vld [vmem:[%s246 + $0x119] sm:$0xff]
      %v469 = vld [vmem:[%s246 + $0x121] sm:$0xff]
      %v470 = vld [vmem:[%s246 + $0x129] sm:$0xff]
      %v471 = vld [vmem:[%s246 + $0x131] sm:$0xff]
      %v472 = vld [vmem:[%s246 + $0x139] sm:$0xff]
      %v473 = vld [vmem:[%s246 + $0x141] sm:$0xff]
      %v474 = vld [vmem:[%s246 + $0x149] sm:$0xff]
      %v475 = vld [vmem:[%s246 + $0x32] sm:$0xff]
      %v476 = vld [vmem:[%s246 + $0x3a] sm:$0xff]
      %v477 = vld [vmem:[%s246 + $0x42] sm:$0xff]
      %v478 = vld [vmem:[%s246 + $0x4a] sm:$0xff]
      %v479 = vld [vmem:[%s246 + $0x52] sm:$0xff]
      %v480 = vld [vmem:[%s246 + $0x5a] sm:$0xff]
      %v481 = vld [vmem:[%s246 + $0x62] sm:$0xff]
      %v482 = vld [vmem:[%s246 + $0x6a] sm:$0xff]
      %v483 = vld [vmem:[%s246 + $0x72] sm:$0xff]
      %v484 = vld [vmem:[%s246 + $0x7a] sm:$0xff]
      %v485 = vld [vmem:[%s246 + $0x82] sm:$0xff]
      %v486 = vld [vmem:[%s246 + $0x8a] sm:$0xff]
      %v487 = vld [vmem:[%s246 + $0x92] sm:$0xff]
      %v488 = vld [vmem:[%s246 + $0x9a] sm:$0xff]
      %v489 = vld [vmem:[%s246 + $0xa2] sm:$0xff]
      %v490 = vld [vmem:[%s246 + $0xaa] sm:$0xff]
      %v491 = vld [vmem:[%s246 + $0xb2] sm:$0xff]
      %v492 = vld [vmem:[%s246 + $0xba] sm:$0xff]
      %v493 = vld [vmem:[%s246 + $0xc2] sm:$0xff]
      %v494 = vld [vmem:[%s246 + $0xca] sm:$0xff]
      %v495 = vld [vmem:[%s246 + $0xd2] sm:$0xff]
      %v496 = vld [vmem:[%s246 + $0xda] sm:$0xff]
      %v497 = vld [vmem:[%s246 + $0xe2] sm:$0xff]
      %v498 = vld [vmem:[%s246 + $0xea] sm:$0xff]
      %v499 = vld [vmem:[%s246 + $0xf2] sm:$0xff]
      %v500 = vld [vmem:[%s246 + $0xfa] sm:$0xff]
      %v501 = vld [vmem:[%s246 + $0x102] sm:$0xff]
      %v502 = vld [vmem:[%s246 + $0x10a] sm:$0xff]
      %v503 = vld [vmem:[%s246 + $0x112] sm:$0xff]
      %v504 = vld [vmem:[%s246 + $0x11a] sm:$0xff]
      %v505 = vld [vmem:[%s246 + $0x122] sm:$0xff]
      %v506 = vld [vmem:[%s246 + $0x12a] sm:$0xff]
      %v507 = vld [vmem:[%s246 + $0x132] sm:$0xff]
      %v508 = vld [vmem:[%s246 + $0x13a] sm:$0xff]
      %v509 = vld [vmem:[%s246 + $0x142] sm:$0xff]
      %v510 = vld [vmem:[%s246 + $0x14a] sm:$0xff]
      %v511 = vld [vmem:[%s246 + $0x33] sm:$0xff]
      %v512 = vld [vmem:[%s246 + $0x3b] sm:$0xff]
      %v513 = vld [vmem:[%s246 + $0x43] sm:$0xff]
      %v514 = vld [vmem:[%s246 + $0x4b] sm:$0xff]
      %v515 = vld [vmem:[%s246 + $0x53] sm:$0xff]
      %v516 = vld [vmem:[%s246 + $0x5b] sm:$0xff]
      %v517 = vld [vmem:[%s246 + $0x63] sm:$0xff]
      %v518 = vld [vmem:[%s246 + $0x6b] sm:$0xff]
      %v519 = vld [vmem:[%s246 + $0x73] sm:$0xff]
      %v520 = vld [vmem:[%s246 + $0x7b] sm:$0xff]
      %v521 = vld [vmem:[%s246 + $0x83] sm:$0xff]
      %v522 = vld [vmem:[%s246 + $0x8b] sm:$0xff]
      %v523 = vld [vmem:[%s246 + $0x93] sm:$0xff]
      %v524 = vld [vmem:[%s246 + $0x9b] sm:$0xff]
      %v525 = vld [vmem:[%s246 + $0xa3] sm:$0xff]
      %v526 = vld [vmem:[%s246 + $0xab] sm:$0xff]
      %v527 = vld [vmem:[%s246 + $0xb3] sm:$0xff]
      %v528 = vld [vmem:[%s246 + $0xbb] sm:$0xff]
      %v529 = vld [vmem:[%s246 + $0xc3] sm:$0xff]
      %v530 = vld [vmem:[%s246 + $0xcb] sm:$0xff]
      %v531 = vld [vmem:[%s246 + $0xd3] sm:$0xff]
      %v532 = vld [vmem:[%s246 + $0xdb] sm:$0xff]
      %v533 = vld [vmem:[%s246 + $0xe3] sm:$0xff]
      %v534 = vld [vmem:[%s246 + $0xeb] sm:$0xff]
      %v535 = vld [vmem:[%s246 + $0xf3] sm:$0xff]
      %v536 = vld [vmem:[%s246 + $0xfb] sm:$0xff]
      %v537 = vld [vmem:[%s246 + $0x103] sm:$0xff]
      %v538 = vld [vmem:[%s246 + $0x10b] sm:$0xff]
      %v539 = vld [vmem:[%s246 + $0x113] sm:$0xff]
      %v540 = vld [vmem:[%s246 + $0x11b] sm:$0xff]
      %v541 = vld [vmem:[%s246 + $0x123] sm:$0xff]
      %v542 = vld [vmem:[%s246 + $0x12b] sm:$0xff]
      %v543 = vld [vmem:[%s246 + $0x133] sm:$0xff]
      %v544 = vld [vmem:[%s246 + $0x13b] sm:$0xff]
      %v545 = vld [vmem:[%s246 + $0x143] sm:$0xff]
      %v546 = vld [vmem:[%s246 + $0x14b] sm:$0xff]
      %583 = vrot.lane.b32.xlu0 %v327, 8
      %v584 = vpop.permute.xlu0 %583
      %585 = vrot.lane.b32.xlu0 %v328, 8
      %v586 = vpop.permute.xlu0 %585
      %587 = vrot.lane.b32.xlu0 %v329, 8
      %v588 = vpop.permute.xlu0 %587
      %589 = vrot.lane.b32.xlu0 %v330, 8
      %v590 = vpop.permute.xlu0 %589
      %591 = vrot.lane.b32.xlu0 %v331, 8
      %v592 = vpop.permute.xlu0 %591
      %593 = vrot.lane.b32.xlu0 %v332, 8
      %v594 = vpop.permute.xlu0 %593
      %595 = vrot.lane.b32.xlu0 %v333, 8
      %v596 = vpop.permute.xlu0 %595
      %597 = vrot.lane.b32.xlu0 %v334, 8
      %v598 = vpop.permute.xlu0 %597
      %599 = vrot.lane.b32.xlu0 %v335, 8
      %v600 = vpop.permute.xlu0 %599
      %601 = vrot.lane.b32.xlu0 %v336, 8
      %v602 = vpop.permute.xlu0 %601
      %603 = vrot.lane.b32.xlu0 %v337, 8
      %v604 = vpop.permute.xlu0 %603
      %605 = vrot.lane.b32.xlu0 %v338, 8
      %v606 = vpop.permute.xlu0 %605
      %607 = vrot.lane.b32.xlu0 %v339, 8
      %v608 = vpop.permute.xlu0 %607
      %609 = vrot.lane.b32.xlu0 %v340, 8
      %v610 = vpop.permute.xlu0 %609
      %611 = vrot.lane.b32.xlu0 %v341, 8
      %v612 = vpop.permute.xlu0 %611
      %613 = vrot.lane.b32.xlu0 %v342, 8
      %v614 = vpop.permute.xlu0 %613
      %615 = vrot.lane.b32.xlu0 %v343, 8
      %v616 = vpop.permute.xlu0 %615
      %617 = vrot.lane.b32.xlu0 %v344, 8
      %v618 = vpop.permute.xlu0 %617
      %619 = vrot.lane.b32.xlu0 %v345, 8
      %v620 = vpop.permute.xlu0 %619
      %621 = vrot.lane.b32.xlu0 %v346, 8
      %v622 = vpop.permute.xlu0 %621
      %623 = vrot.lane.b32.xlu0 %v347, 8
      %v624 = vpop.permute.xlu0 %623
      %625 = vrot.lane.b32.xlu0 %v348, 8
      %v626 = vpop.permute.xlu0 %625
      %627 = vrot.lane.b32.xlu0 %v349, 8
      %v628 = vpop.permute.xlu0 %627
      %629 = vrot.lane.b32.xlu0 %v350, 8
      %v630 = vpop.permute.xlu0 %629
      %631 = vrot.lane.b32.xlu0 %v351, 8
      %v632 = vpop.permute.xlu0 %631
      %633 = vrot.lane.b32.xlu0 %v352, 8
      %v634 = vpop.permute.xlu0 %633
      %635 = vrot.lane.b32.xlu0 %v353, 8
      %v636 = vpop.permute.xlu0 %635
      %637 = vrot.lane.b32.xlu0 %v354, 8
      %v638 = vpop.permute.xlu0 %637
      %639 = vrot.lane.b32.xlu0 %v355, 8
      %v640 = vpop.permute.xlu0 %639
      %641 = vrot.lane.b32.xlu0 %v356, 8
      %v642 = vpop.permute.xlu0 %641
      %643 = vrot.lane.b32.xlu0 %v357, 8
      %v644 = vpop.permute.xlu0 %643
      %645 = vrot.lane.b32.xlu0 %v358, 8
      %v646 = vpop.permute.xlu0 %645
      %647 = vrot.lane.b32.xlu0 %v359, 8
      %v648 = vpop.permute.xlu0 %647
      %649 = vrot.lane.b32.xlu0 %v360, 8
      %v650 = vpop.permute.xlu0 %649
      %651 = vrot.lane.b32.xlu0 %v361, 8
      %v652 = vpop.permute.xlu0 %651
      %653 = vrot.lane.b32.xlu0 %v362, 8
      %v654 = vpop.permute.xlu0 %653
      %727 = vrot.lane.b32.xlu0 %v363, 16
      %v728 = vpop.permute.xlu0 %727
      %729 = vrot.lane.b32.xlu0 %v364, 16
      %v730 = vpop.permute.xlu0 %729
      %731 = vrot.lane.b32.xlu0 %v365, 16
      %v732 = vpop.permute.xlu0 %731
      %733 = vrot.lane.b32.xlu0 %v366, 16
      %v734 = vpop.permute.xlu0 %733
      %735 = vrot.lane.b32.xlu0 %v367, 16
      %v736 = vpop.permute.xlu0 %735
      %737 = vrot.lane.b32.xlu0 %v368, 16
      %v738 = vpop.permute.xlu0 %737
      %739 = vrot.lane.b32.xlu0 %v369, 16
      %v740 = vpop.permute.xlu0 %739
      %741 = vrot.lane.b32.xlu0 %v370, 16
      %v742 = vpop.permute.xlu0 %741
      %743 = vrot.lane.b32.xlu0 %v371, 16
      %v744 = vpop.permute.xlu0 %743
      %745 = vrot.lane.b32.xlu0 %v372, 16
      %v746 = vpop.permute.xlu0 %745
      %747 = vrot.lane.b32.xlu0 %v373, 16
      %v748 = vpop.permute.xlu0 %747
      %749 = vrot.lane.b32.xlu0 %v374, 16
      %v750 = vpop.permute.xlu0 %749
      %751 = vrot.lane.b32.xlu0 %v375, 16
      %v752 = vpop.permute.xlu0 %751
      %753 = vrot.lane.b32.xlu0 %v376, 16
      %v754 = vpop.permute.xlu0 %753
      %755 = vrot.lane.b32.xlu0 %v377, 16
      %v756 = vpop.permute.xlu0 %755
      %757 = vrot.lane.b32.xlu0 %v378, 16
      %v758 = vpop.permute.xlu0 %757
      %759 = vrot.lane.b32.xlu0 %v379, 16
      %v760 = vpop.permute.xlu0 %759
      %761 = vrot.lane.b32.xlu0 %v380, 16
      %v762 = vpop.permute.xlu0 %761
      %763 = vrot.lane.b32.xlu0 %v381, 16
      %v764 = vpop.permute.xlu0 %763
      %765 = vrot.lane.b32.xlu0 %v382, 16
      %v766 = vpop.permute.xlu0 %765
      %767 = vrot.lane.b32.xlu0 %v383, 16
      %v768 = vpop.permute.xlu0 %767
      %769 = vrot.lane.b32.xlu0 %v384, 16
      %v770 = vpop.permute.xlu0 %769
      %771 = vrot.lane.b32.xlu0 %v385, 16
      %v772 = vpop.permute.xlu0 %771
      %773 = vrot.lane.b32.xlu0 %v386, 16
      %v774 = vpop.permute.xlu0 %773
      %775 = vrot.lane.b32.xlu0 %v387, 16
      %v776 = vpop.permute.xlu0 %775
      %777 = vrot.lane.b32.xlu0 %v388, 16
      %v778 = vpop.permute.xlu0 %777
      %779 = vrot.lane.b32.xlu0 %v389, 16
      %v780 = vpop.permute.xlu0 %779
      %781 = vrot.lane.b32.xlu0 %v390, 16
      %v782 = vpop.permute.xlu0 %781
      %783 = vrot.lane.b32.xlu0 %v391, 16
      %v784 = vpop.permute.xlu0 %783
      %785 = vrot.lane.b32.xlu0 %v392, 16
      %v786 = vpop.permute.xlu0 %785
      %787 = vrot.lane.b32.xlu0 %v393, 16
      %v788 = vpop.permute.xlu0 %787
      %789 = vrot.lane.b32.xlu0 %v394, 16
      %v790 = vpop.permute.xlu0 %789
      %791 = vrot.lane.b32.xlu0 %v395, 16
      %v792 = vpop.permute.xlu0 %791
      %793 = vrot.lane.b32.xlu0 %v396, 16
      %v794 = vpop.permute.xlu0 %793
      %795 = vrot.lane.b32.xlu0 %v397, 16
      %v796 = vpop.permute.xlu0 %795
      %797 = vrot.lane.b32.xlu0 %v398, 16
      %v798 = vpop.permute.xlu0 %797
      %837 = vrot.lane.b32.xlu0 %v365, 24
      %v838 = vpop.permute.xlu0 %837
      %839 = vrot.lane.b32.xlu0 %v366, 24
      %v840 = vpop.permute.xlu0 %839
      %841 = vrot.lane.b32.xlu0 %v367, 24
      %v842 = vpop.permute.xlu0 %841
      %843 = vrot.lane.b32.xlu0 %v368, 24
      %v844 = vpop.permute.xlu0 %843
      %845 = vrot.lane.b32.xlu0 %v369, 24
      %v846 = vpop.permute.xlu0 %845
      %847 = vrot.lane.b32.xlu0 %v370, 24
      %v848 = vpop.permute.xlu0 %847
      %849 = vrot.lane.b32.xlu0 %v371, 24
      %v850 = vpop.permute.xlu0 %849
      %851 = vrot.lane.b32.xlu0 %v372, 24
      %v852 = vpop.permute.xlu0 %851
      %853 = vrot.lane.b32.xlu0 %v373, 24
      %v854 = vpop.permute.xlu0 %853
      %855 = vrot.lane.b32.xlu0 %v374, 24
      %v856 = vpop.permute.xlu0 %855
      %857 = vrot.lane.b32.xlu0 %v375, 24
      %v858 = vpop.permute.xlu0 %857
      %859 = vrot.lane.b32.xlu0 %v376, 24
      %v860 = vpop.permute.xlu0 %859
      %861 = vrot.lane.b32.xlu0 %v377, 24
      %v862 = vpop.permute.xlu0 %861
      %863 = vrot.lane.b32.xlu0 %v378, 24
      %v864 = vpop.permute.xlu0 %863
      %865 = vrot.lane.b32.xlu0 %v379, 24
      %v866 = vpop.permute.xlu0 %865
      %867 = vrot.lane.b32.xlu0 %v380, 24
      %v868 = vpop.permute.xlu0 %867
      %869 = vrot.lane.b32.xlu0 %v381, 24
      %v870 = vpop.permute.xlu0 %869
      %871 = vrot.lane.b32.xlu0 %v382, 24
      %v872 = vpop.permute.xlu0 %871
      %873 = vrot.lane.b32.xlu0 %v383, 24
      %v874 = vpop.permute.xlu0 %873
      %875 = vrot.lane.b32.xlu0 %v384, 24
      %v876 = vpop.permute.xlu0 %875
      %877 = vrot.lane.b32.xlu0 %v385, 24
      %v878 = vpop.permute.xlu0 %877
      %879 = vrot.lane.b32.xlu0 %v386, 24
      %v880 = vpop.permute.xlu0 %879
      %881 = vrot.lane.b32.xlu0 %v387, 24
      %v882 = vpop.permute.xlu0 %881
      %883 = vrot.lane.b32.xlu0 %v388, 24
      %v884 = vpop.permute.xlu0 %883
      %885 = vrot.lane.b32.xlu0 %v389, 24
      %v886 = vpop.permute.xlu0 %885
      %887 = vrot.lane.b32.xlu0 %v390, 24
      %v888 = vpop.permute.xlu0 %887
      %889 = vrot.lane.b32.xlu0 %v391, 24
      %v890 = vpop.permute.xlu0 %889
      %891 = vrot.lane.b32.xlu0 %v392, 24
      %v892 = vpop.permute.xlu0 %891
      %893 = vrot.lane.b32.xlu0 %v393, 24
      %v894 = vpop.permute.xlu0 %893
      %895 = vrot.lane.b32.xlu0 %v394, 24
      %v896 = vpop.permute.xlu0 %895
      %897 = vrot.lane.b32.xlu0 %v395, 24
      %v898 = vpop.permute.xlu0 %897
      %899 = vrot.lane.b32.xlu0 %v396, 24
      %v900 = vpop.permute.xlu0 %899
      %901 = vrot.lane.b32.xlu0 %v397, 24
      %v902 = vpop.permute.xlu0 %901
      %903 = vrot.lane.b32.xlu0 %v398, 24
      %v904 = vpop.permute.xlu0 %903
      %905 = vrot.lane.b32.xlu0 %v399, 24
      %v906 = vpop.permute.xlu0 %905
      %907 = vrot.lane.b32.xlu0 %v400, 24
      %v908 = vpop.permute.xlu0 %907
      %981 = vrot.lane.b32.xlu0 %v401, 32
      %v982 = vpop.permute.xlu0 %981
      %983 = vrot.lane.b32.xlu0 %v402, 32
      %v984 = vpop.permute.xlu0 %983
      %985 = vrot.lane.b32.xlu0 %v403, 32
      %v986 = vpop.permute.xlu0 %985
      %987 = vrot.lane.b32.xlu0 %v404, 32
      %v988 = vpop.permute.xlu0 %987
      %989 = vrot.lane.b32.xlu0 %v405, 32
      %v990 = vpop.permute.xlu0 %989
      %991 = vrot.lane.b32.xlu0 %v406, 32
      %v992 = vpop.permute.xlu0 %991
      %993 = vrot.lane.b32.xlu0 %v407, 32
      %v994 = vpop.permute.xlu0 %993
      %995 = vrot.lane.b32.xlu0 %v408, 32
      %v996 = vpop.permute.xlu0 %995
      %997 = vrot.lane.b32.xlu0 %v409, 32
      %v998 = vpop.permute.xlu0 %997
      %999 = vrot.lane.b32.xlu0 %v410, 32
      %v1000 = vpop.permute.xlu0 %999
      %1001 = vrot.lane.b32.xlu0 %v411, 32
      %v1002 = vpop.permute.xlu0 %1001
      %1003 = vrot.lane.b32.xlu0 %v412, 32
      %v1004 = vpop.permute.xlu0 %1003
      %1005 = vrot.lane.b32.xlu0 %v413, 32
      %v1006 = vpop.permute.xlu0 %1005
      %1007 = vrot.lane.b32.xlu0 %v414, 32
      %v1008 = vpop.permute.xlu0 %1007
      %1009 = vrot.lane.b32.xlu0 %v415, 32
      %v1010 = vpop.permute.xlu0 %1009
      %1011 = vrot.lane.b32.xlu0 %v416, 32
      %v1012 = vpop.permute.xlu0 %1011
      %1013 = vrot.lane.b32.xlu0 %v417, 32
      %v1014 = vpop.permute.xlu0 %1013
      %1015 = vrot.lane.b32.xlu0 %v418, 32
      %v1016 = vpop.permute.xlu0 %1015
      %1017 = vrot.lane.b32.xlu0 %v419, 32
      %v1018 = vpop.permute.xlu0 %1017
      %1019 = vrot.lane.b32.xlu0 %v420, 32
      %v1020 = vpop.permute.xlu0 %1019
      %1021 = vrot.lane.b32.xlu0 %v421, 32
      %v1022 = vpop.permute.xlu0 %1021
      %1023 = vrot.lane.b32.xlu0 %v422, 32
      %v1024 = vpop.permute.xlu0 %1023
      %1025 = vrot.lane.b32.xlu0 %v423, 32
      %v1026 = vpop.permute.xlu0 %1025
      %1027 = vrot.lane.b32.xlu0 %v424, 32
      %v1028 = vpop.permute.xlu0 %1027
      %1029 = vrot.lane.b32.xlu0 %v425, 32
      %v1030 = vpop.permute.xlu0 %1029
      %1031 = vrot.lane.b32.xlu0 %v426, 32
      %v1032 = vpop.permute.xlu0 %1031
      %1033 = vrot.lane.b32.xlu0 %v427, 32
      %v1034 = vpop.permute.xlu0 %1033
      %1035 = vrot.lane.b32.xlu0 %v428, 32
      %v1036 = vpop.permute.xlu0 %1035
      %1037 = vrot.lane.b32.xlu0 %v429, 32
      %v1038 = vpop.permute.xlu0 %1037
      %1039 = vrot.lane.b32.xlu0 %v430, 32
      %v1040 = vpop.permute.xlu0 %1039
      %1041 = vrot.lane.b32.xlu0 %v431, 32
      %v1042 = vpop.permute.xlu0 %1041
      %1043 = vrot.lane.b32.xlu0 %v432, 32
      %v1044 = vpop.permute.xlu0 %1043
      %1045 = vrot.lane.b32.xlu0 %v433, 32
      %v1046 = vpop.permute.xlu0 %1045
      %1047 = vrot.lane.b32.xlu0 %v434, 32
      %v1048 = vpop.permute.xlu0 %1047
      %1049 = vrot.lane.b32.xlu0 %v435, 32
      %v1050 = vpop.permute.xlu0 %1049
      %1051 = vrot.lane.b32.xlu0 %v436, 32
      %v1052 = vpop.permute.xlu0 %1051
      %1125 = vrot.lane.b32.xlu0 %v437, 40
      %v1126 = vpop.permute.xlu0 %1125
      %1127 = vrot.lane.b32.xlu0 %v438, 40
      %v1128 = vpop.permute.xlu0 %1127
      %1129 = vrot.lane.b32.xlu0 %v439, 40
      %v1130 = vpop.permute.xlu0 %1129
      %1131 = vrot.lane.b32.xlu0 %v440, 40
      %v1132 = vpop.permute.xlu0 %1131
      %1133 = vrot.lane.b32.xlu0 %v441, 40
      %v1134 = vpop.permute.xlu0 %1133
      %1135 = vrot.lane.b32.xlu0 %v442, 40
      %v1136 = vpop.permute.xlu0 %1135
      %1137 = vrot.lane.b32.xlu0 %v443, 40
      %v1138 = vpop.permute.xlu0 %1137
      %1139 = vrot.lane.b32.xlu0 %v444, 40
      %v1140 = vpop.permute.xlu0 %1139
      %1141 = vrot.lane.b32.xlu0 %v445, 40
      %v1142 = vpop.permute.xlu0 %1141
      %1143 = vrot.lane.b32.xlu0 %v446, 40
      %v1144 = vpop.permute.xlu0 %1143
      %1145 = vrot.lane.b32.xlu0 %v447, 40
      %v1146 = vpop.permute.xlu0 %1145
      %1147 = vrot.lane.b32.xlu0 %v448, 40
      %v1148 = vpop.permute.xlu0 %1147
      %1149 = vrot.lane.b32.xlu0 %v449, 40
      %v1150 = vpop.permute.xlu0 %1149
      %1151 = vrot.lane.b32.xlu0 %v450, 40
      %v1152 = vpop.permute.xlu0 %1151
      %1153 = vrot.lane.b32.xlu0 %v451, 40
      %v1154 = vpop.permute.xlu0 %1153
      %1155 = vrot.lane.b32.xlu0 %v452, 40
      %v1156 = vpop.permute.xlu0 %1155
      %1157 = vrot.lane.b32.xlu0 %v453, 40
      %v1158 = vpop.permute.xlu0 %1157
      %1159 = vrot.lane.b32.xlu0 %v454, 40
      %v1160 = vpop.permute.xlu0 %1159
      %1161 = vrot.lane.b32.xlu0 %v455, 40
      %v1162 = vpop.permute.xlu0 %1161
      %1163 = vrot.lane.b32.xlu0 %v456, 40
      %v1164 = vpop.permute.xlu0 %1163
      %1165 = vrot.lane.b32.xlu0 %v457, 40
      %v1166 = vpop.permute.xlu0 %1165
      %1167 = vrot.lane.b32.xlu0 %v458, 40
      %v1168 = vpop.permute.xlu0 %1167
      %1169 = vrot.lane.b32.xlu0 %v459, 40
      %v1170 = vpop.permute.xlu0 %1169
      %1171 = vrot.lane.b32.xlu0 %v460, 40
      %v1172 = vpop.permute.xlu0 %1171
      %1173 = vrot.lane.b32.xlu0 %v461, 40
      %v1174 = vpop.permute.xlu0 %1173
      %1175 = vrot.lane.b32.xlu0 %v462, 40
      %v1176 = vpop.permute.xlu0 %1175
      %1177 = vrot.lane.b32.xlu0 %v463, 40
      %v1178 = vpop.permute.xlu0 %1177
      %1179 = vrot.lane.b32.xlu0 %v464, 40
      %v1180 = vpop.permute.xlu0 %1179
      %1181 = vrot.lane.b32.xlu0 %v465, 40
      %v1182 = vpop.permute.xlu0 %1181
      %1183 = vrot.lane.b32.xlu0 %v466, 40
      %v1184 = vpop.permute.xlu0 %1183
      %1185 = vrot.lane.b32.xlu0 %v467, 40
      %v1186 = vpop.permute.xlu0 %1185
      %1187 = vrot.lane.b32.xlu0 %v468, 40
      %v1188 = vpop.permute.xlu0 %1187
      %1189 = vrot.lane.b32.xlu0 %v469, 40
      %v1190 = vpop.permute.xlu0 %1189
      %1191 = vrot.lane.b32.xlu0 %v470, 40
      %v1192 = vpop.permute.xlu0 %1191
      %1193 = vrot.lane.b32.xlu0 %v471, 40
      %v1194 = vpop.permute.xlu0 %1193
      %1195 = vrot.lane.b32.xlu0 %v472, 40
      %v1196 = vpop.permute.xlu0 %1195
      %1235 = vrot.lane.b32.xlu0 %v439, 48
      %v1236 = vpop.permute.xlu0 %1235
      %1237 = vrot.lane.b32.xlu0 %v440, 48
      %v1238 = vpop.permute.xlu0 %1237
      %1239 = vrot.lane.b32.xlu0 %v441, 48
      %v1240 = vpop.permute.xlu0 %1239
      %1241 = vrot.lane.b32.xlu0 %v442, 48
      %v1242 = vpop.permute.xlu0 %1241
      %1243 = vrot.lane.b32.xlu0 %v443, 48
      %v1244 = vpop.permute.xlu0 %1243
      %1245 = vrot.lane.b32.xlu0 %v444, 48
      %v1246 = vpop.permute.xlu0 %1245
      %1247 = vrot.lane.b32.xlu0 %v445, 48
      %v1248 = vpop.permute.xlu0 %1247
      %1249 = vrot.lane.b32.xlu0 %v446, 48
      %v1250 = vpop.permute.xlu0 %1249
      %1251 = vrot.lane.b32.xlu0 %v447, 48
      %v1252 = vpop.permute.xlu0 %1251
      %1253 = vrot.lane.b32.xlu0 %v448, 48
      %v1254 = vpop.permute.xlu0 %1253
      %1255 = vrot.lane.b32.xlu0 %v449, 48
      %v1256 = vpop.permute.xlu0 %1255
      %1257 = vrot.lane.b32.xlu0 %v450, 48
      %v1258 = vpop.permute.xlu0 %1257
      %1259 = vrot.lane.b32.xlu0 %v451, 48
      %v1260 = vpop.permute.xlu0 %1259
      %1261 = vrot.lane.b32.xlu0 %v452, 48
      %v1262 = vpop.permute.xlu0 %1261
      %1263 = vrot.lane.b32.xlu0 %v453, 48
      %v1264 = vpop.permute.xlu0 %1263
      %1265 = vrot.lane.b32.xlu0 %v454, 48
      %v1266 = vpop.permute.xlu0 %1265
      %1267 = vrot.lane.b32.xlu0 %v455, 48
      %v1268 = vpop.permute.xlu0 %1267
      %1269 = vrot.lane.b32.xlu0 %v456, 48
      %v1270 = vpop.permute.xlu0 %1269
      %1271 = vrot.lane.b32.xlu0 %v457, 48
      %v1272 = vpop.permute.xlu0 %1271
      %1273 = vrot.lane.b32.xlu0 %v458, 48
      %v1274 = vpop.permute.xlu0 %1273
      %1275 = vrot.lane.b32.xlu0 %v459, 48
      %v1276 = vpop.permute.xlu0 %1275
      %1277 = vrot.lane.b32.xlu0 %v460, 48
      %v1278 = vpop.permute.xlu0 %1277
      %1279 = vrot.lane.b32.xlu0 %v461, 48
      %v1280 = vpop.permute.xlu0 %1279
      %1281 = vrot.lane.b32.xlu0 %v462, 48
      %v1282 = vpop.permute.xlu0 %1281
      %1283 = vrot.lane.b32.xlu0 %v463, 48
      %v1284 = vpop.permute.xlu0 %1283
      %1285 = vrot.lane.b32.xlu0 %v464, 48
      %v1286 = vpop.permute.xlu0 %1285
      %1287 = vrot.lane.b32.xlu0 %v465, 48
      %v1288 = vpop.permute.xlu0 %1287
      %1289 = vrot.lane.b32.xlu0 %v466, 48
      %v1290 = vpop.permute.xlu0 %1289
      %1291 = vrot.lane.b32.xlu0 %v467, 48
      %v1292 = vpop.permute.xlu0 %1291
      %1293 = vrot.lane.b32.xlu0 %v468, 48
      %v1294 = vpop.permute.xlu0 %1293
      %1295 = vrot.lane.b32.xlu0 %v469, 48
      %v1296 = vpop.permute.xlu0 %1295
      %1297 = vrot.lane.b32.xlu0 %v470, 48
      %v1298 = vpop.permute.xlu0 %1297
      %1299 = vrot.lane.b32.xlu0 %v471, 48
      %v1300 = vpop.permute.xlu0 %1299
      %1301 = vrot.lane.b32.xlu0 %v472, 48
      %v1302 = vpop.permute.xlu0 %1301
      %1303 = vrot.lane.b32.xlu0 %v473, 48
      %v1304 = vpop.permute.xlu0 %1303
      %1305 = vrot.lane.b32.xlu0 %v474, 48
      %v1306 = vpop.permute.xlu0 %1305
      %1379 = vrot.lane.b32.xlu0 %v475, 56
      %v1380 = vpop.permute.xlu0 %1379
      %1381 = vrot.lane.b32.xlu0 %v476, 56
      %v1382 = vpop.permute.xlu0 %1381
      %1383 = vrot.lane.b32.xlu0 %v477, 56
      %v1384 = vpop.permute.xlu0 %1383
      %1385 = vrot.lane.b32.xlu0 %v478, 56
      %v1386 = vpop.permute.xlu0 %1385
      %1387 = vrot.lane.b32.xlu0 %v479, 56
      %v1388 = vpop.permute.xlu0 %1387
      %1389 = vrot.lane.b32.xlu0 %v480, 56
      %v1390 = vpop.permute.xlu0 %1389
      %1391 = vrot.lane.b32.xlu0 %v481, 56
      %v1392 = vpop.permute.xlu0 %1391
      %1393 = vrot.lane.b32.xlu0 %v482, 56
      %v1394 = vpop.permute.xlu0 %1393
      %1395 = vrot.lane.b32.xlu0 %v483, 56
      %v1396 = vpop.permute.xlu0 %1395
      %1397 = vrot.lane.b32.xlu0 %v484, 56
      %v1398 = vpop.permute.xlu0 %1397
      %1399 = vrot.lane.b32.xlu0 %v485, 56
      %v1400 = vpop.permute.xlu0 %1399
      %1401 = vrot.lane.b32.xlu0 %v486, 56
      %v1402 = vpop.permute.xlu0 %1401
      %1403 = vrot.lane.b32.xlu0 %v487, 56
      %v1404 = vpop.permute.xlu0 %1403
      %1405 = vrot.lane.b32.xlu0 %v488, 56
      %v1406 = vpop.permute.xlu0 %1405
      %1407 = vrot.lane.b32.xlu0 %v489, 56
      %v1408 = vpop.permute.xlu0 %1407
      %1409 = vrot.lane.b32.xlu0 %v490, 56
      %v1410 = vpop.permute.xlu0 %1409
      %1411 = vrot.lane.b32.xlu0 %v491, 56
      %v1412 = vpop.permute.xlu0 %1411
      %1413 = vrot.lane.b32.xlu0 %v492, 56
      %v1414 = vpop.permute.xlu0 %1413
      %1415 = vrot.lane.b32.xlu0 %v493, 56
      %v1416 = vpop.permute.xlu0 %1415
      %1417 = vrot.lane.b32.xlu0 %v494, 56
      %v1418 = vpop.permute.xlu0 %1417
      %1419 = vrot.lane.b32.xlu0 %v495, 56
      %v1420 = vpop.permute.xlu0 %1419
      %1421 = vrot.lane.b32.xlu0 %v496, 56
      %v1422 = vpop.permute.xlu0 %1421
      %1423 = vrot.lane.b32.xlu0 %v497, 56
      %v1424 = vpop.permute.xlu0 %1423
      %1425 = vrot.lane.b32.xlu0 %v498, 56
      %v1426 = vpop.permute.xlu0 %1425
      %1427 = vrot.lane.b32.xlu0 %v499, 56
      %v1428 = vpop.permute.xlu0 %1427
      %1429 = vrot.lane.b32.xlu0 %v500, 56
      %v1430 = vpop.permute.xlu0 %1429
      %1431 = vrot.lane.b32.xlu0 %v501, 56
      %v1432 = vpop.permute.xlu0 %1431
      %1433 = vrot.lane.b32.xlu0 %v502, 56
      %v1434 = vpop.permute.xlu0 %1433
      %1435 = vrot.lane.b32.xlu0 %v503, 56
      %v1436 = vpop.permute.xlu0 %1435
      %1437 = vrot.lane.b32.xlu0 %v504, 56
      %v1438 = vpop.permute.xlu0 %1437
      %1439 = vrot.lane.b32.xlu0 %v505, 56
      %v1440 = vpop.permute.xlu0 %1439
      %1441 = vrot.lane.b32.xlu0 %v506, 56
      %v1442 = vpop.permute.xlu0 %1441
      %1443 = vrot.lane.b32.xlu0 %v507, 56
      %v1444 = vpop.permute.xlu0 %1443
      %1445 = vrot.lane.b32.xlu0 %v508, 56
      %v1446 = vpop.permute.xlu0 %1445
      %1447 = vrot.lane.b32.xlu0 %v509, 56
      %v1448 = vpop.permute.xlu0 %1447
      %1449 = vrot.lane.b32.xlu0 %v510, 56
      %v1450 = vpop.permute.xlu0 %1449
      %1523 = vrot.lane.b32.xlu0 %v511, 64
      %v1524 = vpop.permute.xlu0 %1523
      %1525 = vrot.lane.b32.xlu0 %v512, 64
      %v1526 = vpop.permute.xlu0 %1525
      %1527 = vrot.lane.b32.xlu0 %v513, 64
      %v1528 = vpop.permute.xlu0 %1527
      %1529 = vrot.lane.b32.xlu0 %v514, 64
      %v1530 = vpop.permute.xlu0 %1529
      %1531 = vrot.lane.b32.xlu0 %v515, 64
      %v1532 = vpop.permute.xlu0 %1531
      %1533 = vrot.lane.b32.xlu0 %v516, 64
      %v1534 = vpop.permute.xlu0 %1533
      %1535 = vrot.lane.b32.xlu0 %v517, 64
      %v1536 = vpop.permute.xlu0 %1535
      %1537 = vrot.lane.b32.xlu0 %v518, 64
      %v1538 = vpop.permute.xlu0 %1537
      %1539 = vrot.lane.b32.xlu0 %v519, 64
      %v1540 = vpop.permute.xlu0 %1539
      %1541 = vrot.lane.b32.xlu0 %v520, 64
      %v1542 = vpop.permute.xlu0 %1541
      %1543 = vrot.lane.b32.xlu0 %v521, 64
      %v1544 = vpop.permute.xlu0 %1543
      %1545 = vrot.lane.b32.xlu0 %v522, 64
      %v1546 = vpop.permute.xlu0 %1545
      %1547 = vrot.lane.b32.xlu0 %v523, 64
      %v1548 = vpop.permute.xlu0 %1547
      %1549 = vrot.lane.b32.xlu0 %v524, 64
      %v1550 = vpop.permute.xlu0 %1549
      %1551 = vrot.lane.b32.xlu0 %v525, 64
      %v1552 = vpop.permute.xlu0 %1551
      %1553 = vrot.lane.b32.xlu0 %v526, 64
      %v1554 = vpop.permute.xlu0 %1553
      %1555 = vrot.lane.b32.xlu0 %v527, 64
      %v1556 = vpop.permute.xlu0 %1555
      %1557 = vrot.lane.b32.xlu0 %v528, 64
      %v1558 = vpop.permute.xlu0 %1557
      %1559 = vrot.lane.b32.xlu0 %v529, 64
      %v1560 = vpop.permute.xlu0 %1559
      %1561 = vrot.lane.b32.xlu0 %v530, 64
      %v1562 = vpop.permute.xlu0 %1561
      %1563 = vrot.lane.b32.xlu0 %v531, 64
      %v1564 = vpop.permute.xlu0 %1563
      %1565 = vrot.lane.b32.xlu0 %v532, 64
      %v1566 = vpop.permute.xlu0 %1565
      %1567 = vrot.lane.b32.xlu0 %v533, 64
      %v1568 = vpop.permute.xlu0 %1567
      %1569 = vrot.lane.b32.xlu0 %v534, 64
      %v1570 = vpop.permute.xlu0 %1569
      %1571 = vrot.lane.b32.xlu0 %v535, 64
      %v1572 = vpop.permute.xlu0 %1571
      %1573 = vrot.lane.b32.xlu0 %v536, 64
      %v1574 = vpop.permute.xlu0 %1573
      %1575 = vrot.lane.b32.xlu0 %v537, 64
      %v1576 = vpop.permute.xlu0 %1575
      %1577 = vrot.lane.b32.xlu0 %v538, 64
      %v1578 = vpop.permute.xlu0 %1577
      %1579 = vrot.lane.b32.xlu0 %v539, 64
      %v1580 = vpop.permute.xlu0 %1579
      %1581 = vrot.lane.b32.xlu0 %v540, 64
      %v1582 = vpop.permute.xlu0 %1581
      %1583 = vrot.lane.b32.xlu0 %v541, 64
      %v1584 = vpop.permute.xlu0 %1583
      %1585 = vrot.lane.b32.xlu0 %v542, 64
      %v1586 = vpop.permute.xlu0 %1585
      %1587 = vrot.lane.b32.xlu0 %v543, 64
      %v1588 = vpop.permute.xlu0 %1587
      %1589 = vrot.lane.b32.xlu0 %v544, 64
      %v1590 = vpop.permute.xlu0 %1589
      %1591 = vrot.lane.b32.xlu0 %v545, 64
      %v1592 = vpop.permute.xlu0 %1591
      %1593 = vrot.lane.b32.xlu0 %v546, 64
      %v1594 = vpop.permute.xlu0 %1593
      %vm1631 = vcmask 64512
      %v1632 = vsel %vm1631, %v291, %v584
      %v1633 = vsel %vm1631, %v292, %v586
      %v1634 = vsel %vm1631, %v293, %v588
      %v1635 = vsel %vm1631, %v294, %v590
      %v1636 = vsel %vm1631, %v295, %v592
      %v1637 = vsel %vm1631, %v296, %v594
      %v1638 = vsel %vm1631, %v297, %v596
      %v1639 = vsel %vm1631, %v298, %v598
      %v1640 = vsel %vm1631, %v299, %v600
      %v1641 = vsel %vm1631, %v300, %v602
      %v1642 = vsel %vm1631, %v301, %v604
      %v1643 = vsel %vm1631, %v302, %v606
      %v1644 = vsel %vm1631, %v303, %v608
      %v1645 = vsel %vm1631, %v304, %v610
      %v1646 = vsel %vm1631, %v305, %v612
      %v1647 = vsel %vm1631, %v306, %v614
      %v1648 = vsel %vm1631, %v307, %v616
      %v1649 = vsel %vm1631, %v308, %v618
      %v1650 = vsel %vm1631, %v309, %v620
      %v1651 = vsel %vm1631, %v310, %v622
      %v1652 = vsel %vm1631, %v311, %v624
      %v1653 = vsel %vm1631, %v312, %v626
      %v1654 = vsel %vm1631, %v313, %v628
      %v1655 = vsel %vm1631, %v314, %v630
      %v1656 = vsel %vm1631, %v315, %v632
      %v1657 = vsel %vm1631, %v316, %v634
      %v1658 = vsel %vm1631, %v317, %v636
      %v1659 = vsel %vm1631, %v318, %v638
      %v1660 = vsel %vm1631, %v319, %v640
      %v1661 = vsel %vm1631, %v320, %v642
      %v1662 = vsel %vm1631, %v321, %v644
      %v1663 = vsel %vm1631, %v322, %v646
      %v1664 = vsel %vm1631, %v323, %v648
      %v1665 = vsel %vm1631, %v324, %v650
      %v1666 = vsel %vm1631, %v325, %v652
      %v1667 = vsel %vm1631, %v326, %v654
      %vm1668 = vcmask 130048
      %v1669 = vsel %vm1668, %v1632, %v728
      %v1670 = vsel %vm1668, %v1633, %v730
      %v1671 = vsel %vm1668, %v1634, %v732
      %v1672 = vsel %vm1668, %v1635, %v734
      %v1673 = vsel %vm1668, %v1636, %v736
      %v1674 = vsel %vm1668, %v1637, %v738
      %v1675 = vsel %vm1668, %v1638, %v740
      %v1676 = vsel %vm1668, %v1639, %v742
      %v1677 = vsel %vm1668, %v1640, %v744
      %v1678 = vsel %vm1668, %v1641, %v746
      %v1679 = vsel %vm1668, %v1642, %v748
      %v1680 = vsel %vm1668, %v1643, %v750
      %v1681 = vsel %vm1668, %v1644, %v752
      %v1682 = vsel %vm1668, %v1645, %v754
      %v1683 = vsel %vm1668, %v1646, %v756
      %v1684 = vsel %vm1668, %v1647, %v758
      %v1685 = vsel %vm1668, %v1648, %v760
      %v1686 = vsel %vm1668, %v1649, %v762
      %v1687 = vsel %vm1668, %v1650, %v764
      %v1688 = vsel %vm1668, %v1651, %v766
      %v1689 = vsel %vm1668, %v1652, %v768
      %v1690 = vsel %vm1668, %v1653, %v770
      %v1691 = vsel %vm1668, %v1654, %v772
      %v1692 = vsel %vm1668, %v1655, %v774
      %v1693 = vsel %vm1668, %v1656, %v776
      %v1694 = vsel %vm1668, %v1657, %v778
      %v1695 = vsel %vm1668, %v1658, %v780
      %v1696 = vsel %vm1668, %v1659, %v782
      %v1697 = vsel %vm1668, %v1660, %v784
      %v1698 = vsel %vm1668, %v1661, %v786
      %v1699 = vsel %vm1668, %v1662, %v788
      %v1700 = vsel %vm1668, %v1663, %v790
      %v1701 = vsel %vm1668, %v1664, %v792
      %v1702 = vsel %vm1668, %v1665, %v794
      %v1703 = vsel %vm1668, %v1666, %v796
      %v1704 = vsel %vm1668, %v1667, %v798
      %vm1705 = vcmask 195584
      %v1706 = vsel %vm1705, %v1669, %v838
      %v1707 = vsel %vm1705, %v1670, %v840
      %v1708 = vsel %vm1705, %v1671, %v842
      %v1709 = vsel %vm1705, %v1672, %v844
      %v1710 = vsel %vm1705, %v1673, %v846
      %v1711 = vsel %vm1705, %v1674, %v848
      %v1712 = vsel %vm1705, %v1675, %v850
      %v1713 = vsel %vm1705, %v1676, %v852
      %v1714 = vsel %vm1705, %v1677, %v854
      %v1715 = vsel %vm1705, %v1678, %v856
      %v1716 = vsel %vm1705, %v1679, %v858
      %v1717 = vsel %vm1705, %v1680, %v860
      %v1718 = vsel %vm1705, %v1681, %v862
      %v1719 = vsel %vm1705, %v1682, %v864
      %v1720 = vsel %vm1705, %v1683, %v866
      %v1721 = vsel %vm1705, %v1684, %v868
      %v1722 = vsel %vm1705, %v1685, %v870
      %v1723 = vsel %vm1705, %v1686, %v872
      %v1724 = vsel %vm1705, %v1687, %v874
      %v1725 = vsel %vm1705, %v1688, %v876
      %v1726 = vsel %vm1705, %v1689, %v878
      %v1727 = vsel %vm1705, %v1690, %v880
      %v1728 = vsel %vm1705, %v1691, %v882
      %v1729 = vsel %vm1705, %v1692, %v884
      %v1730 = vsel %vm1705, %v1693, %v886
      %v1731 = vsel %vm1705, %v1694, %v888
      %v1732 = vsel %vm1705, %v1695, %v890
      %v1733 = vsel %vm1705, %v1696, %v892
      %v1734 = vsel %vm1705, %v1697, %v894
      %v1735 = vsel %vm1705, %v1698, %v896
      %v1736 = vsel %vm1705, %v1699, %v898
      %v1737 = vsel %vm1705, %v1700, %v900
      %v1738 = vsel %vm1705, %v1701, %v902
      %v1739 = vsel %vm1705, %v1702, %v904
      %v1740 = vsel %vm1705, %v1703, %v906
      %v1741 = vsel %vm1705, %v1704, %v908
      %vm1742 = vcmask 261120
      %v1743 = vsel %vm1742, %v1706, %v982
      %v1744 = vsel %vm1742, %v1707, %v984
      %v1745 = vsel %vm1742, %v1708, %v986
      %v1746 = vsel %vm1742, %v1709, %v988
      %v1747 = vsel %vm1742, %v1710, %v990
      %v1748 = vsel %vm1742, %v1711, %v992
      %v1749 = vsel %vm1742, %v1712, %v994
      %v1750 = vsel %vm1742, %v1713, %v996
      %v1751 = vsel %vm1742, %v1714, %v998
      %v1752 = vsel %vm1742, %v1715, %v1000
      %v1753 = vsel %vm1742, %v1716, %v1002
      %v1754 = vsel %vm1742, %v1717, %v1004
      %v1755 = vsel %vm1742, %v1718, %v1006
      %v1756 = vsel %vm1742, %v1719, %v1008
      %v1757 = vsel %vm1742, %v1720, %v1010
      %v1758 = vsel %vm1742, %v1721, %v1012
      %v1759 = vsel %vm1742, %v1722, %v1014
      %v1760 = vsel %vm1742, %v1723, %v1016
      %v1761 = vsel %vm1742, %v1724, %v1018
      %v1762 = vsel %vm1742, %v1725, %v1020
      %v1763 = vsel %vm1742, %v1726, %v1022
      %v1764 = vsel %vm1742, %v1727, %v1024
      %v1765 = vsel %vm1742, %v1728, %v1026
      %v1766 = vsel %vm1742, %v1729, %v1028
      %v1767 = vsel %vm1742, %v1730, %v1030
      %v1768 = vsel %vm1742, %v1731, %v1032
      %v1769 = vsel %vm1742, %v1732, %v1034
      %v1770 = vsel %vm1742, %v1733, %v1036
      %v1771 = vsel %vm1742, %v1734, %v1038
      %v1772 = vsel %vm1742, %v1735, %v1040
      %v1773 = vsel %vm1742, %v1736, %v1042
      %v1774 = vsel %vm1742, %v1737, %v1044
      %v1775 = vsel %vm1742, %v1738, %v1046
      %v1776 = vsel %vm1742, %v1739, %v1048
      %v1777 = vsel %vm1742, %v1740, %v1050
      %v1778 = vsel %vm1742, %v1741, %v1052
      %vm1779 = vcmask 326656
      %v1780 = vsel %vm1779, %v1743, %v1126
      %v1781 = vsel %vm1779, %v1744, %v1128
      %v1782 = vsel %vm1779, %v1745, %v1130
      %v1783 = vsel %vm1779, %v1746, %v1132
      %v1784 = vsel %vm1779, %v1747, %v1134
      %v1785 = vsel %vm1779, %v1748, %v1136
      %v1786 = vsel %vm1779, %v1749, %v1138
      %v1787 = vsel %vm1779, %v1750, %v1140
      %v1788 = vsel %vm1779, %v1751, %v1142
      %v1789 = vsel %vm1779, %v1752, %v1144
      %v1790 = vsel %vm1779, %v1753, %v1146
      %v1791 = vsel %vm1779, %v1754, %v1148
      %v1792 = vsel %vm1779, %v1755, %v1150
      %v1793 = vsel %vm1779, %v1756, %v1152
      %v1794 = vsel %vm1779, %v1757, %v1154
      %v1795 = vsel %vm1779, %v1758, %v1156
      %v1796 = vsel %vm1779, %v1759, %v1158
      %v1797 = vsel %vm1779, %v1760, %v1160
      %v1798 = vsel %vm1779, %v1761, %v1162
      %v1799 = vsel %vm1779, %v1762, %v1164
      %v1800 = vsel %vm1779, %v1763, %v1166
      %v1801 = vsel %vm1779, %v1764, %v1168
      %v1802 = vsel %vm1779, %v1765, %v1170
      %v1803 = vsel %vm1779, %v1766, %v1172
      %v1804 = vsel %vm1779, %v1767, %v1174
      %v1805 = vsel %vm1779, %v1768, %v1176
      %v1806 = vsel %vm1779, %v1769, %v1178
      %v1807 = vsel %vm1779, %v1770, %v1180
      %v1808 = vsel %vm1779, %v1771, %v1182
      %v1809 = vsel %vm1779, %v1772, %v1184
      %v1810 = vsel %vm1779, %v1773, %v1186
      %v1811 = vsel %vm1779, %v1774, %v1188
      %v1812 = vsel %vm1779, %v1775, %v1190
      %v1813 = vsel %vm1779, %v1776, %v1192
      %v1814 = vsel %vm1779, %v1777, %v1194
      %v1815 = vsel %vm1779, %v1778, %v1196
      %vm1816 = vcmask 392192
      %v1817 = vsel %vm1816, %v1780, %v1236
      %v1818 = vsel %vm1816, %v1781, %v1238
      %v1819 = vsel %vm1816, %v1782, %v1240
      %v1820 = vsel %vm1816, %v1783, %v1242
      %v1821 = vsel %vm1816, %v1784, %v1244
      %v1822 = vsel %vm1816, %v1785, %v1246
      %v1823 = vsel %vm1816, %v1786, %v1248
      %v1824 = vsel %vm1816, %v1787, %v1250
      %v1825 = vsel %vm1816, %v1788, %v1252
      %v1826 = vsel %vm1816, %v1789, %v1254
      %v1827 = vsel %vm1816, %v1790, %v1256
      %v1828 = vsel %vm1816, %v1791, %v1258
      %v1829 = vsel %vm1816, %v1792, %v1260
      %v1830 = vsel %vm1816, %v1793, %v1262
      %v1831 = vsel %vm1816, %v1794, %v1264
      %v1832 = vsel %vm1816, %v1795, %v1266
      %v1833 = vsel %vm1816, %v1796, %v1268
      %v1834 = vsel %vm1816, %v1797, %v1270
      %v1835 = vsel %vm1816, %v1798, %v1272
      %v1836 = vsel %vm1816, %v1799, %v1274
      %v1837 = vsel %vm1816, %v1800, %v1276
      %v1838 = vsel %vm1816, %v1801, %v1278
      %v1839 = vsel %vm1816, %v1802, %v1280
      %v1840 = vsel %vm1816, %v1803, %v1282
      %v1841 = vsel %vm1816, %v1804, %v1284
      %v1842 = vsel %vm1816, %v1805, %v1286
      %v1843 = vsel %vm1816, %v1806, %v1288
      %v1844 = vsel %vm1816, %v1807, %v1290
      %v1845 = vsel %vm1816, %v1808, %v1292
      %v1846 = vsel %vm1816, %v1809, %v1294
      %v1847 = vsel %vm1816, %v1810, %v1296
      %v1848 = vsel %vm1816, %v1811, %v1298
      %v1849 = vsel %vm1816, %v1812, %v1300
      %v1850 = vsel %vm1816, %v1813, %v1302
      %v1851 = vsel %vm1816, %v1814, %v1304
      %v1852 = vsel %vm1816, %v1815, %v1306
      %vm1853 = vcmask 457728
      %v1854 = vsel %vm1853, %v1817, %v1380
      %v1855 = vsel %vm1853, %v1818, %v1382
      %v1856 = vsel %vm1853, %v1819, %v1384
      %v1857 = vsel %vm1853, %v1820, %v1386
      %v1858 = vsel %vm1853, %v1821, %v1388
      %v1859 = vsel %vm1853, %v1822, %v1390
      %v1860 = vsel %vm1853, %v1823, %v1392
      %v1861 = vsel %vm1853, %v1824, %v1394
      %v1862 = vsel %vm1853, %v1825, %v1396
      %v1863 = vsel %vm1853, %v1826, %v1398
      %v1864 = vsel %vm1853, %v1827, %v1400
      %v1865 = vsel %vm1853, %v1828, %v1402
      %v1866 = vsel %vm1853, %v1829, %v1404
      %v1867 = vsel %vm1853, %v1830, %v1406
      %v1868 = vsel %vm1853, %v1831, %v1408
      %v1869 = vsel %vm1853, %v1832, %v1410
      %v1870 = vsel %vm1853, %v1833, %v1412
      %v1871 = vsel %vm1853, %v1834, %v1414
      %v1872 = vsel %vm1853, %v1835, %v1416
      %v1873 = vsel %vm1853, %v1836, %v1418
      %v1874 = vsel %vm1853, %v1837, %v1420
      %v1875 = vsel %vm1853, %v1838, %v1422
      %v1876 = vsel %vm1853, %v1839, %v1424
      %v1877 = vsel %vm1853, %v1840, %v1426
      %v1878 = vsel %vm1853, %v1841, %v1428
      %v1879 = vsel %vm1853, %v1842, %v1430
      %v1880 = vsel %vm1853, %v1843, %v1432
      %v1881 = vsel %vm1853, %v1844, %v1434
      %v1882 = vsel %vm1853, %v1845, %v1436
      %v1883 = vsel %vm1853, %v1846, %v1438
      %v1884 = vsel %vm1853, %v1847, %v1440
      %v1885 = vsel %vm1853, %v1848, %v1442
      %v1886 = vsel %vm1853, %v1849, %v1444
      %v1887 = vsel %vm1853, %v1850, %v1446
      %v1888 = vsel %vm1853, %v1851, %v1448
      %v1889 = vsel %vm1853, %v1852, %v1450
      %vm1890 = vcmask 523264
      %v1891 = vsel %vm1890, %v1854, %v1524
      %v1892 = vsel %vm1890, %v1855, %v1526
      %v1893 = vsel %vm1890, %v1856, %v1528
      %v1894 = vsel %vm1890, %v1857, %v1530
      %v1895 = vsel %vm1890, %v1858, %v1532
      %v1896 = vsel %vm1890, %v1859, %v1534
      %v1897 = vsel %vm1890, %v1860, %v1536
      %v1898 = vsel %vm1890, %v1861, %v1538
      %v1899 = vsel %vm1890, %v1862, %v1540
      %v1900 = vsel %vm1890, %v1863, %v1542
      %v1901 = vsel %vm1890, %v1864, %v1544
      %v1902 = vsel %vm1890, %v1865, %v1546
      %v1903 = vsel %vm1890, %v1866, %v1548
      %v1904 = vsel %vm1890, %v1867, %v1550
      %v1905 = vsel %vm1890, %v1868, %v1552
      %v1906 = vsel %vm1890, %v1869, %v1554
      %v1907 = vsel %vm1890, %v1870, %v1556
      %v1908 = vsel %vm1890, %v1871, %v1558
      %v1909 = vsel %vm1890, %v1872, %v1560
      %v1910 = vsel %vm1890, %v1873, %v1562
      %v1911 = vsel %vm1890, %v1874, %v1564
      %v1912 = vsel %vm1890, %v1875, %v1566
      %v1913 = vsel %vm1890, %v1876, %v1568
      %v1914 = vsel %vm1890, %v1877, %v1570
      %v1915 = vsel %vm1890, %v1878, %v1572
      %v1916 = vsel %vm1890, %v1879, %v1574
      %v1917 = vsel %vm1890, %v1880, %v1576
      %v1918 = vsel %vm1890, %v1881, %v1578
      %v1919 = vsel %vm1890, %v1882, %v1580
      %v1920 = vsel %vm1890, %v1883, %v1582
      %v1921 = vsel %vm1890, %v1884, %v1584
      %v1922 = vsel %vm1890, %v1885, %v1586
      %v1923 = vsel %vm1890, %v1886, %v1588
      %v1924 = vsel %vm1890, %v1887, %v1590
      %v1925 = vsel %vm1890, %v1888, %v1592
      %v1926 = vsel %vm1890, %v1889, %v1594
      %v1927 = vld [vmem:[%s2] sm:$0xff]
      %v1928 = vld [vmem:[%s2 + $0x8] sm:$0xff]
      %v1929 = vld [vmem:[%s2 + $0x10] sm:$0xff]
      %v1930 = vld [vmem:[%s2 + $0x18] sm:$0xff]
      %v1931 = vld [vmem:[%s2 + $0x20] sm:$0xff]
      %v1932 = vld [vmem:[%s2 + $0x28] sm:$0xff]
      %v1933 = vld [vmem:[%s2 + $0x30] sm:$0xff]
      %v1934 = vld [vmem:[%s2 + $0x38] sm:$0xff]
      %v1935 = vld [vmem:[%s2 + $0x40] sm:$0xff]
      %v1936 = vld [vmem:[%s3] sm:$0x1]
      %v1938 = vlaneseq
      %v1939 = vshrl.u32 %v1938, 7
      %v1940 = vsub.s32 0, %v1939
      %v1941 = vrot.slane %v1936, %v1940
      %vm1943 = vcmask 588800
      %v1945 = vsel %vm1943, %v1891, 0
      %v1948 = vsel %vm1943, %v1892, 0
      %v1951 = vsel %vm1943, %v1893, 0
      %v1954 = vsel %vm1943, %v1894, 0
      %v1957 = vsel %vm1943, %v1895, 0
      %v1960 = vsel %vm1943, %v1896, 0
      %v1963 = vsel %vm1943, %v1897, 0
      %v1966 = vsel %vm1943, %v1898, 0
      %v1969 = vsel %vm1943, %v1899, 0
      %v1972 = vsel %vm1943, %v1900, 0
      %v1975 = vsel %vm1943, %v1901, 0
      %v1978 = vsel %vm1943, %v1902, 0
      %v1981 = vsel %vm1943, %v1903, 0
      %v1984 = vsel %vm1943, %v1904, 0
      %v1987 = vsel %vm1943, %v1905, 0
      %v1990 = vsel %vm1943, %v1906, 0
      %v1993 = vsel %vm1943, %v1907, 0
      %v1996 = vsel %vm1943, %v1908, 0
      %v1999 = vsel %vm1943, %v1909, 0
      %v2002 = vsel %vm1943, %v1910, 0
      %v2005 = vsel %vm1943, %v1911, 0
      %v2008 = vsel %vm1943, %v1912, 0
      %v2011 = vsel %vm1943, %v1913, 0
      %v2014 = vsel %vm1943, %v1914, 0
      %v2017 = vsel %vm1943, %v1915, 0
      %v2020 = vsel %vm1943, %v1916, 0
      %v2023 = vsel %vm1943, %v1917, 0
      %v2026 = vsel %vm1943, %v1918, 0
      %v2029 = vsel %vm1943, %v1919, 0
      %v2032 = vsel %vm1943, %v1920, 0
      %v2035 = vsel %vm1943, %v1921, 0
      %v2038 = vsel %vm1943, %v1922, 0
      %v2041 = vsel %vm1943, %v1923, 0
      %v2044 = vsel %vm1943, %v1924, 0
      %v2047 = vsel %vm1943, %v1925, 0
      %v2050 = vsel %vm1943, %v1926, 0
      %2052 = vmatprep.subr.mxu0 0.0
      %2053 = vmatpush1.msra.mxu0 0.0
      %2054 = vmatprep.subr.mxu0 0.0
      %2055 = vmatpush1.msra.mxu0 0.0
      %2056 = vmatprep.subr.mxu0 0.0
      %2057 = vmatpush1.msra.mxu0 0.0
      %2058 = vmatprep.subr.mxu0 0.0
      %2059 = vmatpush1.msra.mxu0 0.0
      %2060 = vmatprep.subr.mxu0 0.0
      %2061 = vmatpush1.msra.mxu0 0.0
      %2062 = vmatprep.subr.mxu0 0.0
      %2063 = vmatpush1.msra.mxu0 0.0
      %2064 = vmatprep.subr.mxu0 0.0
      %2065 = vmatpush1.msra.mxu0 0.0
      %2066 = vmatprep.subr.mxu0 0.0
      %2067 = vmatpush1.msra.mxu0 %v1935
      %2068 = vmatprep.subr.mxu0 0.0
      %2069 = vmatpush1.msra.mxu0 %v1934
      %2070 = vmatprep.subr.mxu0 0.0
      %2071 = vmatpush1.msra.mxu0 %v1933
      %2072 = vmatprep.subr.mxu0 0.0
      %2073 = vmatpush1.msra.mxu0 %v1932
      %2074 = vmatprep.subr.mxu0 0.0
      %2075 = vmatpush1.msra.mxu0 %v1931
      %2076 = vmatprep.subr.mxu0 0.0
      %2077 = vmatpush1.msra.mxu0 %v1930
      %2078 = vmatprep.subr.mxu0 0.0
      %2079 = vmatpush1.msra.mxu0 %v1929
      %2080 = vmatprep.subr.mxu0 0.0
      %2081 = vmatpush1.msra.mxu0 %v1928
      %2082 = vmatprep.subr.mxu0 0.0
      %2083 = vmatpush1.msra.mxu0 %v1927
      %2084 = vmatprep.subr.mxu0 0.0
      %2085 = vmatpush2.msra.mxu0 0.0
      %2086 = vmatprep.subr.mxu0 0.0
      %2087 = vmatpush2.msra.mxu0 0.0
      %2088 = vmatprep.subr.mxu0 0.0
      %2089 = vmatpush2.msra.mxu0 0.0
      %2090 = vmatprep.subr.mxu0 0.0
      %2091 = vmatpush2.msra.mxu0 0.0
      %2092 = vmatprep.subr.mxu0 0.0
      %2093 = vmatpush2.msra.mxu0 0.0
      %2094 = vmatprep.subr.mxu0 0.0
      %2095 = vmatpush2.msra.mxu0 0.0
      %2096 = vmatprep.subr.mxu0 0.0
      %2097 = vmatpush2.msra.mxu0 0.0
      %2098 = vmatprep.subr.mxu0 0.0
      %2099 = vmatpush2.msra.mxu0 0.0
      %2100 = vmatprep.subr.mxu0 0.0
      %2101 = vmatpush2.msra.mxu0 0.0
      %2102 = vmatprep.subr.mxu0 0.0
      %2103 = vmatpush2.msra.mxu0 0.0
      %2104 = vmatprep.subr.mxu0 0.0
      %2105 = vmatpush2.msra.mxu0 0.0
      %2106 = vmatprep.subr.mxu0 0.0
      %2107 = vmatpush2.msra.mxu0 0.0
      %2108 = vmatprep.subr.mxu0 0.0
      %2109 = vmatpush2.msra.mxu0 0.0
      %2110 = vmatprep.subr.mxu0 0.0
      %2111 = vmatpush2.msra.mxu0 0.0
      %2112 = vmatprep.subr.mxu0 0.0
      %2113 = vmatpush2.msra.mxu0 0.0
      %2114 = vmatprep.subr.mxu0 0.0
      %2115 = vmatpush2.msra.mxu0 0.0
      %2116 = vmatprep.mubr.f32.mxu0 0.0
      %2117 = vmatmul.mubr.f32.gmra.mxu0 %v1945
      %v2118 = vpop.f32.mrf.mxu0
      %v2119 = vadd.f32 %v1941, %v2118
      %v2120 = vpop.f32.mrf.mxu0
      %2121 = vmatprep.mubr.f32.mxu0 0.0
      %2122 = vmatmul.mubr.f32.gmra.mxu0 %v1948
      %v2123 = vpop.f32.mrf.mxu0
      %v2124 = vadd.f32 %v1941, %v2123
      %v2125 = vpop.f32.mrf.mxu0
      %2126 = vmatprep.mubr.f32.mxu0 0.0
      %2127 = vmatmul.mubr.f32.gmra.mxu0 %v1951
      %v2128 = vpop.f32.mrf.mxu0
      %v2129 = vadd.f32 %v1941, %v2128
      %v2130 = vpop.f32.mrf.mxu0
      %2131 = vmatprep.mubr.f32.mxu0 0.0
      %2132 = vmatmul.mubr.f32.gmra.mxu0 %v1954
      %v2133 = vpop.f32.mrf.mxu0
      %v2134 = vadd.f32 %v1941, %v2133
      %v2135 = vpop.f32.mrf.mxu0
      %2136 = vmatprep.mubr.f32.mxu0 0.0
      %2137 = vmatmul.mubr.f32.gmra.mxu0 %v1957
      %v2138 = vpop.f32.mrf.mxu0
      %v2139 = vadd.f32 %v1941, %v2138
      %v2140 = vpop.f32.mrf.mxu0
      %2141 = vmatprep.mubr.f32.mxu0 0.0
      %2142 = vmatmul.mubr.f32.gmra.mxu0 %v1960
      %v2143 = vpop.f32.mrf.mxu0
      %v2144 = vadd.f32 %v1941, %v2143
      %v2145 = vpop.f32.mrf.mxu0
      %2146 = vmatprep.mubr.f32.mxu0 0.0
      %2147 = vmatmul.mubr.f32.gmra.mxu0 %v1963
      %v2148 = vpop.f32.mrf.mxu0
      %v2149 = vadd.f32 %v1941, %v2148
      %v2150 = vpop.f32.mrf.mxu0
      %2151 = vmatprep.mubr.f32.mxu0 0.0
      %2152 = vmatmul.mubr.f32.gmra.mxu0 %v1966
      %v2153 = vpop.f32.mrf.mxu0
      %v2154 = vadd.f32 %v1941, %v2153
      %v2155 = vpop.f32.mrf.mxu0
      %2156 = vmatprep.mubr.f32.mxu0 0.0
      %2157 = vmatmul.mubr.f32.gmra.mxu0 %v1969
      %v2158 = vpop.f32.mrf.mxu0
      %v2159 = vadd.f32 %v1941, %v2158
      %v2160 = vpop.f32.mrf.mxu0
      %2161 = vmatprep.mubr.f32.mxu0 0.0
      %2162 = vmatmul.mubr.f32.gmra.mxu0 %v1972
      %v2163 = vpop.f32.mrf.mxu0
      %v2164 = vadd.f32 %v1941, %v2163
      %v2165 = vpop.f32.mrf.mxu0
      %2166 = vmatprep.mubr.f32.mxu0 0.0
      %2167 = vmatmul.mubr.f32.gmra.mxu0 %v1975
      %v2168 = vpop.f32.mrf.mxu0
      %v2169 = vadd.f32 %v1941, %v2168
      %v2170 = vpop.f32.mrf.mxu0
      %2171 = vmatprep.mubr.f32.mxu0 0.0
      %2172 = vmatmul.mubr.f32.gmra.mxu0 %v1978
      %v2173 = vpop.f32.mrf.mxu0
      %v2174 = vadd.f32 %v1941, %v2173
      %v2175 = vpop.f32.mrf.mxu0
      %2176 = vmatprep.mubr.f32.mxu0 0.0
      %2177 = vmatmul.mubr.f32.gmra.mxu0 %v1981
      %v2178 = vpop.f32.mrf.mxu0
      %v2179 = vadd.f32 %v1941, %v2178
      %v2180 = vpop.f32.mrf.mxu0
      %2181 = vmatprep.mubr.f32.mxu0 0.0
      %2182 = vmatmul.mubr.f32.gmra.mxu0 %v1984
      %v2183 = vpop.f32.mrf.mxu0
      %v2184 = vadd.f32 %v1941, %v2183
      %v2185 = vpop.f32.mrf.mxu0
      %2186 = vmatprep.mubr.f32.mxu0 0.0
      %2187 = vmatmul.mubr.f32.gmra.mxu0 %v1987
      %v2188 = vpop.f32.mrf.mxu0
      %v2189 = vadd.f32 %v1941, %v2188
      %v2190 = vpop.f32.mrf.mxu0
      %2191 = vmatprep.mubr.f32.mxu0 0.0
      %2192 = vmatmul.mubr.f32.gmra.mxu0 %v1990
      %v2193 = vpop.f32.mrf.mxu0
      %v2194 = vadd.f32 %v1941, %v2193
      %v2195 = vpop.f32.mrf.mxu0
      %2196 = vmatprep.mubr.f32.mxu0 0.0
      %2197 = vmatmul.mubr.f32.gmra.mxu0 %v1993
      %v2198 = vpop.f32.mrf.mxu0
      %v2199 = vadd.f32 %v1941, %v2198
      %v2200 = vpop.f32.mrf.mxu0
      %2201 = vmatprep.mubr.f32.mxu0 0.0
      %2202 = vmatmul.mubr.f32.gmra.mxu0 %v1996
      %v2203 = vpop.f32.mrf.mxu0
      %v2204 = vadd.f32 %v1941, %v2203
      %v2205 = vpop.f32.mrf.mxu0
      %2206 = vmatprep.mubr.f32.mxu0 0.0
      %2207 = vmatmul.mubr.f32.gmra.mxu0 %v1999
      %v2208 = vpop.f32.mrf.mxu0
      %v2209 = vadd.f32 %v1941, %v2208
      %v2210 = vpop.f32.mrf.mxu0
      %2211 = vmatprep.mubr.f32.mxu0 0.0
      %2212 = vmatmul.mubr.f32.gmra.mxu0 %v2002
      %v2213 = vpop.f32.mrf.mxu0
      %v2214 = vadd.f32 %v1941, %v2213
      %v2215 = vpop.f32.mrf.mxu0
      %2216 = vmatprep.mubr.f32.mxu0 0.0
      %2217 = vmatmul.mubr.f32.gmra.mxu0 %v2005
      %v2218 = vpop.f32.mrf.mxu0
      %v2219 = vadd.f32 %v1941, %v2218
      %v2220 = vpop.f32.mrf.mxu0
      %2221 = vmatprep.mubr.f32.mxu0 0.0
      %2222 = vmatmul.mubr.f32.gmra.mxu0 %v2008
      %v2223 = vpop.f32.mrf.mxu0
      %v2224 = vadd.f32 %v1941, %v2223
      %v2225 = vpop.f32.mrf.mxu0
      %2226 = vmatprep.mubr.f32.mxu0 0.0
      %2227 = vmatmul.mubr.f32.gmra.mxu0 %v2011
      %v2228 = vpop.f32.mrf.mxu0
      %v2229 = vadd.f32 %v1941, %v2228
      %v2230 = vpop.f32.mrf.mxu0
      %2231 = vmatprep.mubr.f32.mxu0 0.0
      %2232 = vmatmul.mubr.f32.gmra.mxu0 %v2014
      %v2233 = vpop.f32.mrf.mxu0
      %v2234 = vadd.f32 %v1941, %v2233
      %v2235 = vpop.f32.mrf.mxu0
      %2236 = vmatprep.mubr.f32.mxu0 0.0
      %2237 = vmatmul.mubr.f32.gmra.mxu0 %v2017
      %v2238 = vpop.f32.mrf.mxu0
      %v2239 = vadd.f32 %v1941, %v2238
      %v2240 = vpop.f32.mrf.mxu0
      %2241 = vmatprep.mubr.f32.mxu0 0.0
      %2242 = vmatmul.mubr.f32.gmra.mxu0 %v2020
      %v2243 = vpop.f32.mrf.mxu0
      %v2244 = vadd.f32 %v1941, %v2243
      %v2245 = vpop.f32.mrf.mxu0
      %2246 = vmatprep.mubr.f32.mxu0 0.0
      %2247 = vmatmul.mubr.f32.gmra.mxu0 %v2023
      %v2248 = vpop.f32.mrf.mxu0
      %v2249 = vadd.f32 %v1941, %v2248
      %v2250 = vpop.f32.mrf.mxu0
      %2251 = vmatprep.mubr.f32.mxu0 0.0
      %2252 = vmatmul.mubr.f32.gmra.mxu0 %v2026
      %v2253 = vpop.f32.mrf.mxu0
      %v2254 = vadd.f32 %v1941, %v2253
      %v2255 = vpop.f32.mrf.mxu0
      %2256 = vmatprep.mubr.f32.mxu0 0.0
      %2257 = vmatmul.mubr.f32.gmra.mxu0 %v2029
      %v2258 = vpop.f32.mrf.mxu0
      %v2259 = vadd.f32 %v1941, %v2258
      %v2260 = vpop.f32.mrf.mxu0
      %2261 = vmatprep.mubr.f32.mxu0 0.0
      %2262 = vmatmul.mubr.f32.gmra.mxu0 %v2032
      %v2263 = vpop.f32.mrf.mxu0
      %v2264 = vadd.f32 %v1941, %v2263
      %v2265 = vpop.f32.mrf.mxu0
      %2266 = vmatprep.mubr.f32.mxu0 0.0
      %2267 = vmatmul.mubr.f32.gmra.mxu0 %v2035
      %v2268 = vpop.f32.mrf.mxu0
      %v2269 = vadd.f32 %v1941, %v2268
      %v2270 = vpop.f32.mrf.mxu0
      %2271 = vmatprep.mubr.f32.mxu0 0.0
      %2272 = vmatmul.mubr.f32.gmra.mxu0 %v2038
      %v2273 = vpop.f32.mrf.mxu0
      %v2274 = vadd.f32 %v1941, %v2273
      %v2275 = vpop.f32.mrf.mxu0
      %2276 = vmatprep.mubr.f32.mxu0 0.0
      %2277 = vmatmul.mubr.f32.gmra.mxu0 %v2041
      %v2278 = vpop.f32.mrf.mxu0
      %v2279 = vadd.f32 %v1941, %v2278
      %v2280 = vpop.f32.mrf.mxu0
      %2281 = vmatprep.mubr.f32.mxu0 0.0
      %2282 = vmatmul.mubr.f32.gmra.mxu0 %v2044
      %v2283 = vpop.f32.mrf.mxu0
      %v2284 = vadd.f32 %v1941, %v2283
      %v2285 = vpop.f32.mrf.mxu0
      %2286 = vmatprep.mubr.f32.mxu0 0.0
      %2287 = vmatmul.mubr.f32.gmra.mxu0 %v2047
      %v2288 = vpop.f32.mrf.mxu0
      %v2289 = vadd.f32 %v1941, %v2288
      %v2290 = vpop.f32.mrf.mxu0
      %2291 = vmatprep.mubr.f32.mxu0 0.0
      %2292 = vmatmul.mubr.f32.gmra.mxu0 %v2050
      %v2293 = vpop.f32.mrf.mxu0
      %v2294 = vadd.f32 %v1941, %v2293
      %v2295 = vpop.f32.mrf.mxu0
      %2296 = vdwg.mxu0
      %v2297 = vmax.f32 %v2119, 0.0
      %v2298 = vmax.f32 %v2124, 0.0
      %v2299 = vmax.f32 %v2129, 0.0
      %v2300 = vmax.f32 %v2134, 0.0
      %v2301 = vmax.f32 %v2139, 0.0
      %v2302 = vmax.f32 %v2144, 0.0
      %v2303 = vmax.f32 %v2149, 0.0
      %v2304 = vmax.f32 %v2154, 0.0
      %v2305 = vmax.f32 %v2159, 0.0
      %v2306 = vmax.f32 %v2164, 0.0
      %v2307 = vmax.f32 %v2169, 0.0
      %v2308 = vmax.f32 %v2174, 0.0
      %v2309 = vmax.f32 %v2179, 0.0
      %v2310 = vmax.f32 %v2184, 0.0
      %v2311 = vmax.f32 %v2189, 0.0
      %v2312 = vmax.f32 %v2194, 0.0
      %v2313 = vmax.f32 %v2199, 0.0
      %v2314 = vmax.f32 %v2204, 0.0
      %v2315 = vmax.f32 %v2209, 0.0
      %v2316 = vmax.f32 %v2214, 0.0
      %v2317 = vmax.f32 %v2219, 0.0
      %v2318 = vmax.f32 %v2224, 0.0
      %v2319 = vmax.f32 %v2229, 0.0
      %v2320 = vmax.f32 %v2234, 0.0
      %v2321 = vmax.f32 %v2239, 0.0
      %v2322 = vmax.f32 %v2244, 0.0
      %v2323 = vmax.f32 %v2249, 0.0
      %v2324 = vmax.f32 %v2254, 0.0
      %v2325 = vmax.f32 %v2259, 0.0
      %v2326 = vmax.f32 %v2264, 0.0
      %v2327 = vmax.f32 %v2269, 0.0
      %v2328 = vmax.f32 %v2274, 0.0
      %v2329 = vmax.f32 %v2279, 0.0
      %v2330 = vmax.f32 %v2284, 0.0
      %v2331 = vmax.f32 %v2289, 0.0
      %v2332 = vmax.f32 %v2294, 0.0
      %2334 = vset.pattern.permute.xlu0 0
      %2335 = vperm.xlu0 %2334, %v252
      %v2336 = vpop.permute.xlu0 %2335
      %2339 = vset.pattern.permute.xlu0 0
      %2340 = vperm.xlu0 %2339, %v253
      %v2341 = vpop.permute.xlu0 %2340
      %2344 = vset.pattern.permute.xlu0 0
      %2345 = vperm.xlu0 %2344, %v254
      %v2346 = vpop.permute.xlu0 %2345
      %2349 = vset.pattern.permute.xlu0 0
      %2350 = vperm.xlu0 %2349, %v255
      %v2351 = vpop.permute.xlu0 %2350
      %2354 = vset.pattern.permute.xlu0 0
      %2355 = vperm.xlu0 %2354, %v256
      %v2356 = vpop.permute.xlu0 %2355
      %2359 = vset.pattern.permute.xlu0 0
      %2360 = vperm.xlu0 %2359, %v257
      %v2361 = vpop.permute.xlu0 %2360
      %2364 = vset.pattern.permute.xlu0 0
      %2365 = vperm.xlu0 %2364, %v258
      %v2366 = vpop.permute.xlu0 %2365
      %2369 = vset.pattern.permute.xlu0 0
      %2370 = vperm.xlu0 %2369, %v259
      %v2371 = vpop.permute.xlu0 %2370
      %2374 = vset.pattern.permute.xlu0 0
      %2375 = vperm.xlu0 %2374, %v260
      %v2376 = vpop.permute.xlu0 %2375
      %2379 = vset.pattern.permute.xlu0 0
      %2380 = vperm.xlu0 %2379, %v261
      %v2381 = vpop.permute.xlu0 %2380
      %2384 = vset.pattern.permute.xlu0 0
      %2385 = vperm.xlu0 %2384, %v262
      %v2386 = vpop.permute.xlu0 %2385
      %2389 = vset.pattern.permute.xlu0 0
      %2390 = vperm.xlu0 %2389, %v263
      %v2391 = vpop.permute.xlu0 %2390
      %2394 = vset.pattern.permute.xlu0 0
      %2395 = vperm.xlu0 %2394, %v264
      %v2396 = vpop.permute.xlu0 %2395
      %2399 = vset.pattern.permute.xlu0 0
      %2400 = vperm.xlu0 %2399, %v265
      %v2401 = vpop.permute.xlu0 %2400
      %2404 = vset.pattern.permute.xlu0 0
      %2405 = vperm.xlu0 %2404, %v266
      %v2406 = vpop.permute.xlu0 %2405
      %2409 = vset.pattern.permute.xlu0 0
      %2410 = vperm.xlu0 %2409, %v267
      %v2411 = vpop.permute.xlu0 %2410
      %2414 = vset.pattern.permute.xlu0 0
      %2415 = vperm.xlu0 %2414, %v268
      %v2416 = vpop.permute.xlu0 %2415
      %2419 = vset.pattern.permute.xlu0 0
      %2420 = vperm.xlu0 %2419, %v269
      %v2421 = vpop.permute.xlu0 %2420
      %2424 = vset.pattern.permute.xlu0 0
      %2425 = vperm.xlu0 %2424, %v270
      %v2426 = vpop.permute.xlu0 %2425
      %2429 = vset.pattern.permute.xlu0 0
      %2430 = vperm.xlu0 %2429, %v271
      %v2431 = vpop.permute.xlu0 %2430
      %2434 = vset.pattern.permute.xlu0 0
      %2435 = vperm.xlu0 %2434, %v272
      %v2436 = vpop.permute.xlu0 %2435
      %2439 = vset.pattern.permute.xlu0 0
      %2440 = vperm.xlu0 %2439, %v273
      %v2441 = vpop.permute.xlu0 %2440
      %2444 = vset.pattern.permute.xlu0 0
      %2445 = vperm.xlu0 %2444, %v274
      %v2446 = vpop.permute.xlu0 %2445
      %2449 = vset.pattern.permute.xlu0 0
      %2450 = vperm.xlu0 %2449, %v275
      %v2451 = vpop.permute.xlu0 %2450
      %2454 = vset.pattern.permute.xlu0 0
      %2455 = vperm.xlu0 %2454, %v276
      %v2456 = vpop.permute.xlu0 %2455
      %2459 = vset.pattern.permute.xlu0 0
      %2460 = vperm.xlu0 %2459, %v277
      %v2461 = vpop.permute.xlu0 %2460
      %2464 = vset.pattern.permute.xlu0 0
      %2465 = vperm.xlu0 %2464, %v278
      %v2466 = vpop.permute.xlu0 %2465
      %2469 = vset.pattern.permute.xlu0 0
      %2470 = vperm.xlu0 %2469, %v279
      %v2471 = vpop.permute.xlu0 %2470
      %2474 = vset.pattern.permute.xlu0 0
      %2475 = vperm.xlu0 %2474, %v280
      %v2476 = vpop.permute.xlu0 %2475
      %2479 = vset.pattern.permute.xlu0 0
      %2480 = vperm.xlu0 %2479, %v281
      %v2481 = vpop.permute.xlu0 %2480
      %2484 = vset.pattern.permute.xlu0 0
      %2485 = vperm.xlu0 %2484, %v282
      %v2486 = vpop.permute.xlu0 %2485
      %2489 = vset.pattern.permute.xlu0 0
      %2490 = vperm.xlu0 %2489, %v283
      %v2491 = vpop.permute.xlu0 %2490
      %2494 = vset.pattern.permute.xlu0 0
      %2495 = vperm.xlu0 %2494, %v284
      %v2496 = vpop.permute.xlu0 %2495
      %2499 = vset.pattern.permute.xlu0 0
      %2500 = vperm.xlu0 %2499, %v285
      %v2501 = vpop.permute.xlu0 %2500
      %2504 = vset.pattern.permute.xlu0 0
      %2505 = vperm.xlu0 %2504, %v286
      %v2506 = vpop.permute.xlu0 %2505
      %2509 = vset.pattern.permute.xlu0 0
      %2510 = vperm.xlu0 %2509, %v287
      %v2511 = vpop.permute.xlu0 %2510
      %v2513 = vmul.f32 %v2336, %v2297
      %v2514 = vmul.f32 %v2341, %v2298
      %v2515 = vmul.f32 %v2346, %v2299
      %v2516 = vmul.f32 %v2351, %v2300
      %v2517 = vmul.f32 %v2356, %v2301
      %v2518 = vmul.f32 %v2361, %v2302
      %v2519 = vmul.f32 %v2366, %v2303
      %v2520 = vmul.f32 %v2371, %v2304
      %v2521 = vmul.f32 %v2376, %v2305
      %v2522 = vmul.f32 %v2381, %v2306
      %v2523 = vmul.f32 %v2386, %v2307
      %v2524 = vmul.f32 %v2391, %v2308
      %v2525 = vmul.f32 %v2396, %v2309
      %v2526 = vmul.f32 %v2401, %v2310
      %v2527 = vmul.f32 %v2406, %v2311
      %v2528 = vmul.f32 %v2411, %v2312
      %v2529 = vmul.f32 %v2416, %v2313
      %v2530 = vmul.f32 %v2421, %v2314
      %v2531 = vmul.f32 %v2426, %v2315
      %v2532 = vmul.f32 %v2431, %v2316
      %v2533 = vmul.f32 %v2436, %v2317
      %v2534 = vmul.f32 %v2441, %v2318
      %v2535 = vmul.f32 %v2446, %v2319
      %v2536 = vmul.f32 %v2451, %v2320
      %v2537 = vmul.f32 %v2456, %v2321
      %v2538 = vmul.f32 %v2461, %v2322
      %v2539 = vmul.f32 %v2466, %v2323
      %v2540 = vmul.f32 %v2471, %v2324
      %v2541 = vmul.f32 %v2476, %v2325
      %v2542 = vmul.f32 %v2481, %v2326
      %v2543 = vmul.f32 %v2486, %v2327
      %v2544 = vmul.f32 %v2491, %v2328
      %v2545 = vmul.f32 %v2496, %v2329
      %v2546 = vmul.f32 %v2501, %v2330
      %v2547 = vmul.f32 %v2506, %v2331
      %v2548 = vmul.f32 %v2511, %v2332
      %2549 = vst.msk [vmem:[#allocation2] sm:$0xff] %vm1631, 0.0
      %2550 = vst.msk [vmem:[#allocation2 + $0x8] sm:$0xff] %vm1631, 0.0
      %2551 = vst.msk [vmem:[#allocation2 + $0x10] sm:$0xff] %vm1631, 0.0
      %2552 = vst.msk [vmem:[#allocation2 + $0x18] sm:$0xff] %vm1631, 0.0
      %2553 = vst.msk [vmem:[#allocation2 + $0x140] sm:$0xff] %vm1631, 0.0
      %2554 = vst.msk [vmem:[#allocation2 + $0x148] sm:$0xff] %vm1631, 0.0
      %2555 = vst.msk [vmem:[#allocation2 + $0x150] sm:$0xff] %vm1631, 0.0
      %2556 = vst.msk [vmem:[#allocation2 + $0x158] sm:$0xff] %vm1631, 0.0
      %2557 = vst.msk [vmem:[#allocation2 + $0x20] sm:$0xff] %vm1631, %v2513
      %2558 = vst.msk [vmem:[#allocation2 + $0x28] sm:$0xff] %vm1631, %v2514
      %2559 = vst.msk [vmem:[#allocation2 + $0x30] sm:$0xff] %vm1631, %v2515
      %2560 = vst.msk [vmem:[#allocation2 + $0x38] sm:$0xff] %vm1631, %v2516
      %2561 = vst.msk [vmem:[#allocation2 + $0x40] sm:$0xff] %vm1631, %v2517
      %2562 = vst.msk [vmem:[#allocation2 + $0x48] sm:$0xff] %vm1631, %v2518
      %2563 = vst.msk [vmem:[#allocation2 + $0x50] sm:$0xff] %vm1631, %v2519
      %2564 = vst.msk [vmem:[#allocation2 + $0x58] sm:$0xff] %vm1631, %v2520
      %2565 = vst.msk [vmem:[#allocation2 + $0x60] sm:$0xff] %vm1631, %v2521
      %2566 = vst.msk [vmem:[#allocation2 + $0x68] sm:$0xff] %vm1631, %v2522
      %2567 = vst.msk [vmem:[#allocation2 + $0x70] sm:$0xff] %vm1631, %v2523
      %2568 = vst.msk [vmem:[#allocation2 + $0x78] sm:$0xff] %vm1631, %v2524
      %2569 = vst.msk [vmem:[#allocation2 + $0x80] sm:$0xff] %vm1631, %v2525
      %2570 = vst.msk [vmem:[#allocation2 + $0x88] sm:$0xff] %vm1631, %v2526
      %2571 = vst.msk [vmem:[#allocation2 + $0x90] sm:$0xff] %vm1631, %v2527
      %2572 = vst.msk [vmem:[#allocation2 + $0x98] sm:$0xff] %vm1631, %v2528
      %2573 = vst.msk [vmem:[#allocation2 + $0xa0] sm:$0xff] %vm1631, %v2529
      %2574 = vst.msk [vmem:[#allocation2 + $0xa8] sm:$0xff] %vm1631, %v2530
      %2575 = vst.msk [vmem:[#allocation2 + $0xb0] sm:$0xff] %vm1631, %v2531
      %2576 = vst.msk [vmem:[#allocation2 + $0xb8] sm:$0xff] %vm1631, %v2532
      %2577 = vst.msk [vmem:[#allocation2 + $0xc0] sm:$0xff] %vm1631, %v2533
      %2578 = vst.msk [vmem:[#allocation2 + $0xc8] sm:$0xff] %vm1631, %v2534
      %2579 = vst.msk [vmem:[#allocation2 + $0xd0] sm:$0xff] %vm1631, %v2535
      %2580 = vst.msk [vmem:[#allocation2 + $0xd8] sm:$0xff] %vm1631, %v2536
      %2581 = vst.msk [vmem:[#allocation2 + $0xe0] sm:$0xff] %vm1631, %v2537
      %2582 = vst.msk [vmem:[#allocation2 + $0xe8] sm:$0xff] %vm1631, %v2538
      %2583 = vst.msk [vmem:[#allocation2 + $0xf0] sm:$0xff] %vm1631, %v2539
      %2584 = vst.msk [vmem:[#allocation2 + $0xf8] sm:$0xff] %vm1631, %v2540
      %2585 = vst.msk [vmem:[#allocation2 + $0x100] sm:$0xff] %vm1631, %v2541
      %2586 = vst.msk [vmem:[#allocation2 + $0x108] sm:$0xff] %vm1631, %v2542
      %2587 = vst.msk [vmem:[#allocation2 + $0x110] sm:$0xff] %vm1631, %v2543
      %2588 = vst.msk [vmem:[#allocation2 + $0x118] sm:$0xff] %vm1631, %v2544
      %2589 = vst.msk [vmem:[#allocation2 + $0x120] sm:$0xff] %vm1631, %v2545
      %2590 = vst.msk [vmem:[#allocation2 + $0x128] sm:$0xff] %vm1631, %v2546
      %2591 = vst.msk [vmem:[#allocation2 + $0x130] sm:$0xff] %vm1631, %v2547
      %2592 = vst.msk [vmem:[#allocation2 + $0x138] sm:$0xff] %vm1631, %v2548
      %v2593 = vld [vmem:[#allocation2 + $0xd] sm:$0xff]
      %v2594 = vld [vmem:[#allocation2 + $0x15] sm:$0xff]
      %v2595 = vld [vmem:[#allocation2 + $0x1d] sm:$0xff]
      %v2596 = vld [vmem:[#allocation2 + $0x25] sm:$0xff]
      %v2597 = vld [vmem:[#allocation2 + $0x2d] sm:$0xff]
      %v2598 = vld [vmem:[#allocation2 + $0x35] sm:$0xff]
      %v2599 = vld [vmem:[#allocation2 + $0x3d] sm:$0xff]
      %v2600 = vld [vmem:[#allocation2 + $0x45] sm:$0xff]
      %v2601 = vld [vmem:[#allocation2 + $0x4d] sm:$0xff]
      %v2602 = vld [vmem:[#allocation2 + $0x55] sm:$0xff]
      %v2603 = vld [vmem:[#allocation2 + $0x5d] sm:$0xff]
      %v2604 = vld [vmem:[#allocation2 + $0x65] sm:$0xff]
      %v2605 = vld [vmem:[#allocation2 + $0x6d] sm:$0xff]
      %v2606 = vld [vmem:[#allocation2 + $0x75] sm:$0xff]
      %v2607 = vld [vmem:[#allocation2 + $0x7d] sm:$0xff]
      %v2608 = vld [vmem:[#allocation2 + $0x85] sm:$0xff]
      %v2609 = vld [vmem:[#allocation2 + $0x8d] sm:$0xff]
      %v2610 = vld [vmem:[#allocation2 + $0x95] sm:$0xff]
      %v2611 = vld [vmem:[#allocation2 + $0x9d] sm:$0xff]
      %v2612 = vld [vmem:[#allocation2 + $0xa5] sm:$0xff]
      %v2613 = vld [vmem:[#allocation2 + $0xad] sm:$0xff]
      %v2614 = vld [vmem:[#allocation2 + $0xb5] sm:$0xff]
      %v2615 = vld [vmem:[#allocation2 + $0xbd] sm:$0xff]
      %v2616 = vld [vmem:[#allocation2 + $0xc5] sm:$0xff]
      %v2617 = vld [vmem:[#allocation2 + $0xcd] sm:$0xff]
      %v2618 = vld [vmem:[#allocation2 + $0xd5] sm:$0xff]
      %v2619 = vld [vmem:[#allocation2 + $0xdd] sm:$0xff]
      %v2620 = vld [vmem:[#allocation2 + $0xe5] sm:$0xff]
      %v2621 = vld [vmem:[#allocation2 + $0xed] sm:$0xff]
      %v2622 = vld [vmem:[#allocation2 + $0xf5] sm:$0xff]
      %v2623 = vld [vmem:[#allocation2 + $0xfd] sm:$0xff]
      %v2624 = vld [vmem:[#allocation2 + $0x105] sm:$0xff]
      %v2625 = vld [vmem:[#allocation2 + $0x10d] sm:$0xff]
      %v2626 = vld [vmem:[#allocation2 + $0x115] sm:$0xff]
      %v2627 = vld [vmem:[#allocation2 + $0x11d] sm:$0xff]
      %v2628 = vld [vmem:[#allocation2 + $0x125] sm:$0xff]
      %v2629 = vld [vmem:[#allocation2 + $0xe] sm:$0xff]
      %v2630 = vld [vmem:[#allocation2 + $0x16] sm:$0xff]
      %v2631 = vld [vmem:[#allocation2 + $0x1e] sm:$0xff]
      %v2632 = vld [vmem:[#allocation2 + $0x26] sm:$0xff]
      %v2633 = vld [vmem:[#allocation2 + $0x2e] sm:$0xff]
      %v2634 = vld [vmem:[#allocation2 + $0x36] sm:$0xff]
      %v2635 = vld [vmem:[#allocation2 + $0x3e] sm:$0xff]
      %v2636 = vld [vmem:[#allocation2 + $0x46] sm:$0xff]
      %v2637 = vld [vmem:[#allocation2 + $0x4e] sm:$0xff]
      %v2638 = vld [vmem:[#allocation2 + $0x56] sm:$0xff]
      %v2639 = vld [vmem:[#allocation2 + $0x5e] sm:$0xff]
      %v2640 = vld [vmem:[#allocation2 + $0x66] sm:$0xff]
      %v2641 = vld [vmem:[#allocation2 + $0x6e] sm:$0xff]
      %v2642 = vld [vmem:[#allocation2 + $0x76] sm:$0xff]
      %v2643 = vld [vmem:[#allocation2 + $0x7e] sm:$0xff]
      %v2644 = vld [vmem:[#allocation2 + $0x86] sm:$0xff]
      %v2645 = vld [vmem:[#allocation2 + $0x8e] sm:$0xff]
      %v2646 = vld [vmem:[#allocation2 + $0x96] sm:$0xff]
      %v2647 = vld [vmem:[#allocation2 + $0x9e] sm:$0xff]
      %v2648 = vld [vmem:[#allocation2 + $0xa6] sm:$0xff]
      %v2649 = vld [vmem:[#allocation2 + $0xae] sm:$0xff]
      %v2650 = vld [vmem:[#allocation2 + $0xb6] sm:$0xff]
      %v2651 = vld [vmem:[#allocation2 + $0xbe] sm:$0xff]
      %v2652 = vld [vmem:[#allocation2 + $0xc6] sm:$0xff]
      %v2653 = vld [vmem:[#allocation2 + $0xce] sm:$0xff]
      %v2654 = vld [vmem:[#allocation2 + $0xd6] sm:$0xff]
      %v2655 = vld [vmem:[#allocation2 + $0xde] sm:$0xff]
      %v2656 = vld [vmem:[#allocation2 + $0xe6] sm:$0xff]
      %v2657 = vld [vmem:[#allocation2 + $0xee] sm:$0xff]
      %v2658 = vld [vmem:[#allocation2 + $0xf6] sm:$0xff]
      %v2659 = vld [vmem:[#allocation2 + $0xfe] sm:$0xff]
      %v2660 = vld [vmem:[#allocation2 + $0x106] sm:$0xff]
      %v2661 = vld [vmem:[#allocation2 + $0x10e] sm:$0xff]
      %v2662 = vld [vmem:[#allocation2 + $0x116] sm:$0xff]
      %v2663 = vld [vmem:[#allocation2 + $0x11e] sm:$0xff]
      %v2664 = vld [vmem:[#allocation2 + $0x126] sm:$0xff]
      %v2665 = vld [vmem:[#allocation2 + $0xf] sm:$0xff]
      %v2666 = vld [vmem:[#allocation2 + $0x17] sm:$0xff]
      %v2667 = vld [vmem:[#allocation2 + $0x1f] sm:$0xff]
      %v2668 = vld [vmem:[#allocation2 + $0x27] sm:$0xff]
      %v2669 = vld [vmem:[#allocation2 + $0x2f] sm:$0xff]
      %v2670 = vld [vmem:[#allocation2 + $0x37] sm:$0xff]
      %v2671 = vld [vmem:[#allocation2 + $0x3f] sm:$0xff]
      %v2672 = vld [vmem:[#allocation2 + $0x47] sm:$0xff]
      %v2673 = vld [vmem:[#allocation2 + $0x4f] sm:$0xff]
      %v2674 = vld [vmem:[#allocation2 + $0x57] sm:$0xff]
      %v2675 = vld [vmem:[#allocation2 + $0x5f] sm:$0xff]
      %v2676 = vld [vmem:[#allocation2 + $0x67] sm:$0xff]
      %v2677 = vld [vmem:[#allocation2 + $0x6f] sm:$0xff]
      %v2678 = vld [vmem:[#allocation2 + $0x77] sm:$0xff]
      %v2679 = vld [vmem:[#allocation2 + $0x7f] sm:$0xff]
      %v2680 = vld [vmem:[#allocation2 + $0x87] sm:$0xff]
      %v2681 = vld [vmem:[#allocation2 + $0x8f] sm:$0xff]
      %v2682 = vld [vmem:[#allocation2 + $0x97] sm:$0xff]
      %v2683 = vld [vmem:[#allocation2 + $0x9f] sm:$0xff]
      %v2684 = vld [vmem:[#allocation2 + $0xa7] sm:$0xff]
      %v2685 = vld [vmem:[#allocation2 + $0xaf] sm:$0xff]
      %v2686 = vld [vmem:[#allocation2 + $0xb7] sm:$0xff]
      %v2687 = vld [vmem:[#allocation2 + $0xbf] sm:$0xff]
      %v2688 = vld [vmem:[#allocation2 + $0xc7] sm:$0xff]
      %v2689 = vld [vmem:[#allocation2 + $0xcf] sm:$0xff]
      %v2690 = vld [vmem:[#allocation2 + $0xd7] sm:$0xff]
      %v2691 = vld [vmem:[#allocation2 + $0xdf] sm:$0xff]
      %v2692 = vld [vmem:[#allocation2 + $0xe7] sm:$0xff]
      %v2693 = vld [vmem:[#allocation2 + $0xef] sm:$0xff]
      %v2694 = vld [vmem:[#allocation2 + $0xf7] sm:$0xff]
      %v2695 = vld [vmem:[#allocation2 + $0xff] sm:$0xff]
      %v2696 = vld [vmem:[#allocation2 + $0x107] sm:$0xff]
      %v2697 = vld [vmem:[#allocation2 + $0x10f] sm:$0xff]
      %v2698 = vld [vmem:[#allocation2 + $0x117] sm:$0xff]
      %v2699 = vld [vmem:[#allocation2 + $0x11f] sm:$0xff]
      %v2700 = vld [vmem:[#allocation2 + $0x127] sm:$0xff]
      %v2701 = vld [vmem:[#allocation2 + $0x12f] sm:$0xff]
      %v2702 = vld [vmem:[#allocation2 + $0x137] sm:$0xff]
      %v2703 = vld [vmem:[#allocation2 + $0x20] sm:$0xff]
      %v2704 = vld [vmem:[#allocation2 + $0x28] sm:$0xff]
      %v2705 = vld [vmem:[#allocation2 + $0x30] sm:$0xff]
      %v2706 = vld [vmem:[#allocation2 + $0x38] sm:$0xff]
      %v2707 = vld [vmem:[#allocation2 + $0x40] sm:$0xff]
      %v2708 = vld [vmem:[#allocation2 + $0x48] sm:$0xff]
      %v2709 = vld [vmem:[#allocation2 + $0x50] sm:$0xff]
      %v2710 = vld [vmem:[#allocation2 + $0x58] sm:$0xff]
      %v2711 = vld [vmem:[#allocation2 + $0x60] sm:$0xff]
      %v2712 = vld [vmem:[#allocation2 + $0x68] sm:$0xff]
      %v2713 = vld [vmem:[#allocation2 + $0x70] sm:$0xff]
      %v2714 = vld [vmem:[#allocation2 + $0x78] sm:$0xff]
      %v2715 = vld [vmem:[#allocation2 + $0x80] sm:$0xff]
      %v2716 = vld [vmem:[#allocation2 + $0x88] sm:$0xff]
      %v2717 = vld [vmem:[#allocation2 + $0x90] sm:$0xff]
      %v2718 = vld [vmem:[#allocation2 + $0x98] sm:$0xff]
      %v2719 = vld [vmem:[#allocation2 + $0xa0] sm:$0xff]
      %v2720 = vld [vmem:[#allocation2 + $0xa8] sm:$0xff]
      %v2721 = vld [vmem:[#allocation2 + $0xb0] sm:$0xff]
      %v2722 = vld [vmem:[#allocation2 + $0xb8] sm:$0xff]
      %v2723 = vld [vmem:[#allocation2 + $0xc0] sm:$0xff]
      %v2724 = vld [vmem:[#allocation2 + $0xc8] sm:$0xff]
      %v2725 = vld [vmem:[#allocation2 + $0xd0] sm:$0xff]
      %v2726 = vld [vmem:[#allocation2 + $0xd8] sm:$0xff]
      %v2727 = vld [vmem:[#allocation2 + $0xe0] sm:$0xff]
      %v2728 = vld [vmem:[#allocation2 + $0xe8] sm:$0xff]
      %v2729 = vld [vmem:[#allocation2 + $0xf0] sm:$0xff]
      %v2730 = vld [vmem:[#allocation2 + $0xf8] sm:$0xff]
      %v2731 = vld [vmem:[#allocation2 + $0x100] sm:$0xff]
      %v2732 = vld [vmem:[#allocation2 + $0x108] sm:$0xff]
      %v2733 = vld [vmem:[#allocation2 + $0x110] sm:$0xff]
      %v2734 = vld [vmem:[#allocation2 + $0x118] sm:$0xff]
      %v2735 = vld [vmem:[#allocation2 + $0x120] sm:$0xff]
      %v2736 = vld [vmem:[#allocation2 + $0x128] sm:$0xff]
      %v2737 = vld [vmem:[#allocation2 + $0x130] sm:$0xff]
      %v2738 = vld [vmem:[#allocation2 + $0x138] sm:$0xff]
      %v2739 = vld [vmem:[#allocation2 + $0x21] sm:$0xff]
      %v2740 = vld [vmem:[#allocation2 + $0x29] sm:$0xff]
      %v2741 = vld [vmem:[#allocation2 + $0x31] sm:$0xff]
      %v2742 = vld [vmem:[#allocation2 + $0x39] sm:$0xff]
      %v2743 = vld [vmem:[#allocation2 + $0x41] sm:$0xff]
      %v2744 = vld [vmem:[#allocation2 + $0x49] sm:$0xff]
      %v2745 = vld [vmem:[#allocation2 + $0x51] sm:$0xff]
      %v2746 = vld [vmem:[#allocation2 + $0x59] sm:$0xff]
      %v2747 = vld [vmem:[#allocation2 + $0x61] sm:$0xff]
      %v2748 = vld [vmem:[#allocation2 + $0x69] sm:$0xff]
      %v2749 = vld [vmem:[#allocation2 + $0x71] sm:$0xff]
      %v2750 = vld [vmem:[#allocation2 + $0x79] sm:$0xff]
      %v2751 = vld [vmem:[#allocation2 + $0x81] sm:$0xff]
      %v2752 = vld [vmem:[#allocation2 + $0x89] sm:$0xff]
      %v2753 = vld [vmem:[#allocation2 + $0x91] sm:$0xff]
      %v2754 = vld [vmem:[#allocation2 + $0x99] sm:$0xff]
      %v2755 = vld [vmem:[#allocation2 + $0xa1] sm:$0xff]
      %v2756 = vld [vmem:[#allocation2 + $0xa9] sm:$0xff]
      %v2757 = vld [vmem:[#allocation2 + $0xb1] sm:$0xff]
      %v2758 = vld [vmem:[#allocation2 + $0xb9] sm:$0xff]
      %v2759 = vld [vmem:[#allocation2 + $0xc1] sm:$0xff]
      %v2760 = vld [vmem:[#allocation2 + $0xc9] sm:$0xff]
      %v2761 = vld [vmem:[#allocation2 + $0xd1] sm:$0xff]
      %v2762 = vld [vmem:[#allocation2 + $0xd9] sm:$0xff]
      %v2763 = vld [vmem:[#allocation2 + $0xe1] sm:$0xff]
      %v2764 = vld [vmem:[#allocation2 + $0xe9] sm:$0xff]
      %v2765 = vld [vmem:[#allocation2 + $0xf1] sm:$0xff]
      %v2766 = vld [vmem:[#allocation2 + $0xf9] sm:$0xff]
      %v2767 = vld [vmem:[#allocation2 + $0x101] sm:$0xff]
      %v2768 = vld [vmem:[#allocation2 + $0x109] sm:$0xff]
      %v2769 = vld [vmem:[#allocation2 + $0x111] sm:$0xff]
      %v2770 = vld [vmem:[#allocation2 + $0x119] sm:$0xff]
      %v2771 = vld [vmem:[#allocation2 + $0x121] sm:$0xff]
      %v2772 = vld [vmem:[#allocation2 + $0x129] sm:$0xff]
      %v2773 = vld [vmem:[#allocation2 + $0x131] sm:$0xff]
      %v2774 = vld [vmem:[#allocation2 + $0x139] sm:$0xff]
      %v2775 = vld [vmem:[#allocation2 + $0x141] sm:$0xff]
      %v2776 = vld [vmem:[#allocation2 + $0x149] sm:$0xff]
      %v2777 = vld [vmem:[#allocation2 + $0x32] sm:$0xff]
      %v2778 = vld [vmem:[#allocation2 + $0x3a] sm:$0xff]
      %v2779 = vld [vmem:[#allocation2 + $0x42] sm:$0xff]
      %v2780 = vld [vmem:[#allocation2 + $0x4a] sm:$0xff]
      %v2781 = vld [vmem:[#allocation2 + $0x52] sm:$0xff]
      %v2782 = vld [vmem:[#allocation2 + $0x5a] sm:$0xff]
      %v2783 = vld [vmem:[#allocation2 + $0x62] sm:$0xff]
      %v2784 = vld [vmem:[#allocation2 + $0x6a] sm:$0xff]
      %v2785 = vld [vmem:[#allocation2 + $0x72] sm:$0xff]
      %v2786 = vld [vmem:[#allocation2 + $0x7a] sm:$0xff]
      %v2787 = vld [vmem:[#allocation2 + $0x82] sm:$0xff]
      %v2788 = vld [vmem:[#allocation2 + $0x8a] sm:$0xff]
      %v2789 = vld [vmem:[#allocation2 + $0x92] sm:$0xff]
      %v2790 = vld [vmem:[#allocation2 + $0x9a] sm:$0xff]
      %v2791 = vld [vmem:[#allocation2 + $0xa2] sm:$0xff]
      %v2792 = vld [vmem:[#allocation2 + $0xaa] sm:$0xff]
      %v2793 = vld [vmem:[#allocation2 + $0xb2] sm:$0xff]
      %v2794 = vld [vmem:[#allocation2 + $0xba] sm:$0xff]
      %v2795 = vld [vmem:[#allocation2 + $0xc2] sm:$0xff]
      %v2796 = vld [vmem:[#allocation2 + $0xca] sm:$0xff]
      %v2797 = vld [vmem:[#allocation2 + $0xd2] sm:$0xff]
      %v2798 = vld [vmem:[#allocation2 + $0xda] sm:$0xff]
      %v2799 = vld [vmem:[#allocation2 + $0xe2] sm:$0xff]
      %v2800 = vld [vmem:[#allocation2 + $0xea] sm:$0xff]
      %v2801 = vld [vmem:[#allocation2 + $0xf2] sm:$0xff]
      %v2802 = vld [vmem:[#allocation2 + $0xfa] sm:$0xff]
      %v2803 = vld [vmem:[#allocation2 + $0x102] sm:$0xff]
      %v2804 = vld [vmem:[#allocation2 + $0x10a] sm:$0xff]
      %v2805 = vld [vmem:[#allocation2 + $0x112] sm:$0xff]
      %v2806 = vld [vmem:[#allocation2 + $0x11a] sm:$0xff]
      %v2807 = vld [vmem:[#allocation2 + $0x122] sm:$0xff]
      %v2808 = vld [vmem:[#allocation2 + $0x12a] sm:$0xff]
      %v2809 = vld [vmem:[#allocation2 + $0x132] sm:$0xff]
      %v2810 = vld [vmem:[#allocation2 + $0x13a] sm:$0xff]
      %v2811 = vld [vmem:[#allocation2 + $0x142] sm:$0xff]
      %v2812 = vld [vmem:[#allocation2 + $0x14a] sm:$0xff]
      %v2813 = vld [vmem:[#allocation2 + $0x33] sm:$0xff]
      %v2814 = vld [vmem:[#allocation2 + $0x3b] sm:$0xff]
      %v2815 = vld [vmem:[#allocation2 + $0x43] sm:$0xff]
      %v2816 = vld [vmem:[#allocation2 + $0x4b] sm:$0xff]
      %v2817 = vld [vmem:[#allocation2 + $0x53] sm:$0xff]
      %v2818 = vld [vmem:[#allocation2 + $0x5b] sm:$0xff]
      %v2819 = vld [vmem:[#allocation2 + $0x63] sm:$0xff]
      %v2820 = vld [vmem:[#allocation2 + $0x6b] sm:$0xff]
      %v2821 = vld [vmem:[#allocation2 + $0x73] sm:$0xff]
      %v2822 = vld [vmem:[#allocation2 + $0x7b] sm:$0xff]
      %v2823 = vld [vmem:[#allocation2 + $0x83] sm:$0xff]
      %v2824 = vld [vmem:[#allocation2 + $0x8b] sm:$0xff]
      %v2825 = vld [vmem:[#allocation2 + $0x93] sm:$0xff]
      %v2826 = vld [vmem:[#allocation2 + $0x9b] sm:$0xff]
      %v2827 = vld [vmem:[#allocation2 + $0xa3] sm:$0xff]
      %v2828 = vld [vmem:[#allocation2 + $0xab] sm:$0xff]
      %v2829 = vld [vmem:[#allocation2 + $0xb3] sm:$0xff]
      %v2830 = vld [vmem:[#allocation2 + $0xbb] sm:$0xff]
      %v2831 = vld [vmem:[#allocation2 + $0xc3] sm:$0xff]
      %v2832 = vld [vmem:[#allocation2 + $0xcb] sm:$0xff]
      %v2833 = vld [vmem:[#allocation2 + $0xd3] sm:$0xff]
      %v2834 = vld [vmem:[#allocation2 + $0xdb] sm:$0xff]
      %v2835 = vld [vmem:[#allocation2 + $0xe3] sm:$0xff]
      %v2836 = vld [vmem:[#allocation2 + $0xeb] sm:$0xff]
      %v2837 = vld [vmem:[#allocation2 + $0xf3] sm:$0xff]
      %v2838 = vld [vmem:[#allocation2 + $0xfb] sm:$0xff]
      %v2839 = vld [vmem:[#allocation2 + $0x103] sm:$0xff]
      %v2840 = vld [vmem:[#allocation2 + $0x10b] sm:$0xff]
      %v2841 = vld [vmem:[#allocation2 + $0x113] sm:$0xff]
      %v2842 = vld [vmem:[#allocation2 + $0x11b] sm:$0xff]
      %v2843 = vld [vmem:[#allocation2 + $0x123] sm:$0xff]
      %v2844 = vld [vmem:[#allocation2 + $0x12b] sm:$0xff]
      %v2845 = vld [vmem:[#allocation2 + $0x133] sm:$0xff]
      %v2846 = vld [vmem:[#allocation2 + $0x13b] sm:$0xff]
      %v2847 = vld [vmem:[#allocation2 + $0x143] sm:$0xff]
      %v2848 = vld [vmem:[#allocation2 + $0x14b] sm:$0xff]
      %2885 = vrot.lane.b32.xlu0 %v2629, 8
      %v2886 = vpop.permute.xlu0 %2885
      %2887 = vrot.lane.b32.xlu0 %v2630, 8
      %v2888 = vpop.permute.xlu0 %2887
      %2889 = vrot.lane.b32.xlu0 %v2631, 8
      %v2890 = vpop.permute.xlu0 %2889
      %2891 = vrot.lane.b32.xlu0 %v2632, 8
      %v2892 = vpop.permute.xlu0 %2891
      %2893 = vrot.lane.b32.xlu0 %v2633, 8
      %v2894 = vpop.permute.xlu0 %2893
      %2895 = vrot.lane.b32.xlu0 %v2634, 8
      %v2896 = vpop.permute.xlu0 %2895
      %2897 = vrot.lane.b32.xlu0 %v2635, 8
      %v2898 = vpop.permute.xlu0 %2897
      %2899 = vrot.lane.b32.xlu0 %v2636, 8
      %v2900 = vpop.permute.xlu0 %2899
      %2901 = vrot.lane.b32.xlu0 %v2637, 8
      %v2902 = vpop.permute.xlu0 %2901
      %2903 = vrot.lane.b32.xlu0 %v2638, 8
      %v2904 = vpop.permute.xlu0 %2903
      %2905 = vrot.lane.b32.xlu0 %v2639, 8
      %v2906 = vpop.permute.xlu0 %2905
      %2907 = vrot.lane.b32.xlu0 %v2640, 8
      %v2908 = vpop.permute.xlu0 %2907
      %2909 = vrot.lane.b32.xlu0 %v2641, 8
      %v2910 = vpop.permute.xlu0 %2909
      %2911 = vrot.lane.b32.xlu0 %v2642, 8
      %v2912 = vpop.permute.xlu0 %2911
      %2913 = vrot.lane.b32.xlu0 %v2643, 8
      %v2914 = vpop.permute.xlu0 %2913
      %2915 = vrot.lane.b32.xlu0 %v2644, 8
      %v2916 = vpop.permute.xlu0 %2915
      %2917 = vrot.lane.b32.xlu0 %v2645, 8
      %v2918 = vpop.permute.xlu0 %2917
      %2919 = vrot.lane.b32.xlu0 %v2646, 8
      %v2920 = vpop.permute.xlu0 %2919
      %2921 = vrot.lane.b32.xlu0 %v2647, 8
      %v2922 = vpop.permute.xlu0 %2921
      %2923 = vrot.lane.b32.xlu0 %v2648, 8
      %v2924 = vpop.permute.xlu0 %2923
      %2925 = vrot.lane.b32.xlu0 %v2649, 8
      %v2926 = vpop.permute.xlu0 %2925
      %2927 = vrot.lane.b32.xlu0 %v2650, 8
      %v2928 = vpop.permute.xlu0 %2927
      %2929 = vrot.lane.b32.xlu0 %v2651, 8
      %v2930 = vpop.permute.xlu0 %2929
      %2931 = vrot.lane.b32.xlu0 %v2652, 8
      %v2932 = vpop.permute.xlu0 %2931
      %2933 = vrot.lane.b32.xlu0 %v2653, 8
      %v2934 = vpop.permute.xlu0 %2933
      %2935 = vrot.lane.b32.xlu0 %v2654, 8
      %v2936 = vpop.permute.xlu0 %2935
      %2937 = vrot.lane.b32.xlu0 %v2655, 8
      %v2938 = vpop.permute.xlu0 %2937
      %2939 = vrot.lane.b32.xlu0 %v2656, 8
      %v2940 = vpop.permute.xlu0 %2939
      %2941 = vrot.lane.b32.xlu0 %v2657, 8
      %v2942 = vpop.permute.xlu0 %2941
      %2943 = vrot.lane.b32.xlu0 %v2658, 8
      %v2944 = vpop.permute.xlu0 %2943
      %2945 = vrot.lane.b32.xlu0 %v2659, 8
      %v2946 = vpop.permute.xlu0 %2945
      %2947 = vrot.lane.b32.xlu0 %v2660, 8
      %v2948 = vpop.permute.xlu0 %2947
      %2949 = vrot.lane.b32.xlu0 %v2661, 8
      %v2950 = vpop.permute.xlu0 %2949
      %2951 = vrot.lane.b32.xlu0 %v2662, 8
      %v2952 = vpop.permute.xlu0 %2951
      %2953 = vrot.lane.b32.xlu0 %v2663, 8
      %v2954 = vpop.permute.xlu0 %2953
      %2955 = vrot.lane.b32.xlu0 %v2664, 8
      %v2956 = vpop.permute.xlu0 %2955
      %3029 = vrot.lane.b32.xlu0 %v2665, 16
      %v3030 = vpop.permute.xlu0 %3029
      %3031 = vrot.lane.b32.xlu0 %v2666, 16
      %v3032 = vpop.permute.xlu0 %3031
      %3033 = vrot.lane.b32.xlu0 %v2667, 16
      %v3034 = vpop.permute.xlu0 %3033
      %3035 = vrot.lane.b32.xlu0 %v2668, 16
      %v3036 = vpop.permute.xlu0 %3035
      %3037 = vrot.lane.b32.xlu0 %v2669, 16
      %v3038 = vpop.permute.xlu0 %3037
      %3039 = vrot.lane.b32.xlu0 %v2670, 16
      %v3040 = vpop.permute.xlu0 %3039
      %3041 = vrot.lane.b32.xlu0 %v2671, 16
      %v3042 = vpop.permute.xlu0 %3041
      %3043 = vrot.lane.b32.xlu0 %v2672, 16
      %v3044 = vpop.permute.xlu0 %3043
      %3045 = vrot.lane.b32.xlu0 %v2673, 16
      %v3046 = vpop.permute.xlu0 %3045
      %3047 = vrot.lane.b32.xlu0 %v2674, 16
      %v3048 = vpop.permute.xlu0 %3047
      %3049 = vrot.lane.b32.xlu0 %v2675, 16
      %v3050 = vpop.permute.xlu0 %3049
      %3051 = vrot.lane.b32.xlu0 %v2676, 16
      %v3052 = vpop.permute.xlu0 %3051
      %3053 = vrot.lane.b32.xlu0 %v2677, 16
      %v3054 = vpop.permute.xlu0 %3053
      %3055 = vrot.lane.b32.xlu0 %v2678, 16
      %v3056 = vpop.permute.xlu0 %3055
      %3057 = vrot.lane.b32.xlu0 %v2679, 16
      %v3058 = vpop.permute.xlu0 %3057
      %3059 = vrot.lane.b32.xlu0 %v2680, 16
      %v3060 = vpop.permute.xlu0 %3059
      %3061 = vrot.lane.b32.xlu0 %v2681, 16
      %v3062 = vpop.permute.xlu0 %3061
      %3063 = vrot.lane.b32.xlu0 %v2682, 16
      %v3064 = vpop.permute.xlu0 %3063
      %3065 = vrot.lane.b32.xlu0 %v2683, 16
      %v3066 = vpop.permute.xlu0 %3065
      %3067 = vrot.lane.b32.xlu0 %v2684, 16
      %v3068 = vpop.permute.xlu0 %3067
      %3069 = vrot.lane.b32.xlu0 %v2685, 16
      %v3070 = vpop.permute.xlu0 %3069
      %3071 = vrot.lane.b32.xlu0 %v2686, 16
      %v3072 = vpop.permute.xlu0 %3071
      %3073 = vrot.lane.b32.xlu0 %v2687, 16
      %v3074 = vpop.permute.xlu0 %3073
      %3075 = vrot.lane.b32.xlu0 %v2688, 16
      %v3076 = vpop.permute.xlu0 %3075
      %3077 = vrot.lane.b32.xlu0 %v2689, 16
      %v3078 = vpop.permute.xlu0 %3077
      %3079 = vrot.lane.b32.xlu0 %v2690, 16
      %v3080 = vpop.permute.xlu0 %3079
      %3081 = vrot.lane.b32.xlu0 %v2691, 16
      %v3082 = vpop.permute.xlu0 %3081
      %3083 = vrot.lane.b32.xlu0 %v2692, 16
      %v3084 = vpop.permute.xlu0 %3083
      %3085 = vrot.lane.b32.xlu0 %v2693, 16
      %v3086 = vpop.permute.xlu0 %3085
      %3087 = vrot.lane.b32.xlu0 %v2694, 16
      %v3088 = vpop.permute.xlu0 %3087
      %3089 = vrot.lane.b32.xlu0 %v2695, 16
      %v3090 = vpop.permute.xlu0 %3089
      %3091 = vrot.lane.b32.xlu0 %v2696, 16
      %v3092 = vpop.permute.xlu0 %3091
      %3093 = vrot.lane.b32.xlu0 %v2697, 16
      %v3094 = vpop.permute.xlu0 %3093
      %3095 = vrot.lane.b32.xlu0 %v2698, 16
      %v3096 = vpop.permute.xlu0 %3095
      %3097 = vrot.lane.b32.xlu0 %v2699, 16
      %v3098 = vpop.permute.xlu0 %3097
      %3099 = vrot.lane.b32.xlu0 %v2700, 16
      %v3100 = vpop.permute.xlu0 %3099
      %3139 = vrot.lane.b32.xlu0 %v2667, 24
      %v3140 = vpop.permute.xlu0 %3139
      %3141 = vrot.lane.b32.xlu0 %v2668, 24
      %v3142 = vpop.permute.xlu0 %3141
      %3143 = vrot.lane.b32.xlu0 %v2669, 24
      %v3144 = vpop.permute.xlu0 %3143
      %3145 = vrot.lane.b32.xlu0 %v2670, 24
      %v3146 = vpop.permute.xlu0 %3145
      %3147 = vrot.lane.b32.xlu0 %v2671, 24
      %v3148 = vpop.permute.xlu0 %3147
      %3149 = vrot.lane.b32.xlu0 %v2672, 24
      %v3150 = vpop.permute.xlu0 %3149
      %3151 = vrot.lane.b32.xlu0 %v2673, 24
      %v3152 = vpop.permute.xlu0 %3151
      %3153 = vrot.lane.b32.xlu0 %v2674, 24
      %v3154 = vpop.permute.xlu0 %3153
      %3155 = vrot.lane.b32.xlu0 %v2675, 24
      %v3156 = vpop.permute.xlu0 %3155
      %3157 = vrot.lane.b32.xlu0 %v2676, 24
      %v3158 = vpop.permute.xlu0 %3157
      %3159 = vrot.lane.b32.xlu0 %v2677, 24
      %v3160 = vpop.permute.xlu0 %3159
      %3161 = vrot.lane.b32.xlu0 %v2678, 24
      %v3162 = vpop.permute.xlu0 %3161
      %3163 = vrot.lane.b32.xlu0 %v2679, 24
      %v3164 = vpop.permute.xlu0 %3163
      %3165 = vrot.lane.b32.xlu0 %v2680, 24
      %v3166 = vpop.permute.xlu0 %3165
      %3167 = vrot.lane.b32.xlu0 %v2681, 24
      %v3168 = vpop.permute.xlu0 %3167
      %3169 = vrot.lane.b32.xlu0 %v2682, 24
      %v3170 = vpop.permute.xlu0 %3169
      %3171 = vrot.lane.b32.xlu0 %v2683, 24
      %v3172 = vpop.permute.xlu0 %3171
      %3173 = vrot.lane.b32.xlu0 %v2684, 24
      %v3174 = vpop.permute.xlu0 %3173
      %3175 = vrot.lane.b32.xlu0 %v2685, 24
      %v3176 = vpop.permute.xlu0 %3175
      %3177 = vrot.lane.b32.xlu0 %v2686, 24
      %v3178 = vpop.permute.xlu0 %3177
      %3179 = vrot.lane.b32.xlu0 %v2687, 24
      %v3180 = vpop.permute.xlu0 %3179
      %3181 = vrot.lane.b32.xlu0 %v2688, 24
      %v3182 = vpop.permute.xlu0 %3181
      %3183 = vrot.lane.b32.xlu0 %v2689, 24
      %v3184 = vpop.permute.xlu0 %3183
      %3185 = vrot.lane.b32.xlu0 %v2690, 24
      %v3186 = vpop.permute.xlu0 %3185
      %3187 = vrot.lane.b32.xlu0 %v2691, 24
      %v3188 = vpop.permute.xlu0 %3187
      %3189 = vrot.lane.b32.xlu0 %v2692, 24
      %v3190 = vpop.permute.xlu0 %3189
      %3191 = vrot.lane.b32.xlu0 %v2693, 24
      %v3192 = vpop.permute.xlu0 %3191
      %3193 = vrot.lane.b32.xlu0 %v2694, 24
      %v3194 = vpop.permute.xlu0 %3193
      %3195 = vrot.lane.b32.xlu0 %v2695, 24
      %v3196 = vpop.permute.xlu0 %3195
      %3197 = vrot.lane.b32.xlu0 %v2696, 24
      %v3198 = vpop.permute.xlu0 %3197
      %3199 = vrot.lane.b32.xlu0 %v2697, 24
      %v3200 = vpop.permute.xlu0 %3199
      %3201 = vrot.lane.b32.xlu0 %v2698, 24
      %v3202 = vpop.permute.xlu0 %3201
      %3203 = vrot.lane.b32.xlu0 %v2699, 24
      %v3204 = vpop.permute.xlu0 %3203
      %3205 = vrot.lane.b32.xlu0 %v2700, 24
      %v3206 = vpop.permute.xlu0 %3205
      %3207 = vrot.lane.b32.xlu0 %v2701, 24
      %v3208 = vpop.permute.xlu0 %3207
      %3209 = vrot.lane.b32.xlu0 %v2702, 24
      %v3210 = vpop.permute.xlu0 %3209
      %3283 = vrot.lane.b32.xlu0 %v2703, 32
      %v3284 = vpop.permute.xlu0 %3283
      %3285 = vrot.lane.b32.xlu0 %v2704, 32
      %v3286 = vpop.permute.xlu0 %3285
      %3287 = vrot.lane.b32.xlu0 %v2705, 32
      %v3288 = vpop.permute.xlu0 %3287
      %3289 = vrot.lane.b32.xlu0 %v2706, 32
      %v3290 = vpop.permute.xlu0 %3289
      %3291 = vrot.lane.b32.xlu0 %v2707, 32
      %v3292 = vpop.permute.xlu0 %3291
      %3293 = vrot.lane.b32.xlu0 %v2708, 32
      %v3294 = vpop.permute.xlu0 %3293
      %3295 = vrot.lane.b32.xlu0 %v2709, 32
      %v3296 = vpop.permute.xlu0 %3295
      %3297 = vrot.lane.b32.xlu0 %v2710, 32
      %v3298 = vpop.permute.xlu0 %3297
      %3299 = vrot.lane.b32.xlu0 %v2711, 32
      %v3300 = vpop.permute.xlu0 %3299
      %3301 = vrot.lane.b32.xlu0 %v2712, 32
      %v3302 = vpop.permute.xlu0 %3301
      %3303 = vrot.lane.b32.xlu0 %v2713, 32
      %v3304 = vpop.permute.xlu0 %3303
      %3305 = vrot.lane.b32.xlu0 %v2714, 32
      %v3306 = vpop.permute.xlu0 %3305
      %3307 = vrot.lane.b32.xlu0 %v2715, 32
      %v3308 = vpop.permute.xlu0 %3307
      %3309 = vrot.lane.b32.xlu0 %v2716, 32
      %v3310 = vpop.permute.xlu0 %3309
      %3311 = vrot.lane.b32.xlu0 %v2717, 32
      %v3312 = vpop.permute.xlu0 %3311
      %3313 = vrot.lane.b32.xlu0 %v2718, 32
      %v3314 = vpop.permute.xlu0 %3313
      %3315 = vrot.lane.b32.xlu0 %v2719, 32
      %v3316 = vpop.permute.xlu0 %3315
      %3317 = vrot.lane.b32.xlu0 %v2720, 32
      %v3318 = vpop.permute.xlu0 %3317
      %3319 = vrot.lane.b32.xlu0 %v2721, 32
      %v3320 = vpop.permute.xlu0 %3319
      %3321 = vrot.lane.b32.xlu0 %v2722, 32
      %v3322 = vpop.permute.xlu0 %3321
      %3323 = vrot.lane.b32.xlu0 %v2723, 32
      %v3324 = vpop.permute.xlu0 %3323
      %3325 = vrot.lane.b32.xlu0 %v2724, 32
      %v3326 = vpop.permute.xlu0 %3325
      %3327 = vrot.lane.b32.xlu0 %v2725, 32
      %v3328 = vpop.permute.xlu0 %3327
      %3329 = vrot.lane.b32.xlu0 %v2726, 32
      %v3330 = vpop.permute.xlu0 %3329
      %3331 = vrot.lane.b32.xlu0 %v2727, 32
      %v3332 = vpop.permute.xlu0 %3331
      %3333 = vrot.lane.b32.xlu0 %v2728, 32
      %v3334 = vpop.permute.xlu0 %3333
      %3335 = vrot.lane.b32.xlu0 %v2729, 32
      %v3336 = vpop.permute.xlu0 %3335
      %3337 = vrot.lane.b32.xlu0 %v2730, 32
      %v3338 = vpop.permute.xlu0 %3337
      %3339 = vrot.lane.b32.xlu0 %v2731, 32
      %v3340 = vpop.permute.xlu0 %3339
      %3341 = vrot.lane.b32.xlu0 %v2732, 32
      %v3342 = vpop.permute.xlu0 %3341
      %3343 = vrot.lane.b32.xlu0 %v2733, 32
      %v3344 = vpop.permute.xlu0 %3343
      %3345 = vrot.lane.b32.xlu0 %v2734, 32
      %v3346 = vpop.permute.xlu0 %3345
      %3347 = vrot.lane.b32.xlu0 %v2735, 32
      %v3348 = vpop.permute.xlu0 %3347
      %3349 = vrot.lane.b32.xlu0 %v2736, 32
      %v3350 = vpop.permute.xlu0 %3349
      %3351 = vrot.lane.b32.xlu0 %v2737, 32
      %v3352 = vpop.permute.xlu0 %3351
      %3353 = vrot.lane.b32.xlu0 %v2738, 32
      %v3354 = vpop.permute.xlu0 %3353
      %3427 = vrot.lane.b32.xlu0 %v2739, 40
      %v3428 = vpop.permute.xlu0 %3427
      %3429 = vrot.lane.b32.xlu0 %v2740, 40
      %v3430 = vpop.permute.xlu0 %3429
      %3431 = vrot.lane.b32.xlu0 %v2741, 40
      %v3432 = vpop.permute.xlu0 %3431
      %3433 = vrot.lane.b32.xlu0 %v2742, 40
      %v3434 = vpop.permute.xlu0 %3433
      %3435 = vrot.lane.b32.xlu0 %v2743, 40
      %v3436 = vpop.permute.xlu0 %3435
      %3437 = vrot.lane.b32.xlu0 %v2744, 40
      %v3438 = vpop.permute.xlu0 %3437
      %3439 = vrot.lane.b32.xlu0 %v2745, 40
      %v3440 = vpop.permute.xlu0 %3439
      %3441 = vrot.lane.b32.xlu0 %v2746, 40
      %v3442 = vpop.permute.xlu0 %3441
      %3443 = vrot.lane.b32.xlu0 %v2747, 40
      %v3444 = vpop.permute.xlu0 %3443
      %3445 = vrot.lane.b32.xlu0 %v2748, 40
      %v3446 = vpop.permute.xlu0 %3445
      %3447 = vrot.lane.b32.xlu0 %v2749, 40
      %v3448 = vpop.permute.xlu0 %3447
      %3449 = vrot.lane.b32.xlu0 %v2750, 40
      %v3450 = vpop.permute.xlu0 %3449
      %3451 = vrot.lane.b32.xlu0 %v2751, 40
      %v3452 = vpop.permute.xlu0 %3451
      %3453 = vrot.lane.b32.xlu0 %v2752, 40
      %v3454 = vpop.permute.xlu0 %3453
      %3455 = vrot.lane.b32.xlu0 %v2753, 40
      %v3456 = vpop.permute.xlu0 %3455
      %3457 = vrot.lane.b32.xlu0 %v2754, 40
      %v3458 = vpop.permute.xlu0 %3457
      %3459 = vrot.lane.b32.xlu0 %v2755, 40
      %v3460 = vpop.permute.xlu0 %3459
      %3461 = vrot.lane.b32.xlu0 %v2756, 40
      %v3462 = vpop.permute.xlu0 %3461
      %3463 = vrot.lane.b32.xlu0 %v2757, 40
      %v3464 = vpop.permute.xlu0 %3463
      %3465 = vrot.lane.b32.xlu0 %v2758, 40
      %v3466 = vpop.permute.xlu0 %3465
      %3467 = vrot.lane.b32.xlu0 %v2759, 40
      %v3468 = vpop.permute.xlu0 %3467
      %3469 = vrot.lane.b32.xlu0 %v2760, 40
      %v3470 = vpop.permute.xlu0 %3469
      %3471 = vrot.lane.b32.xlu0 %v2761, 40
      %v3472 = vpop.permute.xlu0 %3471
      %3473 = vrot.lane.b32.xlu0 %v2762, 40
      %v3474 = vpop.permute.xlu0 %3473
      %3475 = vrot.lane.b32.xlu0 %v2763, 40
      %v3476 = vpop.permute.xlu0 %3475
      %3477 = vrot.lane.b32.xlu0 %v2764, 40
      %v3478 = vpop.permute.xlu0 %3477
      %3479 = vrot.lane.b32.xlu0 %v2765, 40
      %v3480 = vpop.permute.xlu0 %3479
      %3481 = vrot.lane.b32.xlu0 %v2766, 40
      %v3482 = vpop.permute.xlu0 %3481
      %3483 = vrot.lane.b32.xlu0 %v2767, 40
      %v3484 = vpop.permute.xlu0 %3483
      %3485 = vrot.lane.b32.xlu0 %v2768, 40
      %v3486 = vpop.permute.xlu0 %3485
      %3487 = vrot.lane.b32.xlu0 %v2769, 40
      %v3488 = vpop.permute.xlu0 %3487
      %3489 = vrot.lane.b32.xlu0 %v2770, 40
      %v3490 = vpop.permute.xlu0 %3489
      %3491 = vrot.lane.b32.xlu0 %v2771, 40
      %v3492 = vpop.permute.xlu0 %3491
      %3493 = vrot.lane.b32.xlu0 %v2772, 40
      %v3494 = vpop.permute.xlu0 %3493
      %3495 = vrot.lane.b32.xlu0 %v2773, 40
      %v3496 = vpop.permute.xlu0 %3495
      %3497 = vrot.lane.b32.xlu0 %v2774, 40
      %v3498 = vpop.permute.xlu0 %3497
      %3537 = vrot.lane.b32.xlu0 %v2741, 48
      %v3538 = vpop.permute.xlu0 %3537
      %3539 = vrot.lane.b32.xlu0 %v2742, 48
      %v3540 = vpop.permute.xlu0 %3539
      %3541 = vrot.lane.b32.xlu0 %v2743, 48
      %v3542 = vpop.permute.xlu0 %3541
      %3543 = vrot.lane.b32.xlu0 %v2744, 48
      %v3544 = vpop.permute.xlu0 %3543
      %3545 = vrot.lane.b32.xlu0 %v2745, 48
      %v3546 = vpop.permute.xlu0 %3545
      %3547 = vrot.lane.b32.xlu0 %v2746, 48
      %v3548 = vpop.permute.xlu0 %3547
      %3549 = vrot.lane.b32.xlu0 %v2747, 48
      %v3550 = vpop.permute.xlu0 %3549
      %3551 = vrot.lane.b32.xlu0 %v2748, 48
      %v3552 = vpop.permute.xlu0 %3551
      %3553 = vrot.lane.b32.xlu0 %v2749, 48
      %v3554 = vpop.permute.xlu0 %3553
      %3555 = vrot.lane.b32.xlu0 %v2750, 48
      %v3556 = vpop.permute.xlu0 %3555
      %3557 = vrot.lane.b32.xlu0 %v2751, 48
      %v3558 = vpop.permute.xlu0 %3557
      %3559 = vrot.lane.b32.xlu0 %v2752, 48
      %v3560 = vpop.permute.xlu0 %3559
      %3561 = vrot.lane.b32.xlu0 %v2753, 48
      %v3562 = vpop.permute.xlu0 %3561
      %3563 = vrot.lane.b32.xlu0 %v2754, 48
      %v3564 = vpop.permute.xlu0 %3563
      %3565 = vrot.lane.b32.xlu0 %v2755, 48
      %v3566 = vpop.permute.xlu0 %3565
      %3567 = vrot.lane.b32.xlu0 %v2756, 48
      %v3568 = vpop.permute.xlu0 %3567
      %3569 = vrot.lane.b32.xlu0 %v2757, 48
      %v3570 = vpop.permute.xlu0 %3569
      %3571 = vrot.lane.b32.xlu0 %v2758, 48
      %v3572 = vpop.permute.xlu0 %3571
      %3573 = vrot.lane.b32.xlu0 %v2759, 48
      %v3574 = vpop.permute.xlu0 %3573
      %3575 = vrot.lane.b32.xlu0 %v2760, 48
      %v3576 = vpop.permute.xlu0 %3575
      %3577 = vrot.lane.b32.xlu0 %v2761, 48
      %v3578 = vpop.permute.xlu0 %3577
      %3579 = vrot.lane.b32.xlu0 %v2762, 48
      %v3580 = vpop.permute.xlu0 %3579
      %3581 = vrot.lane.b32.xlu0 %v2763, 48
      %v3582 = vpop.permute.xlu0 %3581
      %3583 = vrot.lane.b32.xlu0 %v2764, 48
      %v3584 = vpop.permute.xlu0 %3583
      %3585 = vrot.lane.b32.xlu0 %v2765, 48
      %v3586 = vpop.permute.xlu0 %3585
      %3587 = vrot.lane.b32.xlu0 %v2766, 48
      %v3588 = vpop.permute.xlu0 %3587
      %3589 = vrot.lane.b32.xlu0 %v2767, 48
      %v3590 = vpop.permute.xlu0 %3589
      %3591 = vrot.lane.b32.xlu0 %v2768, 48
      %v3592 = vpop.permute.xlu0 %3591
      %3593 = vrot.lane.b32.xlu0 %v2769, 48
      %v3594 = vpop.permute.xlu0 %3593
      %3595 = vrot.lane.b32.xlu0 %v2770, 48
      %v3596 = vpop.permute.xlu0 %3595
      %3597 = vrot.lane.b32.xlu0 %v2771, 48
      %v3598 = vpop.permute.xlu0 %3597
      %3599 = vrot.lane.b32.xlu0 %v2772, 48
      %v3600 = vpop.permute.xlu0 %3599
      %3601 = vrot.lane.b32.xlu0 %v2773, 48
      %v3602 = vpop.permute.xlu0 %3601
      %3603 = vrot.lane.b32.xlu0 %v2774, 48
      %v3604 = vpop.permute.xlu0 %3603
      %3605 = vrot.lane.b32.xlu0 %v2775, 48
      %v3606 = vpop.permute.xlu0 %3605
      %3607 = vrot.lane.b32.xlu0 %v2776, 48
      %v3608 = vpop.permute.xlu0 %3607
      %3681 = vrot.lane.b32.xlu0 %v2777, 56
      %v3682 = vpop.permute.xlu0 %3681
      %3683 = vrot.lane.b32.xlu0 %v2778, 56
      %v3684 = vpop.permute.xlu0 %3683
      %3685 = vrot.lane.b32.xlu0 %v2779, 56
      %v3686 = vpop.permute.xlu0 %3685
      %3687 = vrot.lane.b32.xlu0 %v2780, 56
      %v3688 = vpop.permute.xlu0 %3687
      %3689 = vrot.lane.b32.xlu0 %v2781, 56
      %v3690 = vpop.permute.xlu0 %3689
      %3691 = vrot.lane.b32.xlu0 %v2782, 56
      %v3692 = vpop.permute.xlu0 %3691
      %3693 = vrot.lane.b32.xlu0 %v2783, 56
      %v3694 = vpop.permute.xlu0 %3693
      %3695 = vrot.lane.b32.xlu0 %v2784, 56
      %v3696 = vpop.permute.xlu0 %3695
      %3697 = vrot.lane.b32.xlu0 %v2785, 56
      %v3698 = vpop.permute.xlu0 %3697
      %3699 = vrot.lane.b32.xlu0 %v2786, 56
      %v3700 = vpop.permute.xlu0 %3699
      %3701 = vrot.lane.b32.xlu0 %v2787, 56
      %v3702 = vpop.permute.xlu0 %3701
      %3703 = vrot.lane.b32.xlu0 %v2788, 56
      %v3704 = vpop.permute.xlu0 %3703
      %3705 = vrot.lane.b32.xlu0 %v2789, 56
      %v3706 = vpop.permute.xlu0 %3705
      %3707 = vrot.lane.b32.xlu0 %v2790, 56
      %v3708 = vpop.permute.xlu0 %3707
      %3709 = vrot.lane.b32.xlu0 %v2791, 56
      %v3710 = vpop.permute.xlu0 %3709
      %3711 = vrot.lane.b32.xlu0 %v2792, 56
      %v3712 = vpop.permute.xlu0 %3711
      %3713 = vrot.lane.b32.xlu0 %v2793, 56
      %v3714 = vpop.permute.xlu0 %3713
      %3715 = vrot.lane.b32.xlu0 %v2794, 56
      %v3716 = vpop.permute.xlu0 %3715
      %3717 = vrot.lane.b32.xlu0 %v2795, 56
      %v3718 = vpop.permute.xlu0 %3717
      %3719 = vrot.lane.b32.xlu0 %v2796, 56
      %v3720 = vpop.permute.xlu0 %3719
      %3721 = vrot.lane.b32.xlu0 %v2797, 56
      %v3722 = vpop.permute.xlu0 %3721
      %3723 = vrot.lane.b32.xlu0 %v2798, 56
      %v3724 = vpop.permute.xlu0 %3723
      %3725 = vrot.lane.b32.xlu0 %v2799, 56
      %v3726 = vpop.permute.xlu0 %3725
      %3727 = vrot.lane.b32.xlu0 %v2800, 56
      %v3728 = vpop.permute.xlu0 %3727
      %3729 = vrot.lane.b32.xlu0 %v2801, 56
      %v3730 = vpop.permute.xlu0 %3729
      %3731 = vrot.lane.b32.xlu0 %v2802, 56
      %v3732 = vpop.permute.xlu0 %3731
      %3733 = vrot.lane.b32.xlu0 %v2803, 56
      %v3734 = vpop.permute.xlu0 %3733
      %3735 = vrot.lane.b32.xlu0 %v2804, 56
      %v3736 = vpop.permute.xlu0 %3735
      %3737 = vrot.lane.b32.xlu0 %v2805, 56
      %v3738 = vpop.permute.xlu0 %3737
      %3739 = vrot.lane.b32.xlu0 %v2806, 56
      %v3740 = vpop.permute.xlu0 %3739
      %3741 = vrot.lane.b32.xlu0 %v2807, 56
      %v3742 = vpop.permute.xlu0 %3741
      %3743 = vrot.lane.b32.xlu0 %v2808, 56
      %v3744 = vpop.permute.xlu0 %3743
      %3745 = vrot.lane.b32.xlu0 %v2809, 56
      %v3746 = vpop.permute.xlu0 %3745
      %3747 = vrot.lane.b32.xlu0 %v2810, 56
      %v3748 = vpop.permute.xlu0 %3747
      %3749 = vrot.lane.b32.xlu0 %v2811, 56
      %v3750 = vpop.permute.xlu0 %3749
      %3751 = vrot.lane.b32.xlu0 %v2812, 56
      %v3752 = vpop.permute.xlu0 %3751
      %3825 = vrot.lane.b32.xlu0 %v2813, 64
      %v3826 = vpop.permute.xlu0 %3825
      %3827 = vrot.lane.b32.xlu0 %v2814, 64
      %v3828 = vpop.permute.xlu0 %3827
      %3829 = vrot.lane.b32.xlu0 %v2815, 64
      %v3830 = vpop.permute.xlu0 %3829
      %3831 = vrot.lane.b32.xlu0 %v2816, 64
      %v3832 = vpop.permute.xlu0 %3831
      %3833 = vrot.lane.b32.xlu0 %v2817, 64
      %v3834 = vpop.permute.xlu0 %3833
      %3835 = vrot.lane.b32.xlu0 %v2818, 64
      %v3836 = vpop.permute.xlu0 %3835
      %3837 = vrot.lane.b32.xlu0 %v2819, 64
      %v3838 = vpop.permute.xlu0 %3837
      %3839 = vrot.lane.b32.xlu0 %v2820, 64
      %v3840 = vpop.permute.xlu0 %3839
      %3841 = vrot.lane.b32.xlu0 %v2821, 64
      %v3842 = vpop.permute.xlu0 %3841
      %3843 = vrot.lane.b32.xlu0 %v2822, 64
      %v3844 = vpop.permute.xlu0 %3843
      %3845 = vrot.lane.b32.xlu0 %v2823, 64
      %v3846 = vpop.permute.xlu0 %3845
      %3847 = vrot.lane.b32.xlu0 %v2824, 64
      %v3848 = vpop.permute.xlu0 %3847
      %3849 = vrot.lane.b32.xlu0 %v2825, 64
      %v3850 = vpop.permute.xlu0 %3849
      %3851 = vrot.lane.b32.xlu0 %v2826, 64
      %v3852 = vpop.permute.xlu0 %3851
      %3853 = vrot.lane.b32.xlu0 %v2827, 64
      %v3854 = vpop.permute.xlu0 %3853
      %3855 = vrot.lane.b32.xlu0 %v2828, 64
      %v3856 = vpop.permute.xlu0 %3855
      %3857 = vrot.lane.b32.xlu0 %v2829, 64
      %v3858 = vpop.permute.xlu0 %3857
      %3859 = vrot.lane.b32.xlu0 %v2830, 64
      %v3860 = vpop.permute.xlu0 %3859
      %3861 = vrot.lane.b32.xlu0 %v2831, 64
      %v3862 = vpop.permute.xlu0 %3861
      %3863 = vrot.lane.b32.xlu0 %v2832, 64
      %v3864 = vpop.permute.xlu0 %3863
      %3865 = vrot.lane.b32.xlu0 %v2833, 64
      %v3866 = vpop.permute.xlu0 %3865
      %3867 = vrot.lane.b32.xlu0 %v2834, 64
      %v3868 = vpop.permute.xlu0 %3867
      %3869 = vrot.lane.b32.xlu0 %v2835, 64
      %v3870 = vpop.permute.xlu0 %3869
      %3871 = vrot.lane.b32.xlu0 %v2836, 64
      %v3872 = vpop.permute.xlu0 %3871
      %3873 = vrot.lane.b32.xlu0 %v2837, 64
      %v3874 = vpop.permute.xlu0 %3873
      %3875 = vrot.lane.b32.xlu0 %v2838, 64
      %v3876 = vpop.permute.xlu0 %3875
      %3877 = vrot.lane.b32.xlu0 %v2839, 64
      %v3878 = vpop.permute.xlu0 %3877
      %3879 = vrot.lane.b32.xlu0 %v2840, 64
      %v3880 = vpop.permute.xlu0 %3879
      %3881 = vrot.lane.b32.xlu0 %v2841, 64
      %v3882 = vpop.permute.xlu0 %3881
      %3883 = vrot.lane.b32.xlu0 %v2842, 64
      %v3884 = vpop.permute.xlu0 %3883
      %3885 = vrot.lane.b32.xlu0 %v2843, 64
      %v3886 = vpop.permute.xlu0 %3885
      %3887 = vrot.lane.b32.xlu0 %v2844, 64
      %v3888 = vpop.permute.xlu0 %3887
      %3889 = vrot.lane.b32.xlu0 %v2845, 64
      %v3890 = vpop.permute.xlu0 %3889
      %3891 = vrot.lane.b32.xlu0 %v2846, 64
      %v3892 = vpop.permute.xlu0 %3891
      %3893 = vrot.lane.b32.xlu0 %v2847, 64
      %v3894 = vpop.permute.xlu0 %3893
      %3895 = vrot.lane.b32.xlu0 %v2848, 64
      %v3896 = vpop.permute.xlu0 %3895
      %v3933 = vsel %vm1631, %v2593, %v2886
      %v3934 = vsel %vm1631, %v2594, %v2888
      %v3935 = vsel %vm1631, %v2595, %v2890
      %v3936 = vsel %vm1631, %v2596, %v2892
      %v3937 = vsel %vm1631, %v2597, %v2894
      %v3938 = vsel %vm1631, %v2598, %v2896
      %v3939 = vsel %vm1631, %v2599, %v2898
      %v3940 = vsel %vm1631, %v2600, %v2900
      %v3941 = vsel %vm1631, %v2601, %v2902
      %v3942 = vsel %vm1631, %v2602, %v2904
      %v3943 = vsel %vm1631, %v2603, %v2906
      %v3944 = vsel %vm1631, %v2604, %v2908
      %v3945 = vsel %vm1631, %v2605, %v2910
      %v3946 = vsel %vm1631, %v2606, %v2912
      %v3947 = vsel %vm1631, %v2607, %v2914
      %v3948 = vsel %vm1631, %v2608, %v2916
      %v3949 = vsel %vm1631, %v2609, %v2918
      %v3950 = vsel %vm1631, %v2610, %v2920
      %v3951 = vsel %vm1631, %v2611, %v2922
      %v3952 = vsel %vm1631, %v2612, %v2924
      %v3953 = vsel %vm1631, %v2613, %v2926
      %v3954 = vsel %vm1631, %v2614, %v2928
      %v3955 = vsel %vm1631, %v2615, %v2930
      %v3956 = vsel %vm1631, %v2616, %v2932
      %v3957 = vsel %vm1631, %v2617, %v2934
      %v3958 = vsel %vm1631, %v2618, %v2936
      %v3959 = vsel %vm1631, %v2619, %v2938
      %v3960 = vsel %vm1631, %v2620, %v2940
      %v3961 = vsel %vm1631, %v2621, %v2942
      %v3962 = vsel %vm1631, %v2622, %v2944
      %v3963 = vsel %vm1631, %v2623, %v2946
      %v3964 = vsel %vm1631, %v2624, %v2948
      %v3965 = vsel %vm1631, %v2625, %v2950
      %v3966 = vsel %vm1631, %v2626, %v2952
      %v3967 = vsel %vm1631, %v2627, %v2954
      %v3968 = vsel %vm1631, %v2628, %v2956
      %v3969 = vsel %vm1668, %v3933, %v3030
      %v3970 = vsel %vm1668, %v3934, %v3032
      %v3971 = vsel %vm1668, %v3935, %v3034
      %v3972 = vsel %vm1668, %v3936, %v3036
      %v3973 = vsel %vm1668, %v3937, %v3038
      %v3974 = vsel %vm1668, %v3938, %v3040
      %v3975 = vsel %vm1668, %v3939, %v3042
      %v3976 = vsel %vm1668, %v3940, %v3044
      %v3977 = vsel %vm1668, %v3941, %v3046
      %v3978 = vsel %vm1668, %v3942, %v3048
      %v3979 = vsel %vm1668, %v3943, %v3050
      %v3980 = vsel %vm1668, %v3944, %v3052
      %v3981 = vsel %vm1668, %v3945, %v3054
      %v3982 = vsel %vm1668, %v3946, %v3056
      %v3983 = vsel %vm1668, %v3947, %v3058
      %v3984 = vsel %vm1668, %v3948, %v3060
      %v3985 = vsel %vm1668, %v3949, %v3062
      %v3986 = vsel %vm1668, %v3950, %v3064
      %v3987 = vsel %vm1668, %v3951, %v3066
      %v3988 = vsel %vm1668, %v3952, %v3068
      %v3989 = vsel %vm1668, %v3953, %v3070
      %v3990 = vsel %vm1668, %v3954, %v3072
      %v3991 = vsel %vm1668, %v3955, %v3074
      %v3992 = vsel %vm1668, %v3956, %v3076
      %v3993 = vsel %vm1668, %v3957, %v3078
      %v3994 = vsel %vm1668, %v3958, %v3080
      %v3995 = vsel %vm1668, %v3959, %v3082
      %v3996 = vsel %vm1668, %v3960, %v3084
      %v3997 = vsel %vm1668, %v3961, %v3086
      %v3998 = vsel %vm1668, %v3962, %v3088
      %v3999 = vsel %vm1668, %v3963, %v3090
      %v4000 = vsel %vm1668, %v3964, %v3092
      %v4001 = vsel %vm1668, %v3965, %v3094
      %v4002 = vsel %vm1668, %v3966, %v3096
      %v4003 = vsel %vm1668, %v3967, %v3098
      %v4004 = vsel %vm1668, %v3968, %v3100
      %v4005 = vsel %vm1705, %v3969, %v3140
      %v4006 = vsel %vm1705, %v3970, %v3142
      %v4007 = vsel %vm1705, %v3971, %v3144
      %v4008 = vsel %vm1705, %v3972, %v3146
      %v4009 = vsel %vm1705, %v3973, %v3148
      %v4010 = vsel %vm1705, %v3974, %v3150
      %v4011 = vsel %vm1705, %v3975, %v3152
      %v4012 = vsel %vm1705, %v3976, %v3154
      %v4013 = vsel %vm1705, %v3977, %v3156
      %v4014 = vsel %vm1705, %v3978, %v3158
      %v4015 = vsel %vm1705, %v3979, %v3160
      %v4016 = vsel %vm1705, %v3980, %v3162
      %v4017 = vsel %vm1705, %v3981, %v3164
      %v4018 = vsel %vm1705, %v3982, %v3166
      %v4019 = vsel %vm1705, %v3983, %v3168
      %v4020 = vsel %vm1705, %v3984, %v3170
      %v4021 = vsel %vm1705, %v3985, %v3172
      %v4022 = vsel %vm1705, %v3986, %v3174
      %v4023 = vsel %vm1705, %v3987, %v3176
      %v4024 = vsel %vm1705, %v3988, %v3178
      %v4025 = vsel %vm1705, %v3989, %v3180
      %v4026 = vsel %vm1705, %v3990, %v3182
      %v4027 = vsel %vm1705, %v3991, %v3184
      %v4028 = vsel %vm1705, %v3992, %v3186
      %v4029 = vsel %vm1705, %v3993, %v3188
      %v4030 = vsel %vm1705, %v3994, %v3190
      %v4031 = vsel %vm1705, %v3995, %v3192
      %v4032 = vsel %vm1705, %v3996, %v3194
      %v4033 = vsel %vm1705, %v3997, %v3196
      %v4034 = vsel %vm1705, %v3998, %v3198
      %v4035 = vsel %vm1705, %v3999, %v3200
      %v4036 = vsel %vm1705, %v4000, %v3202
      %v4037 = vsel %vm1705, %v4001, %v3204
      %v4038 = vsel %vm1705, %v4002, %v3206
      %v4039 = vsel %vm1705, %v4003, %v3208
      %v4040 = vsel %vm1705, %v4004, %v3210
      %v4041 = vsel %vm1742, %v4005, %v3284
      %v4042 = vsel %vm1742, %v4006, %v3286
      %v4043 = vsel %vm1742, %v4007, %v3288
      %v4044 = vsel %vm1742, %v4008, %v3290
      %v4045 = vsel %vm1742, %v4009, %v3292
      %v4046 = vsel %vm1742, %v4010, %v3294
      %v4047 = vsel %vm1742, %v4011, %v3296
      %v4048 = vsel %vm1742, %v4012, %v3298
      %v4049 = vsel %vm1742, %v4013, %v3300
      %v4050 = vsel %vm1742, %v4014, %v3302
      %v4051 = vsel %vm1742, %v4015, %v3304
      %v4052 = vsel %vm1742, %v4016, %v3306
      %v4053 = vsel %vm1742, %v4017, %v3308
      %v4054 = vsel %vm1742, %v4018, %v3310
      %v4055 = vsel %vm1742, %v4019, %v3312
      %v4056 = vsel %vm1742, %v4020, %v3314
      %v4057 = vsel %vm1742, %v4021, %v3316
      %v4058 = vsel %vm1742, %v4022, %v3318
      %v4059 = vsel %vm1742, %v4023, %v3320
      %v4060 = vsel %vm1742, %v4024, %v3322
      %v4061 = vsel %vm1742, %v4025, %v3324
      %v4062 = vsel %vm1742, %v4026, %v3326
      %v4063 = vsel %vm1742, %v4027, %v3328
      %v4064 = vsel %vm1742, %v4028, %v3330
      %v4065 = vsel %vm1742, %v4029, %v3332
      %v4066 = vsel %vm1742, %v4030, %v3334
      %v4067 = vsel %vm1742, %v4031, %v3336
      %v4068 = vsel %vm1742, %v4032, %v3338
      %v4069 = vsel %vm1742, %v4033, %v3340
      %v4070 = vsel %vm1742, %v4034, %v3342
      %v4071 = vsel %vm1742, %v4035, %v3344
      %v4072 = vsel %vm1742, %v4036, %v3346
      %v4073 = vsel %vm1742, %v4037, %v3348
      %v4074 = vsel %vm1742, %v4038, %v3350
      %v4075 = vsel %vm1742, %v4039, %v3352
      %v4076 = vsel %vm1742, %v4040, %v3354
      %v4077 = vsel %vm1779, %v4041, %v3428
      %v4078 = vsel %vm1779, %v4042, %v3430
      %v4079 = vsel %vm1779, %v4043, %v3432
      %v4080 = vsel %vm1779, %v4044, %v3434
      %v4081 = vsel %vm1779, %v4045, %v3436
      %v4082 = vsel %vm1779, %v4046, %v3438
      %v4083 = vsel %vm1779, %v4047, %v3440
      %v4084 = vsel %vm1779, %v4048, %v3442
      %v4085 = vsel %vm1779, %v4049, %v3444
      %v4086 = vsel %vm1779, %v4050, %v3446
      %v4087 = vsel %vm1779, %v4051, %v3448
      %v4088 = vsel %vm1779, %v4052, %v3450
      %v4089 = vsel %vm1779, %v4053, %v3452
      %v4090 = vsel %vm1779, %v4054, %v3454
      %v4091 = vsel %vm1779, %v4055, %v3456
      %v4092 = vsel %vm1779, %v4056, %v3458
      %v4093 = vsel %vm1779, %v4057, %v3460
      %v4094 = vsel %vm1779, %v4058, %v3462
      %v4095 = vsel %vm1779, %v4059, %v3464
      %v4096 = vsel %vm1779, %v4060, %v3466
      %v4097 = vsel %vm1779, %v4061, %v3468
      %v4098 = vsel %vm1779, %v4062, %v3470
      %v4099 = vsel %vm1779, %v4063, %v3472
      %v4100 = vsel %vm1779, %v4064, %v3474
      %v4101 = vsel %vm1779, %v4065, %v3476
      %v4102 = vsel %vm1779, %v4066, %v3478
      %v4103 = vsel %vm1779, %v4067, %v3480
      %v4104 = vsel %vm1779, %v4068, %v3482
      %v4105 = vsel %vm1779, %v4069, %v3484
      %v4106 = vsel %vm1779, %v4070, %v3486
      %v4107 = vsel %vm1779, %v4071, %v3488
      %v4108 = vsel %vm1779, %v4072, %v3490
      %v4109 = vsel %vm1779, %v4073, %v3492
      %v4110 = vsel %vm1779, %v4074, %v3494
      %v4111 = vsel %vm1779, %v4075, %v3496
      %v4112 = vsel %vm1779, %v4076, %v3498
      %v4113 = vsel %vm1816, %v4077, %v3538
      %v4114 = vsel %vm1816, %v4078, %v3540
      %v4115 = vsel %vm1816, %v4079, %v3542
      %v4116 = vsel %vm1816, %v4080, %v3544
      %v4117 = vsel %vm1816, %v4081, %v3546
      %v4118 = vsel %vm1816, %v4082, %v3548
      %v4119 = vsel %vm1816, %v4083, %v3550
      %v4120 = vsel %vm1816, %v4084, %v3552
      %v4121 = vsel %vm1816, %v4085, %v3554
      %v4122 = vsel %vm1816, %v4086, %v3556
      %v4123 = vsel %vm1816, %v4087, %v3558
      %v4124 = vsel %vm1816, %v4088, %v3560
      %v4125 = vsel %vm1816, %v4089, %v3562
      %v4126 = vsel %vm1816, %v4090, %v3564
      %v4127 = vsel %vm1816, %v4091, %v3566
      %v4128 = vsel %vm1816, %v4092, %v3568
      %v4129 = vsel %vm1816, %v4093, %v3570
      %v4130 = vsel %vm1816, %v4094, %v3572
      %v4131 = vsel %vm1816, %v4095, %v3574
      %v4132 = vsel %vm1816, %v4096, %v3576
      %v4133 = vsel %vm1816, %v4097, %v3578
      %v4134 = vsel %vm1816, %v4098, %v3580
      %v4135 = vsel %vm1816, %v4099, %v3582
      %v4136 = vsel %vm1816, %v4100, %v3584
      %v4137 = vsel %vm1816, %v4101, %v3586
      %v4138 = vsel %vm1816, %v4102, %v3588
      %v4139 = vsel %vm1816, %v4103, %v3590
      %v4140 = vsel %vm1816, %v4104, %v3592
      %v4141 = vsel %vm1816, %v4105, %v3594
      %v4142 = vsel %vm1816, %v4106, %v3596
      %v4143 = vsel %vm1816, %v4107, %v3598
      %v4144 = vsel %vm1816, %v4108, %v3600
      %v4145 = vsel %vm1816, %v4109, %v3602
      %v4146 = vsel %vm1816, %v4110, %v3604
      %v4147 = vsel %vm1816, %v4111, %v3606
      %v4148 = vsel %vm1816, %v4112, %v3608
      %v4149 = vsel %vm1853, %v4113, %v3682
      %v4150 = vsel %vm1853, %v4114, %v3684
      %v4151 = vsel %vm1853, %v4115, %v3686
      %v4152 = vsel %vm1853, %v4116, %v3688
      %v4153 = vsel %vm1853, %v4117, %v3690
      %v4154 = vsel %vm1853, %v4118, %v3692
      %v4155 = vsel %vm1853, %v4119, %v3694
      %v4156 = vsel %vm1853, %v4120, %v3696
      %v4157 = vsel %vm1853, %v4121, %v3698
      %v4158 = vsel %vm1853, %v4122, %v3700
      %v4159 = vsel %vm1853, %v4123, %v3702
      %v4160 = vsel %vm1853, %v4124, %v3704
      %v4161 = vsel %vm1853, %v4125, %v3706
      %v4162 = vsel %vm1853, %v4126, %v3708
      %v4163 = vsel %vm1853, %v4127, %v3710
      %v4164 = vsel %vm1853, %v4128, %v3712
      %v4165 = vsel %vm1853, %v4129, %v3714
      %v4166 = vsel %vm1853, %v4130, %v3716
      %v4167 = vsel %vm1853, %v4131, %v3718
      %v4168 = vsel %vm1853, %v4132, %v3720
      %v4169 = vsel %vm1853, %v4133, %v3722
      %v4170 = vsel %vm1853, %v4134, %v3724
      %v4171 = vsel %vm1853, %v4135, %v3726
      %v4172 = vsel %vm1853, %v4136, %v3728
      %v4173 = vsel %vm1853, %v4137, %v3730
      %v4174 = vsel %vm1853, %v4138, %v3732
      %v4175 = vsel %vm1853, %v4139, %v3734
      %v4176 = vsel %vm1853, %v4140, %v3736
      %v4177 = vsel %vm1853, %v4141, %v3738
      %v4178 = vsel %vm1853, %v4142, %v3740
      %v4179 = vsel %vm1853, %v4143, %v3742
      %v4180 = vsel %vm1853, %v4144, %v3744
      %v4181 = vsel %vm1853, %v4145, %v3746
      %v4182 = vsel %vm1853, %v4146, %v3748
      %v4183 = vsel %vm1853, %v4147, %v3750
      %v4184 = vsel %vm1853, %v4148, %v3752
      %v4185 = vsel %vm1890, %v4149, %v3826
      %v4186 = vsel %vm1890, %v4150, %v3828
      %v4187 = vsel %vm1890, %v4151, %v3830
      %v4188 = vsel %vm1890, %v4152, %v3832
      %v4189 = vsel %vm1890, %v4153, %v3834
      %v4190 = vsel %vm1890, %v4154, %v3836
      %v4191 = vsel %vm1890, %v4155, %v3838
      %v4192 = vsel %vm1890, %v4156, %v3840
      %v4193 = vsel %vm1890, %v4157, %v3842
      %v4194 = vsel %vm1890, %v4158, %v3844
      %v4195 = vsel %vm1890, %v4159, %v3846
      %v4196 = vsel %vm1890, %v4160, %v3848
      %v4197 = vsel %vm1890, %v4161, %v3850
      %v4198 = vsel %vm1890, %v4162, %v3852
      %v4199 = vsel %vm1890, %v4163, %v3854
      %v4200 = vsel %vm1890, %v4164, %v3856
      %v4201 = vsel %vm1890, %v4165, %v3858
      %v4202 = vsel %vm1890, %v4166, %v3860
      %v4203 = vsel %vm1890, %v4167, %v3862
      %v4204 = vsel %vm1890, %v4168, %v3864
      %v4205 = vsel %vm1890, %v4169, %v3866
      %v4206 = vsel %vm1890, %v4170, %v3868
      %v4207 = vsel %vm1890, %v4171, %v3870
      %v4208 = vsel %vm1890, %v4172, %v3872
      %v4209 = vsel %vm1890, %v4173, %v3874
      %v4210 = vsel %vm1890, %v4174, %v3876
      %v4211 = vsel %vm1890, %v4175, %v3878
      %v4212 = vsel %vm1890, %v4176, %v3880
      %v4213 = vsel %vm1890, %v4177, %v3882
      %v4214 = vsel %vm1890, %v4178, %v3884
      %v4215 = vsel %vm1890, %v4179, %v3886
      %v4216 = vsel %vm1890, %v4180, %v3888
      %v4217 = vsel %vm1890, %v4181, %v3890
      %v4218 = vsel %vm1890, %v4182, %v3892
      %v4219 = vsel %vm1890, %v4183, %v3894
      %v4220 = vsel %vm1890, %v4184, %v3896
      %v4221 = vld [vmem:[%s4] sm:$0xff]
      %v4222 = vld [vmem:[%s4 + $0x8] sm:$0xff]
      %v4223 = vld [vmem:[%s4 + $0x10] sm:$0xff]
      %v4224 = vld [vmem:[%s4 + $0x18] sm:$0xff]
      %v4225 = vld [vmem:[%s4 + $0x20] sm:$0xff]
      %v4226 = vld [vmem:[%s4 + $0x28] sm:$0xff]
      %v4227 = vld [vmem:[%s4 + $0x30] sm:$0xff]
      %v4228 = vld [vmem:[%s4 + $0x38] sm:$0xff]
      %v4229 = vld [vmem:[%s4 + $0x40] sm:$0xff]
      %v4230 = vld [vmem:[%s5] sm:$0x1]
      %v4232 = vlaneseq
      %v4233 = vshrl.u32 %v4232, 7
      %v4234 = vsub.s32 0, %v4233
      %v4235 = vrot.slane %v4230, %v4234
      %v4238 = vsel %vm1943, %v4185, 0
      %v4241 = vsel %vm1943, %v4186, 0
      %v4244 = vsel %vm1943, %v4187, 0
      %v4247 = vsel %vm1943, %v4188, 0
      %v4250 = vsel %vm1943, %v4189, 0
      %v4253 = vsel %vm1943, %v4190, 0
      %v4256 = vsel %vm1943, %v4191, 0
      %v4259 = vsel %vm1943, %v4192, 0
      %v4262 = vsel %vm1943, %v4193, 0
      %v4265 = vsel %vm1943, %v4194, 0
      %v4268 = vsel %vm1943, %v4195, 0
      %v4271 = vsel %vm1943, %v4196, 0
      %v4274 = vsel %vm1943, %v4197, 0
      %v4277 = vsel %vm1943, %v4198, 0
      %v4280 = vsel %vm1943, %v4199, 0
      %v4283 = vsel %vm1943, %v4200, 0
      %v4286 = vsel %vm1943, %v4201, 0
      %v4289 = vsel %vm1943, %v4202, 0
      %v4292 = vsel %vm1943, %v4203, 0
      %v4295 = vsel %vm1943, %v4204, 0
      %v4298 = vsel %vm1943, %v4205, 0
      %v4301 = vsel %vm1943, %v4206, 0
      %v4304 = vsel %vm1943, %v4207, 0
      %v4307 = vsel %vm1943, %v4208, 0
      %v4310 = vsel %vm1943, %v4209, 0
      %v4313 = vsel %vm1943, %v4210, 0
      %v4316 = vsel %vm1943, %v4211, 0
      %v4319 = vsel %vm1943, %v4212, 0
      %v4322 = vsel %vm1943, %v4213, 0
      %v4325 = vsel %vm1943, %v4214, 0
      %v4328 = vsel %vm1943, %v4215, 0
      %v4331 = vsel %vm1943, %v4216, 0
      %v4334 = vsel %vm1943, %v4217, 0
      %v4337 = vsel %vm1943, %v4218, 0
      %v4340 = vsel %vm1943, %v4219, 0
      %v4343 = vsel %vm1943, %v4220, 0
      %4345 = vmatprep.subr.mxu0 0.0
      %4346 = vmatpush1.msra.mxu0 0.0
      %4347 = vmatprep.subr.mxu0 0.0
      %4348 = vmatpush1.msra.mxu0 0.0
      %4349 = vmatprep.subr.mxu0 0.0
      %4350 = vmatpush1.msra.mxu0 0.0
      %4351 = vmatprep.subr.mxu0 0.0
      %4352 = vmatpush1.msra.mxu0 0.0
      %4353 = vmatprep.subr.mxu0 0.0
      %4354 = vmatpush1.msra.mxu0 0.0
      %4355 = vmatprep.subr.mxu0 0.0
      %4356 = vmatpush1.msra.mxu0 0.0
      %4357 = vmatprep.subr.mxu0 0.0
      %4358 = vmatpush1.msra.mxu0 0.0
      %4359 = vmatprep.subr.mxu0 0.0
      %4360 = vmatpush1.msra.mxu0 %v4229
      %4361 = vmatprep.subr.mxu0 0.0
      %4362 = vmatpush1.msra.mxu0 %v4228
      %4363 = vmatprep.subr.mxu0 0.0
      %4364 = vmatpush1.msra.mxu0 %v4227
      %4365 = vmatprep.subr.mxu0 0.0
      %4366 = vmatpush1.msra.mxu0 %v4226
      %4367 = vmatprep.subr.mxu0 0.0
      %4368 = vmatpush1.msra.mxu0 %v4225
      %4369 = vmatprep.subr.mxu0 0.0
      %4370 = vmatpush1.msra.mxu0 %v4224
      %4371 = vmatprep.subr.mxu0 0.0
      %4372 = vmatpush1.msra.mxu0 %v4223
      %4373 = vmatprep.subr.mxu0 0.0
      %4374 = vmatpush1.msra.mxu0 %v4222
      %4375 = vmatprep.subr.mxu0 0.0
      %4376 = vmatpush1.msra.mxu0 %v4221
      %4377 = vmatprep.subr.mxu0 0.0
      %4378 = vmatpush2.msra.mxu0 0.0
      %4379 = vmatprep.subr.mxu0 0.0
      %4380 = vmatpush2.msra.mxu0 0.0
      %4381 = vmatprep.subr.mxu0 0.0
      %4382 = vmatpush2.msra.mxu0 0.0
      %4383 = vmatprep.subr.mxu0 0.0
      %4384 = vmatpush2.msra.mxu0 0.0
      %4385 = vmatprep.subr.mxu0 0.0
      %4386 = vmatpush2.msra.mxu0 0.0
      %4387 = vmatprep.subr.mxu0 0.0
      %4388 = vmatpush2.msra.mxu0 0.0
      %4389 = vmatprep.subr.mxu0 0.0
      %4390 = vmatpush2.msra.mxu0 0.0
      %4391 = vmatprep.subr.mxu0 0.0
      %4392 = vmatpush2.msra.mxu0 0.0
      %4393 = vmatprep.subr.mxu0 0.0
      %4394 = vmatpush2.msra.mxu0 0.0
      %4395 = vmatprep.subr.mxu0 0.0
      %4396 = vmatpush2.msra.mxu0 0.0
      %4397 = vmatprep.subr.mxu0 0.0
      %4398 = vmatpush2.msra.mxu0 0.0
      %4399 = vmatprep.subr.mxu0 0.0
      %4400 = vmatpush2.msra.mxu0 0.0
      %4401 = vmatprep.subr.mxu0 0.0
      %4402 = vmatpush2.msra.mxu0 0.0
      %4403 = vmatprep.subr.mxu0 0.0
      %4404 = vmatpush2.msra.mxu0 0.0
      %4405 = vmatprep.subr.mxu0 0.0
      %4406 = vmatpush2.msra.mxu0 0.0
      %4407 = vmatprep.subr.mxu0 0.0
      %4408 = vmatpush2.msra.mxu0 0.0
      %4409 = vmatprep.mubr.f32.mxu0 0.0
      %4410 = vmatmul.mubr.f32.gmra.mxu0 %v4238
      %v4411 = vpop.f32.mrf.mxu0
      %v4412 = vadd.f32 %v4235, %v4411
      %v4413 = vpop.f32.mrf.mxu0
      %4414 = vmatprep.mubr.f32.mxu0 0.0
      %4415 = vmatmul.mubr.f32.gmra.mxu0 %v4241
      %v4416 = vpop.f32.mrf.mxu0
      %v4417 = vadd.f32 %v4235, %v4416
      %v4418 = vpop.f32.mrf.mxu0
      %4419 = vmatprep.mubr.f32.mxu0 0.0
      %4420 = vmatmul.mubr.f32.gmra.mxu0 %v4244
      %v4421 = vpop.f32.mrf.mxu0
      %v4422 = vadd.f32 %v4235, %v4421
      %v4423 = vpop.f32.mrf.mxu0
      %4424 = vmatprep.mubr.f32.mxu0 0.0
      %4425 = vmatmul.mubr.f32.gmra.mxu0 %v4247
      %v4426 = vpop.f32.mrf.mxu0
      %v4427 = vadd.f32 %v4235, %v4426
      %v4428 = vpop.f32.mrf.mxu0
      %4429 = vmatprep.mubr.f32.mxu0 0.0
      %4430 = vmatmul.mubr.f32.gmra.mxu0 %v4250
      %v4431 = vpop.f32.mrf.mxu0
      %v4432 = vadd.f32 %v4235, %v4431
      %v4433 = vpop.f32.mrf.mxu0
      %4434 = vmatprep.mubr.f32.mxu0 0.0
      %4435 = vmatmul.mubr.f32.gmra.mxu0 %v4253
      %v4436 = vpop.f32.mrf.mxu0
      %v4437 = vadd.f32 %v4235, %v4436
      %v4438 = vpop.f32.mrf.mxu0
      %4439 = vmatprep.mubr.f32.mxu0 0.0
      %4440 = vmatmul.mubr.f32.gmra.mxu0 %v4256
      %v4441 = vpop.f32.mrf.mxu0
      %v4442 = vadd.f32 %v4235, %v4441
      %v4443 = vpop.f32.mrf.mxu0
      %4444 = vmatprep.mubr.f32.mxu0 0.0
      %4445 = vmatmul.mubr.f32.gmra.mxu0 %v4259
      %v4446 = vpop.f32.mrf.mxu0
      %v4447 = vadd.f32 %v4235, %v4446
      %v4448 = vpop.f32.mrf.mxu0
      %4449 = vmatprep.mubr.f32.mxu0 0.0
      %4450 = vmatmul.mubr.f32.gmra.mxu0 %v4262
      %v4451 = vpop.f32.mrf.mxu0
      %v4452 = vadd.f32 %v4235, %v4451
      %v4453 = vpop.f32.mrf.mxu0
      %4454 = vmatprep.mubr.f32.mxu0 0.0
      %4455 = vmatmul.mubr.f32.gmra.mxu0 %v4265
      %v4456 = vpop.f32.mrf.mxu0
      %v4457 = vadd.f32 %v4235, %v4456
      %v4458 = vpop.f32.mrf.mxu0
      %4459 = vmatprep.mubr.f32.mxu0 0.0
      %4460 = vmatmul.mubr.f32.gmra.mxu0 %v4268
      %v4461 = vpop.f32.mrf.mxu0
      %v4462 = vadd.f32 %v4235, %v4461
      %v4463 = vpop.f32.mrf.mxu0
      %4464 = vmatprep.mubr.f32.mxu0 0.0
      %4465 = vmatmul.mubr.f32.gmra.mxu0 %v4271
      %v4466 = vpop.f32.mrf.mxu0
      %v4467 = vadd.f32 %v4235, %v4466
      %v4468 = vpop.f32.mrf.mxu0
      %4469 = vmatprep.mubr.f32.mxu0 0.0
      %4470 = vmatmul.mubr.f32.gmra.mxu0 %v4274
      %v4471 = vpop.f32.mrf.mxu0
      %v4472 = vadd.f32 %v4235, %v4471
      %v4473 = vpop.f32.mrf.mxu0
      %4474 = vmatprep.mubr.f32.mxu0 0.0
      %4475 = vmatmul.mubr.f32.gmra.mxu0 %v4277
      %v4476 = vpop.f32.mrf.mxu0
      %v4477 = vadd.f32 %v4235, %v4476
      %v4478 = vpop.f32.mrf.mxu0
      %4479 = vmatprep.mubr.f32.mxu0 0.0
      %4480 = vmatmul.mubr.f32.gmra.mxu0 %v4280
      %v4481 = vpop.f32.mrf.mxu0
      %v4482 = vadd.f32 %v4235, %v4481
      %v4483 = vpop.f32.mrf.mxu0
      %4484 = vmatprep.mubr.f32.mxu0 0.0
      %4485 = vmatmul.mubr.f32.gmra.mxu0 %v4283
      %v4486 = vpop.f32.mrf.mxu0
      %v4487 = vadd.f32 %v4235, %v4486
      %v4488 = vpop.f32.mrf.mxu0
      %4489 = vmatprep.mubr.f32.mxu0 0.0
      %4490 = vmatmul.mubr.f32.gmra.mxu0 %v4286
      %v4491 = vpop.f32.mrf.mxu0
      %v4492 = vadd.f32 %v4235, %v4491
      %v4493 = vpop.f32.mrf.mxu0
      %4494 = vmatprep.mubr.f32.mxu0 0.0
      %4495 = vmatmul.mubr.f32.gmra.mxu0 %v4289
      %v4496 = vpop.f32.mrf.mxu0
      %v4497 = vadd.f32 %v4235, %v4496
      %v4498 = vpop.f32.mrf.mxu0
      %4499 = vmatprep.mubr.f32.mxu0 0.0
      %4500 = vmatmul.mubr.f32.gmra.mxu0 %v4292
      %v4501 = vpop.f32.mrf.mxu0
      %v4502 = vadd.f32 %v4235, %v4501
      %v4503 = vpop.f32.mrf.mxu0
      %4504 = vmatprep.mubr.f32.mxu0 0.0
      %4505 = vmatmul.mubr.f32.gmra.mxu0 %v4295
      %v4506 = vpop.f32.mrf.mxu0
      %v4507 = vadd.f32 %v4235, %v4506
      %v4508 = vpop.f32.mrf.mxu0
      %4509 = vmatprep.mubr.f32.mxu0 0.0
      %4510 = vmatmul.mubr.f32.gmra.mxu0 %v4298
      %v4511 = vpop.f32.mrf.mxu0
      %v4512 = vadd.f32 %v4235, %v4511
      %v4513 = vpop.f32.mrf.mxu0
      %4514 = vmatprep.mubr.f32.mxu0 0.0
      %4515 = vmatmul.mubr.f32.gmra.mxu0 %v4301
      %v4516 = vpop.f32.mrf.mxu0
      %v4517 = vadd.f32 %v4235, %v4516
      %v4518 = vpop.f32.mrf.mxu0
      %4519 = vmatprep.mubr.f32.mxu0 0.0
      %4520 = vmatmul.mubr.f32.gmra.mxu0 %v4304
      %v4521 = vpop.f32.mrf.mxu0
      %v4522 = vadd.f32 %v4235, %v4521
      %v4523 = vpop.f32.mrf.mxu0
      %4524 = vmatprep.mubr.f32.mxu0 0.0
      %4525 = vmatmul.mubr.f32.gmra.mxu0 %v4307
      %v4526 = vpop.f32.mrf.mxu0
      %v4527 = vadd.f32 %v4235, %v4526
      %v4528 = vpop.f32.mrf.mxu0
      %4529 = vmatprep.mubr.f32.mxu0 0.0
      %4530 = vmatmul.mubr.f32.gmra.mxu0 %v4310
      %v4531 = vpop.f32.mrf.mxu0
      %v4532 = vadd.f32 %v4235, %v4531
      %v4533 = vpop.f32.mrf.mxu0
      %4534 = vmatprep.mubr.f32.mxu0 0.0
      %4535 = vmatmul.mubr.f32.gmra.mxu0 %v4313
      %v4536 = vpop.f32.mrf.mxu0
      %v4537 = vadd.f32 %v4235, %v4536
      %v4538 = vpop.f32.mrf.mxu0
      %4539 = vmatprep.mubr.f32.mxu0 0.0
      %4540 = vmatmul.mubr.f32.gmra.mxu0 %v4316
      %v4541 = vpop.f32.mrf.mxu0
      %v4542 = vadd.f32 %v4235, %v4541
      %v4543 = vpop.f32.mrf.mxu0
      %4544 = vmatprep.mubr.f32.mxu0 0.0
      %4545 = vmatmul.mubr.f32.gmra.mxu0 %v4319
      %v4546 = vpop.f32.mrf.mxu0
      %v4547 = vadd.f32 %v4235, %v4546
      %v4548 = vpop.f32.mrf.mxu0
      %4549 = vmatprep.mubr.f32.mxu0 0.0
      %4550 = vmatmul.mubr.f32.gmra.mxu0 %v4322
      %v4551 = vpop.f32.mrf.mxu0
      %v4552 = vadd.f32 %v4235, %v4551
      %v4553 = vpop.f32.mrf.mxu0
      %4554 = vmatprep.mubr.f32.mxu0 0.0
      %4555 = vmatmul.mubr.f32.gmra.mxu0 %v4325
      %v4556 = vpop.f32.mrf.mxu0
      %v4557 = vadd.f32 %v4235, %v4556
      %v4558 = vpop.f32.mrf.mxu0
      %4559 = vmatprep.mubr.f32.mxu0 0.0
      %4560 = vmatmul.mubr.f32.gmra.mxu0 %v4328
      %v4561 = vpop.f32.mrf.mxu0
      %v4562 = vadd.f32 %v4235, %v4561
      %v4563 = vpop.f32.mrf.mxu0
      %4564 = vmatprep.mubr.f32.mxu0 0.0
      %4565 = vmatmul.mubr.f32.gmra.mxu0 %v4331
      %v4566 = vpop.f32.mrf.mxu0
      %v4567 = vadd.f32 %v4235, %v4566
      %v4568 = vpop.f32.mrf.mxu0
      %4569 = vmatprep.mubr.f32.mxu0 0.0
      %4570 = vmatmul.mubr.f32.gmra.mxu0 %v4334
      %v4571 = vpop.f32.mrf.mxu0
      %v4572 = vadd.f32 %v4235, %v4571
      %v4573 = vpop.f32.mrf.mxu0
      %4574 = vmatprep.mubr.f32.mxu0 0.0
      %4575 = vmatmul.mubr.f32.gmra.mxu0 %v4337
      %v4576 = vpop.f32.mrf.mxu0
      %v4577 = vadd.f32 %v4235, %v4576
      %v4578 = vpop.f32.mrf.mxu0
      %4579 = vmatprep.mubr.f32.mxu0 0.0
      %4580 = vmatmul.mubr.f32.gmra.mxu0 %v4340
      %v4581 = vpop.f32.mrf.mxu0
      %v4582 = vadd.f32 %v4235, %v4581
      %v4583 = vpop.f32.mrf.mxu0
      %4584 = vmatprep.mubr.f32.mxu0 0.0
      %4585 = vmatmul.mubr.f32.gmra.mxu0 %v4343
      %v4586 = vpop.f32.mrf.mxu0
      %v4587 = vadd.f32 %v4235, %v4586
      %v4588 = vpop.f32.mrf.mxu0
      %4589 = vdwg.mxu0
      %v4590 = vld [vmem:[%s246 + $0x20] sm:$0xff]
      %v4591 = vld [vmem:[%s246 + $0x28] sm:$0xff]
      %v4592 = vld [vmem:[%s246 + $0x30] sm:$0xff]
      %v4593 = vld [vmem:[%s246 + $0x38] sm:$0xff]
      %v4594 = vld [vmem:[%s246 + $0x40] sm:$0xff]
      %v4595 = vld [vmem:[%s246 + $0x48] sm:$0xff]
      %v4596 = vld [vmem:[%s246 + $0x50] sm:$0xff]
      %v4597 = vld [vmem:[%s246 + $0x58] sm:$0xff]
      %v4598 = vld [vmem:[%s246 + $0x60] sm:$0xff]
      %v4599 = vld [vmem:[%s246 + $0x68] sm:$0xff]
      %v4600 = vld [vmem:[%s246 + $0x70] sm:$0xff]
      %v4601 = vld [vmem:[%s246 + $0x78] sm:$0xff]
      %v4602 = vld [vmem:[%s246 + $0x80] sm:$0xff]
      %v4603 = vld [vmem:[%s246 + $0x88] sm:$0xff]
      %v4604 = vld [vmem:[%s246 + $0x90] sm:$0xff]
      %v4605 = vld [vmem:[%s246 + $0x98] sm:$0xff]
      %v4606 = vld [vmem:[%s246 + $0xa0] sm:$0xff]
      %v4607 = vld [vmem:[%s246 + $0xa8] sm:$0xff]
      %v4608 = vld [vmem:[%s246 + $0xb0] sm:$0xff]
      %v4609 = vld [vmem:[%s246 + $0xb8] sm:$0xff]
      %v4610 = vld [vmem:[%s246 + $0xc0] sm:$0xff]
      %v4611 = vld [vmem:[%s246 + $0xc8] sm:$0xff]
      %v4612 = vld [vmem:[%s246 + $0xd0] sm:$0xff]
      %v4613 = vld [vmem:[%s246 + $0xd8] sm:$0xff]
      %v4614 = vld [vmem:[%s246 + $0xe0] sm:$0xff]
      %v4615 = vld [vmem:[%s246 + $0xe8] sm:$0xff]
      %v4616 = vld [vmem:[%s246 + $0xf0] sm:$0xff]
      %v4617 = vld [vmem:[%s246 + $0xf8] sm:$0xff]
      %v4618 = vld [vmem:[%s246 + $0x100] sm:$0xff]
      %v4619 = vld [vmem:[%s246 + $0x108] sm:$0xff]
      %v4620 = vld [vmem:[%s246 + $0x110] sm:$0xff]
      %v4621 = vld [vmem:[%s246 + $0x118] sm:$0xff]
      %v4622 = vld [vmem:[%s246 + $0x120] sm:$0xff]
      %v4623 = vld [vmem:[%s246 + $0x128] sm:$0xff]
      %v4624 = vld [vmem:[%s246 + $0x130] sm:$0xff]
      %v4625 = vld [vmem:[%s246 + $0x138] sm:$0xff]
      %v4626 = vstv %s290
      %v4627 = vmul.f32 %v4590, %v4626
      %v4628 = vmul.f32 %v4591, %v4626
      %v4629 = vmul.f32 %v4592, %v4626
      %v4630 = vmul.f32 %v4593, %v4626
      %v4631 = vmul.f32 %v4594, %v4626
      %v4632 = vmul.f32 %v4595, %v4626
      %v4633 = vmul.f32 %v4596, %v4626
      %v4634 = vmul.f32 %v4597, %v4626
      %v4635 = vmul.f32 %v4598, %v4626
      %v4636 = vmul.f32 %v4599, %v4626
      %v4637 = vmul.f32 %v4600, %v4626
      %v4638 = vmul.f32 %v4601, %v4626
      %v4639 = vmul.f32 %v4602, %v4626
      %v4640 = vmul.f32 %v4603, %v4626
      %v4641 = vmul.f32 %v4604, %v4626
      %v4642 = vmul.f32 %v4605, %v4626
      %v4643 = vmul.f32 %v4606, %v4626
      %v4644 = vmul.f32 %v4607, %v4626
      %v4645 = vmul.f32 %v4608, %v4626
      %v4646 = vmul.f32 %v4609, %v4626
      %v4647 = vmul.f32 %v4610, %v4626
      %v4648 = vmul.f32 %v4611, %v4626
      %v4649 = vmul.f32 %v4612, %v4626
      %v4650 = vmul.f32 %v4613, %v4626
      %v4651 = vmul.f32 %v4614, %v4626
      %v4652 = vmul.f32 %v4615, %v4626
      %v4653 = vmul.f32 %v4616, %v4626
      %v4654 = vmul.f32 %v4617, %v4626
      %v4655 = vmul.f32 %v4618, %v4626
      %v4656 = vmul.f32 %v4619, %v4626
      %v4657 = vmul.f32 %v4620, %v4626
      %v4658 = vmul.f32 %v4621, %v4626
      %v4659 = vmul.f32 %v4622, %v4626
      %v4660 = vmul.f32 %v4623, %v4626
      %v4661 = vmul.f32 %v4624, %v4626
      %v4662 = vmul.f32 %v4625, %v4626
      %v4663 = vadd.f32 %v4412, %v4627
      %v4664 = vadd.f32 %v4417, %v4628
      %v4665 = vadd.f32 %v4422, %v4629
      %v4666 = vadd.f32 %v4427, %v4630
      %v4667 = vadd.f32 %v4432, %v4631
      %v4668 = vadd.f32 %v4437, %v4632
      %v4669 = vadd.f32 %v4442, %v4633
      %v4670 = vadd.f32 %v4447, %v4634
      %v4671 = vadd.f32 %v4452, %v4635
      %v4672 = vadd.f32 %v4457, %v4636
      %v4673 = vadd.f32 %v4462, %v4637
      %v4674 = vadd.f32 %v4467, %v4638
      %v4675 = vadd.f32 %v4472, %v4639
      %v4676 = vadd.f32 %v4477, %v4640
      %v4677 = vadd.f32 %v4482, %v4641
      %v4678 = vadd.f32 %v4487, %v4642
      %v4679 = vadd.f32 %v4492, %v4643
      %v4680 = vadd.f32 %v4497, %v4644
      %v4681 = vadd.f32 %v4502, %v4645
      %v4682 = vadd.f32 %v4507, %v4646
      %v4683 = vadd.f32 %v4512, %v4647
      %v4684 = vadd.f32 %v4517, %v4648
      %v4685 = vadd.f32 %v4522, %v4649
      %v4686 = vadd.f32 %v4527, %v4650
      %v4687 = vadd.f32 %v4532, %v4651
      %v4688 = vadd.f32 %v4537, %v4652
      %v4689 = vadd.f32 %v4542, %v4653
      %v4690 = vadd.f32 %v4547, %v4654
      %v4691 = vadd.f32 %v4552, %v4655
      %v4692 = vadd.f32 %v4557, %v4656
      %v4693 = vadd.f32 %v4562, %v4657
      %v4694 = vadd.f32 %v4567, %v4658
      %v4695 = vadd.f32 %v4572, %v4659
      %v4696 = vadd.f32 %v4577, %v4660
      %v4697 = vadd.f32 %v4582, %v4661
      %v4698 = vadd.f32 %v4587, %v4662
      %v4699 = vmax.f32 %v4663, 0.0
      %v4700 = vmax.f32 %v4664, 0.0
      %v4701 = vmax.f32 %v4665, 0.0
      %v4702 = vmax.f32 %v4666, 0.0
      %v4703 = vmax.f32 %v4667, 0.0
      %v4704 = vmax.f32 %v4668, 0.0
      %v4705 = vmax.f32 %v4669, 0.0
      %v4706 = vmax.f32 %v4670, 0.0
      %v4707 = vmax.f32 %v4671, 0.0
      %v4708 = vmax.f32 %v4672, 0.0
      %v4709 = vmax.f32 %v4673, 0.0
      %v4710 = vmax.f32 %v4674, 0.0
      %v4711 = vmax.f32 %v4675, 0.0
      %v4712 = vmax.f32 %v4676, 0.0
      %v4713 = vmax.f32 %v4677, 0.0
      %v4714 = vmax.f32 %v4678, 0.0
      %v4715 = vmax.f32 %v4679, 0.0
      %v4716 = vmax.f32 %v4680, 0.0
      %v4717 = vmax.f32 %v4681, 0.0
      %v4718 = vmax.f32 %v4682, 0.0
      %v4719 = vmax.f32 %v4683, 0.0
      %v4720 = vmax.f32 %v4684, 0.0
      %v4721 = vmax.f32 %v4685, 0.0
      %v4722 = vmax.f32 %v4686, 0.0
      %v4723 = vmax.f32 %v4687, 0.0
      %v4724 = vmax.f32 %v4688, 0.0
      %v4725 = vmax.f32 %v4689, 0.0
      %v4726 = vmax.f32 %v4690, 0.0
      %v4727 = vmax.f32 %v4691, 0.0
      %v4728 = vmax.f32 %v4692, 0.0
      %v4729 = vmax.f32 %v4693, 0.0
      %v4730 = vmax.f32 %v4694, 0.0
      %v4731 = vmax.f32 %v4695, 0.0
      %v4732 = vmax.f32 %v4696, 0.0
      %v4733 = vmax.f32 %v4697, 0.0
      %v4734 = vmax.f32 %v4698, 0.0
      %v4735 = vmul.f32 %v2336, %v4699
      %v4736 = vmul.f32 %v2341, %v4700
      %v4737 = vmul.f32 %v2346, %v4701
      %v4738 = vmul.f32 %v2351, %v4702
      %v4739 = vmul.f32 %v2356, %v4703
      %v4740 = vmul.f32 %v2361, %v4704
      %v4741 = vmul.f32 %v2366, %v4705
      %v4742 = vmul.f32 %v2371, %v4706
      %v4743 = vmul.f32 %v2376, %v4707
      %v4744 = vmul.f32 %v2381, %v4708
      %v4745 = vmul.f32 %v2386, %v4709
      %v4746 = vmul.f32 %v2391, %v4710
      %v4747 = vmul.f32 %v2396, %v4711
      %v4748 = vmul.f32 %v2401, %v4712
      %v4749 = vmul.f32 %v2406, %v4713
      %v4750 = vmul.f32 %v2411, %v4714
      %v4751 = vmul.f32 %v2416, %v4715
      %v4752 = vmul.f32 %v2421, %v4716
      %v4753 = vmul.f32 %v2426, %v4717
      %v4754 = vmul.f32 %v2431, %v4718
      %v4755 = vmul.f32 %v2436, %v4719
      %v4756 = vmul.f32 %v2441, %v4720
      %v4757 = vmul.f32 %v2446, %v4721
      %v4758 = vmul.f32 %v2451, %v4722
      %v4759 = vmul.f32 %v2456, %v4723
      %v4760 = vmul.f32 %v2461, %v4724
      %v4761 = vmul.f32 %v2466, %v4725
      %v4762 = vmul.f32 %v2471, %v4726
      %v4763 = vmul.f32 %v2476, %v4727
      %v4764 = vmul.f32 %v2481, %v4728
      %v4765 = vmul.f32 %v2486, %v4729
      %v4766 = vmul.f32 %v2491, %v4730
      %v4767 = vmul.f32 %v2496, %v4731
      %v4768 = vmul.f32 %v2501, %v4732
      %v4769 = vmul.f32 %v2506, %v4733
      %v4770 = vmul.f32 %v2511, %v4734
      %4771 = vst.msk [vmem:[%s251] sm:$0xff] %vm1631, 0.0
      %4772 = vst.msk [vmem:[%s251 + $0x8] sm:$0xff] %vm1631, 0.0
      %4773 = vst.msk [vmem:[%s251 + $0x10] sm:$0xff] %vm1631, 0.0
      %4774 = vst.msk [vmem:[%s251 + $0x18] sm:$0xff] %vm1631, 0.0
      %4775 = vst.msk [vmem:[%s251 + $0x140] sm:$0xff] %vm1631, 0.0
      %4776 = vst.msk [vmem:[%s251 + $0x148] sm:$0xff] %vm1631, 0.0
      %4777 = vst.msk [vmem:[%s251 + $0x150] sm:$0xff] %vm1631, 0.0
      %4778 = vst.msk [vmem:[%s251 + $0x158] sm:$0xff] %vm1631, 0.0
      %4779 = vst.msk [vmem:[%s251 + $0x20] sm:$0xff] %vm1631, %v4735
      %4780 = vst.msk [vmem:[%s251 + $0x28] sm:$0xff] %vm1631, %v4736
      %4781 = vst.msk [vmem:[%s251 + $0x30] sm:$0xff] %vm1631, %v4737
      %4782 = vst.msk [vmem:[%s251 + $0x38] sm:$0xff] %vm1631, %v4738
      %4783 = vst.msk [vmem:[%s251 + $0x40] sm:$0xff] %vm1631, %v4739
      %4784 = vst.msk [vmem:[%s251 + $0x48] sm:$0xff] %vm1631, %v4740
      %4785 = vst.msk [vmem:[%s251 + $0x50] sm:$0xff] %vm1631, %v4741
      %4786 = vst.msk [vmem:[%s251 + $0x58] sm:$0xff] %vm1631, %v4742
      %4787 = vst.msk [vmem:[%s251 + $0x60] sm:$0xff] %vm1631, %v4743
      %4788 = vst.msk [vmem:[%s251 + $0x68] sm:$0xff] %vm1631, %v4744
      %4789 = vst.msk [vmem:[%s251 + $0x70] sm:$0xff] %vm1631, %v4745
      %4790 = vst.msk [vmem:[%s251 + $0x78] sm:$0xff] %vm1631, %v4746
      %4791 = vst.msk [vmem:[%s251 + $0x80] sm:$0xff] %vm1631, %v4747
      %4792 = vst.msk [vmem:[%s251 + $0x88] sm:$0xff] %vm1631, %v4748
      %4793 = vst.msk [vmem:[%s251 + $0x90] sm:$0xff] %vm1631, %v4749
      %4794 = vst.msk [vmem:[%s251 + $0x98] sm:$0xff] %vm1631, %v4750
      %4795 = vst.msk [vmem:[%s251 + $0xa0] sm:$0xff] %vm1631, %v4751
      %4796 = vst.msk [vmem:[%s251 + $0xa8] sm:$0xff] %vm1631, %v4752
      %4797 = vst.msk [vmem:[%s251 + $0xb0] sm:$0xff] %vm1631, %v4753
      %4798 = vst.msk [vmem:[%s251 + $0xb8] sm:$0xff] %vm1631, %v4754
      %4799 = vst.msk [vmem:[%s251 + $0xc0] sm:$0xff] %vm1631, %v4755
      %4800 = vst.msk [vmem:[%s251 + $0xc8] sm:$0xff] %vm1631, %v4756
      %4801 = vst.msk [vmem:[%s251 + $0xd0] sm:$0xff] %vm1631, %v4757
      %4802 = vst.msk [vmem:[%s251 + $0xd8] sm:$0xff] %vm1631, %v4758
      %4803 = vst.msk [vmem:[%s251 + $0xe0] sm:$0xff] %vm1631, %v4759
      %4804 = vst.msk [vmem:[%s251 + $0xe8] sm:$0xff] %vm1631, %v4760
      %4805 = vst.msk [vmem:[%s251 + $0xf0] sm:$0xff] %vm1631, %v4761
      %4806 = vst.msk [vmem:[%s251 + $0xf8] sm:$0xff] %vm1631, %v4762
      %4807 = vst.msk [vmem:[%s251 + $0x100] sm:$0xff] %vm1631, %v4763
      %4808 = vst.msk [vmem:[%s251 + $0x108] sm:$0xff] %vm1631, %v4764
      %4809 = vst.msk [vmem:[%s251 + $0x110] sm:$0xff] %vm1631, %v4765
      %4810 = vst.msk [vmem:[%s251 + $0x118] sm:$0xff] %vm1631, %v4766
      %4811 = vst.msk [vmem:[%s251 + $0x120] sm:$0xff] %vm1631, %v4767
      %4812 = vst.msk [vmem:[%s251 + $0x128] sm:$0xff] %vm1631, %v4768
      %4813 = vst.msk [vmem:[%s251 + $0x130] sm:$0xff] %vm1631, %v4769
      %4814 = vst.msk [vmem:[%s251 + $0x138] sm:$0xff] %vm1631, %v4770
      %p4815 = scmp.lt.s32.totalorder %s17, 1
      %s4816 = scalar_select %p4815, %s17, 1
      %s4817 = smul.addr %s4816, 44
      %s4818 = smul.addr %s4817, 8
      %s4819 = scalar_lea.vmem %s6, %s4818
      // Predicated region
      $region45: #{tpu_custom_call.1} parent=43 // pred_check
        %p4820 = pneg %p166
      $region46: #{tpu_custom_call.1} parent=43 // pred_check_branch
        %4822 = sbr.rel (%p4820) target = $region48
      $region47: #{tpu_custom_call.1} parent=43 // pred_region
        _
      $region48: #{tpu_custom_call.1} parent=43 // pred_fallthru
        _
    $region44: #{tpu_custom_call.1} parent=5 // pred_fallthru
      _
    %p4823 = scmp.le.s32.totalorder 2, %s12
    // Predicated region
    $region49: #{tpu_custom_call.1} parent=5 // pred_check
      %p4824 = pneg %p4823
    $region50: #{tpu_custom_call.1} parent=5 // pred_check_branch
      %4826 = sbr.rel (%p4824) target = $region52
    $region51: #{tpu_custom_call.1} parent=5 // pred_region
      %s4827 = ssub.s32 %s12, 2
      // Predicated region
      $region53: #{tpu_custom_call.1} parent=51 // pred_check
        %p4828 = pneg %p172
      $region54: #{tpu_custom_call.1} parent=51 // pred_check_branch
        %4830 = sbr.rel (%p4828) target = $region56
      $region55: #{tpu_custom_call.1} parent=51 // pred_region
        %p4831 = scmp.lt.s32.totalorder %s18, 1
        %s4832 = scalar_select %p4831, %s18, 1
        %s4833 = smul.addr %s4832, 44
        %s4834 = smul.addr %s4833, 8
        %s4835 = scalar_lea.vmem %s6, %s4834
      $region56: #{tpu_custom_call.1} parent=51 // pred_fallthru
        _
    $region52: #{tpu_custom_call.1} parent=5 // pred_fallthru
      _
  $region6: #{tpu_custom_call.1} parent=0 // loop_footer
    %s16 = sadd.s32 1, %s12
  $region7: #{tpu_custom_call.1} parent=0 // loop_footer_branch
    %11 = sbr.rel target = $region3
  $region8: #{tpu_custom_call.1} parent=0 // loop_exit
    _

</llo_original>
